<compile_context>
chip_gen: v6e
topology: v6e:2x2x1
jax: 0.10.0
libtpu: 0.0.40
codegen_flags: <defaults>
</compile_context>

<pallas_src>
import functools

import jax
import jax.numpy as jnp
from jax import lax
from jax.experimental import pallas as pl
from jax.experimental.pallas import tpu as pltpu

LANE = 128


def _round_up(x, m):
    return (x + m - 1) // m * m


def _pick_tile(total, candidates):
    for t in candidates:
        if total % t == 0:
            return t
    return total


def aspp_conv_forward(x_nchw, w_oihw, gamma, beta, run_mean, run_var,
                      *, padding, dilation, eps=1e-5):
    """ASPPConv forward: dilated conv (stride=1, no bias) + BN (eval) + ReLU."""
    N, Cin, H, W = x_nchw.shape
    Cout, Cin_w, KH, KW = w_oihw.shape
    assert Cin_w == Cin

    # Lane-dense channel padding + tile sizes.
    Cin_p = _round_up(Cin, LANE)
    Cout_p = _round_up(Cout, LANE)
    CIN_T = _pick_tile(Cin_p, (256, 128))     # reduction tile (input block)
    COUT_T = _pick_tile(Cout_p, (256, 128))   # fills the 256-wide MXU (v6e/v7x)

    Hp, Wp = H + 2 * padding, W + 2 * padding
    Wp8 = _round_up(Wp, 8)                    # 8-aligned row stride
    Ho = Hp - dilation * (KH - 1)             # stride = 1
    Wo = Wp - dilation * (KW - 1)

    row_off = dilation * Wp8                  # flat offset of one kh step (8-aligned)
    tail = _round_up((KW - 1) * dilation, 8)  # room for the kw product shift
    L_acc = Ho * Wp8                          # accumulator rows (wrap cols dropped)
    L_row = L_acc + tail                      # rows fed to each tap matmul
    extra_rows = -(-tail // Wp8)              # cdiv: keep all tap reads in-bounds
    L_in = (Hp + extra_rows) * Wp8

    # ---- glue (plain JAX, fused under jit): layout, pad, BN fold ------------
    x_nhwc = jnp.transpose(x_nchw, (0, 2, 3, 1))
    x_pad = jnp.pad(
        x_nhwc,
        ((0, 0),
         (padding, padding + extra_rows),
         (padding, padding + (Wp8 - Wp)),
         (0, Cin_p - Cin))).astype(jnp.bfloat16)
    x_flat = x_pad.reshape(N, L_in, Cin_p)

    # BatchNorm (inference): scale folded into the weights (f32, then bf16),
    # bias kept for the epilogue.
    scale = (gamma / jnp.sqrt(run_var + eps)).astype(jnp.float32)
    bias = (beta - run_mean * scale).astype(jnp.float32)
    w_taps = jnp.transpose(w_oihw, (2, 3, 1, 0)).reshape(KH * KW, Cin, Cout)
    w_taps = w_taps.astype(jnp.float32) * scale[None, None, :]
    w_taps = jnp.pad(w_taps, ((0, 0), (0, Cin_p - Cin), (0, Cout_p - Cout)))
    w_taps = w_taps.astype(jnp.bfloat16)
    bias2 = jnp.pad(bias, (0, Cout_p - Cout)).reshape(1, Cout_p)

    grid = (N, Cout_p // COUT_T, Cin_p // CIN_T)

    # ---- kernel --------------------------------------------------------------
    def kernel(x_ref, w_ref, b_ref, o_ref, acc_ref):
        ci = pl.program_id(2)

        @pl.when(ci == 0)
        def _init():
            acc_ref[...] = jnp.zeros_like(acc_ref)

        cin0 = pl.multiple_of(ci * CIN_T, CIN_T)
        for kh in range(KH):
            # Contiguous, 8-aligned row slice -> full-rate loads, clean MXU
            # operand (no relayout, no reshape).
            rows = x_ref[0, kh * row_off:kh * row_off + L_row, :]
            for kw in range(KW):
                t = kh * KW + kw
                w_t = w_ref[t, pl.ds(cin0, CIN_T), :]
                prod = jnp.dot(rows, w_t, preferred_element_type=jnp.float32)
                # kw shift on the f32 product (overlaps with the next matmul).
                acc_ref[...] += prod[kw * dilation:kw * dilation + L_acc, :]

        @pl.when(ci == pl.num_programs(2) - 1)
        def _finalize():
            y = acc_ref[...] + b_ref[...]                  # folded-BN bias
            o_ref[0] = jnp.maximum(y, 0.0).astype(o_ref.dtype)

    # VMEM budget: double-buffered blocks + accumulator, clamped to 3/4 of the
    # device's physical VMEM (≈48 MiB on v7x, up to ≈96 MiB on v5e/v6e).
    in_blk = L_in * CIN_T * 2
    w_blk = KH * KW * Cin_p * COUT_T * 2
    out_blk = L_acc * COUT_T * 2
    acc_blk = L_acc * COUT_T * 4
    vmem_limit = 2 * (in_blk + w_blk + out_blk) + acc_blk + (4 << 20)
    vmem_limit = max(32 << 20, min(vmem_limit, 96 << 20))
    try:
        cap = pltpu.get_tpu_info().vmem_capacity_bytes
        vmem_limit = min(vmem_limit, cap * 3 // 4)
    except Exception:
        pass

    out_flat = pl.pallas_call(
        kernel,
        out_shape=jax.ShapeDtypeStruct((N, L_acc, Cout_p), jnp.bfloat16),
        grid_spec=pltpu.PrefetchScalarGridSpec(
            num_scalar_prefetch=0,
            grid=grid,
            in_specs=[
                pl.BlockSpec((1, L_in, CIN_T),
                             lambda n, co, ci: (n, 0, ci)),
                # Full-Cin weight block: resident across ci and the batch.
                pl.BlockSpec((KH * KW, Cin_p, COUT_T),
                             lambda n, co, ci: (0, 0, co)),
                pl.BlockSpec((1, COUT_T), lambda n, co, ci: (0, co)),
            ],
            out_specs=pl.BlockSpec((1, L_acc, COUT_T),
                                   lambda n, co, ci: (n, 0, co)),
            scratch_shapes=[pltpu.VMEM((L_acc, COUT_T), jnp.float32)],
        ),
        compiler_params=pltpu.CompilerParams(
            dimension_semantics=("parallel", "parallel", "arbitrary"),
            vmem_limit_bytes=int(vmem_limit),
        ),
    )(x_flat, w_taps, bias2)

    # Drop wrap/pad columns and channel padding, back to NCHW, f32.
    out = out_flat.reshape(N, Ho, Wp8, Cout_p)[:, :, :Wo, :Cout]
    return jnp.transpose(out, (0, 3, 1, 2)).astype(jnp.float32)


def reference_forward(x_nchw, w_oihw, gamma, beta, run_mean, run_var,
                      *, padding, dilation, eps=1e-5):
    # Pre-round x / w to bf16 (what the kernel feeds the MXU), conv in f32.
    xr = x_nchw.astype(jnp.bfloat16).astype(jnp.float32)
    wr = w_oihw.astype(jnp.bfloat16).astype(jnp.float32)
    y = lax.conv_general_dilated(
        xr, wr, window_strides=(1, 1),
        padding=((padding, padding), (padding, padding)),
        rhs_dilation=(dilation, dilation),
        dimension_numbers=("NCHW", "OIHW", "NCHW"))
    scale = gamma / jnp.sqrt(run_var + eps)
    bias = beta - run_mean * scale
    y = y * scale[None, :, None, None] + bias[None, :, None, None]
    return jnp.maximum(y, 0.0)


if __name__ == "__main__":
    # Typical ASPP branch hyperparameters at toy size: 3x3, dilation=2, padding=2
    inplanes, outplanes = 4, 8
    kernel_size, padding, dilation = 3, 2, 2
    N, H, W = 2, 16, 16

    key = jax.random.PRNGKey(0)
    kx, kw, kg, kb = jax.random.split(key, 4)

    x = jax.random.normal(kx, (N, inplanes, H, W), dtype=jnp.float32)
    # Conv2d weight (bias=False): (outplanes, inplanes, KH, KW)
    w = jax.random.normal(kw, (outplanes, inplanes, kernel_size, kernel_size),
                          dtype=jnp.float32) * 0.1
    # BatchNorm2d parameters / running stats (eval mode).
    gamma = 1.0 + 0.1 * jax.random.normal(kg, (outplanes,), dtype=jnp.float32)
    beta = 0.05 * jax.random.normal(kb, (outplanes,), dtype=jnp.float32)
    run_mean = jnp.linspace(-0.2, 0.2, outplanes, dtype=jnp.float32)
    run_var = jnp.linspace(0.8, 1.2, outplanes, dtype=jnp.float32)

    fwd = jax.jit(functools.partial(aspp_conv_forward, padding=padding,
                                    dilation=dilation))
    out = jax.block_until_ready(fwd(x, w, gamma, beta, run_mean, run_var))

    ref = reference_forward(x, w, gamma, beta, run_mean, run_var,
                            padding=padding, dilation=dilation)
    assert out.shape == ref.shape == (N, outplanes, H, W), (out.shape, ref.shape)
    max_err = float(jnp.max(jnp.abs(out - ref)))
    assert jnp.allclose(out, ref, atol=3e-2, rtol=3e-2), max_err

    print("KERNEL_OK")
</pallas_src>

<mosaic_0001>
module attributes {stable_mosaic.version = 11 : i64} {
  func.func @kernel(%arg0: i32, %arg1: i32, %arg2: i32, %arg3: memref<1x504x128xbf16, #tpu.memory_space<vmem>>, %arg4: memref<9x128x128xbf16, #tpu.memory_space<vmem>>, %arg5: memref<1x128xf32, #tpu.memory_space<vmem>>, %arg6: memref<1x384x128xbf16, #tpu.memory_space<vmem>>, %arg7: memref<384x128xf32, #tpu.memory_space<vmem>>) attributes {dimension_semantics = [#tpu.dimension_semantics<parallel>, #tpu.dimension_semantics<parallel>, #tpu.dimension_semantics<arbitrary>], iteration_bounds = array<i64: 2, 1, 1>, scalar_prefetch = 0 : i64, scratch_operands = 1 : i64, tpu.core_type = #tpu.core_type<tc>, window_params = [{transform_indices = @transform_0, window_bounds = array<i64: 1, 504, 128>}, {transform_indices = @transform_1, window_bounds = array<i64: 9, 128, 128>}, {transform_indices = @transform_2, window_bounds = array<i64: 1, 128>}, {transform_indices = @transform_3, window_bounds = array<i64: 1, 384, 128>}]} {
    %c0_i32 = arith.constant 0 : i32
    %0 = arith.cmpi eq, %arg2, %c0_i32 : i32
    %1 = arith.extui %0 : i1 to i32
    %c0_i32_0 = arith.constant 0 : i32
    %2 = arith.cmpi ne, %1, %c0_i32_0 : i32
    scf.if %2 {
      %cst_63 = arith.constant 0.000000e+00 : f32
      %86 = vector.broadcast %cst_63 : f32 to vector<384x128xf32>
      %c0_64 = arith.constant 0 : index
      %c0_65 = arith.constant 0 : index
      %87 = vector.load %arg7[%c0_64, %c0_65] : memref<384x128xf32, #tpu.memory_space<vmem>>, vector<384x128xf32>
      tpu.vector_store %arg7[%c0_64, %c0_65], %86 {strides = array<i32>} : memref<384x128xf32, #tpu.memory_space<vmem>>, vector<384x128xf32>,
    } else {
    }
    %c128_i32 = arith.constant 128 : i32
    %3 = arith.muli %arg2, %c128_i32 : i32
    %4 = tpu.assume_multiple %3, 128 : i32
    %c0 = arith.constant 0 : index
    %c0_1 = arith.constant 0 : index
    %c0_2 = arith.constant 0 : index
    %5 = vector.load %arg3[%c0, %c0_1, %c0_2] : memref<1x504x128xbf16, #tpu.memory_space<vmem>>, vector<1x392x128xbf16>
    %6 = vector.shape_cast %5 : vector<1x392x128xbf16> to vector<392x128xbf16>
    %c0_3 = arith.constant 0 : index
    %7 = arith.index_cast %4 : i32 to index
    %c0_4 = arith.constant 0 : index
    %8 = vector.load %arg4[%c0_3, %7, %c0_4] : memref<9x128x128xbf16, #tpu.memory_space<vmem>>, vector<1x128x128xbf16>
    %9 = vector.shape_cast %8 : vector<1x128x128xbf16> to vector<128x128xbf16>
    %cst = arith.constant dense<0.000000e+00> : vector<392x128xf32>
    %10 = tpu.matmul %6, %9, %cst {dimension_numbers = #tpu.dot_dimension_numbers<[1], [0], [0], [1], [0, 0, 1, 1], [], []>} : vector<392x128xbf16>, vector<128x128xbf16>, vector<392x128xf32> -> vector<392x128xf32>
    %c0_5 = arith.constant 0 : index
    %c0_6 = arith.constant 0 : index
    %11 = vector.load %arg7[%c0_5, %c0_6] : memref<384x128xf32, #tpu.memory_space<vmem>>, vector<384x128xf32>
    %12 = vector.extract_strided_slice %10 {offsets = [0, 0], sizes = [384, 128], strides = [1, 1]} : vector<392x128xf32> to vector<384x128xf32>
    %13 = arith.addf %11, %12 : vector<384x128xf32>
    %c0_7 = arith.constant 0 : index
    %c0_8 = arith.constant 0 : index
    %14 = vector.load %arg7[%c0_7, %c0_8] : memref<384x128xf32, #tpu.memory_space<vmem>>, vector<384x128xf32>
    tpu.vector_store %arg7[%c0_7, %c0_8], %13 {strides = array<i32>} : memref<384x128xf32, #tpu.memory_space<vmem>>, vector<384x128xf32>,
    %c1 = arith.constant 1 : index
    %15 = arith.index_cast %4 : i32 to index
    %c0_9 = arith.constant 0 : index
    %16 = vector.load %arg4[%c1, %15, %c0_9] : memref<9x128x128xbf16, #tpu.memory_space<vmem>>, vector<1x128x128xbf16>
    %17 = vector.shape_cast %16 : vector<1x128x128xbf16> to vector<128x128xbf16>
    %cst_10 = arith.constant dense<0.000000e+00> : vector<392x128xf32>
    %18 = tpu.matmul %6, %17, %cst_10 {dimension_numbers = #tpu.dot_dimension_numbers<[1], [0], [0], [1], [0, 0, 1, 1], [], []>} : vector<392x128xbf16>, vector<128x128xbf16>, vector<392x128xf32> -> vector<392x128xf32>
    %c0_11 = arith.constant 0 : index
    %c0_12 = arith.constant 0 : index
    %19 = vector.load %arg7[%c0_11, %c0_12] : memref<384x128xf32, #tpu.memory_space<vmem>>, vector<384x128xf32>
    %20 = vector.extract_strided_slice %18 {offsets = [2, 0], sizes = [384, 128], strides = [1, 1]} : vector<392x128xf32> to vector<384x128xf32>
    %21 = arith.addf %19, %20 : vector<384x128xf32>
    %c0_13 = arith.constant 0 : index
    %c0_14 = arith.constant 0 : index
    %22 = vector.load %arg7[%c0_13, %c0_14] : memref<384x128xf32, #tpu.memory_space<vmem>>, vector<384x128xf32>
    tpu.vector_store %arg7[%c0_13, %c0_14], %21 {strides = array<i32>} : memref<384x128xf32, #tpu.memory_space<vmem>>, vector<384x128xf32>,
    %c2 = arith.constant 2 : index
    %23 = arith.index_cast %4 : i32 to index
    %c0_15 = arith.constant 0 : index
    %24 = vector.load %arg4[%c2, %23, %c0_15] : memref<9x128x128xbf16, #tpu.memory_space<vmem>>, vector<1x128x128xbf16>
    %25 = vector.shape_cast %24 : vector<1x128x128xbf16> to vector<128x128xbf16>
    %cst_16 = arith.constant dense<0.000000e+00> : vector<392x128xf32>
    %26 = tpu.matmul %6, %25, %cst_16 {dimension_numbers = #tpu.dot_dimension_numbers<[1], [0], [0], [1], [0, 0, 1, 1], [], []>} : vector<392x128xbf16>, vector<128x128xbf16>, vector<392x128xf32> -> vector<392x128xf32>
    %c0_17 = arith.constant 0 : index
    %c0_18 = arith.constant 0 : index
    %27 = vector.load %arg7[%c0_17, %c0_18] : memref<384x128xf32, #tpu.memory_space<vmem>>, vector<384x128xf32>
    %28 = vector.extract_strided_slice %26 {offsets = [4, 0], sizes = [384, 128], strides = [1, 1]} : vector<392x128xf32> to vector<384x128xf32>
    %29 = arith.addf %27, %28 : vector<384x128xf32>
    %c0_19 = arith.constant 0 : index
    %c0_20 = arith.constant 0 : index
    %30 = vector.load %arg7[%c0_19, %c0_20] : memref<384x128xf32, #tpu.memory_space<vmem>>, vector<384x128xf32>
    tpu.vector_store %arg7[%c0_19, %c0_20], %29 {strides = array<i32>} : memref<384x128xf32, #tpu.memory_space<vmem>>, vector<384x128xf32>,
    %c0_21 = arith.constant 0 : index
    %c48 = arith.constant 48 : index
    %c0_22 = arith.constant 0 : index
    %31 = vector.load %arg3[%c0_21, %c48, %c0_22] : memref<1x504x128xbf16, #tpu.memory_space<vmem>>, vector<1x392x128xbf16>
    %32 = vector.shape_cast %31 : vector<1x392x128xbf16> to vector<392x128xbf16>
    %c3 = arith.constant 3 : index
    %33 = arith.index_cast %4 : i32 to index
    %c0_23 = arith.constant 0 : index
    %34 = vector.load %arg4[%c3, %33, %c0_23] : memref<9x128x128xbf16, #tpu.memory_space<vmem>>, vector<1x128x128xbf16>
    %35 = vector.shape_cast %34 : vector<1x128x128xbf16> to vector<128x128xbf16>
    %cst_24 = arith.constant dense<0.000000e+00> : vector<392x128xf32>
    %36 = tpu.matmul %32, %35, %cst_24 {dimension_numbers = #tpu.dot_dimension_numbers<[1], [0], [0], [1], [0, 0, 1, 1], [], []>} : vector<392x128xbf16>, vector<128x128xbf16>, vector<392x128xf32> -> vector<392x128xf32>
    %c0_25 = arith.constant 0 : index
    %c0_26 = arith.constant 0 : index
    %37 = vector.load %arg7[%c0_25, %c0_26] : memref<384x128xf32, #tpu.memory_space<vmem>>, vector<384x128xf32>
    %38 = vector.extract_strided_slice %36 {offsets = [0, 0], sizes = [384, 128], strides = [1, 1]} : vector<392x128xf32> to vector<384x128xf32>
    %39 = arith.addf %37, %38 : vector<384x128xf32>
    %c0_27 = arith.constant 0 : index
    %c0_28 = arith.constant 0 : index
    %40 = vector.load %arg7[%c0_27, %c0_28] : memref<384x128xf32, #tpu.memory_space<vmem>>, vector<384x128xf32>
    tpu.vector_store %arg7[%c0_27, %c0_28], %39 {strides = array<i32>} : memref<384x128xf32, #tpu.memory_space<vmem>>, vector<384x128xf32>,
    %c4 = arith.constant 4 : index
    %41 = arith.index_cast %4 : i32 to index
    %c0_29 = arith.constant 0 : index
    %42 = vector.load %arg4[%c4, %41, %c0_29] : memref<9x128x128xbf16, #tpu.memory_space<vmem>>, vector<1x128x128xbf16>
    %43 = vector.shape_cast %42 : vector<1x128x128xbf16> to vector<128x128xbf16>
    %cst_30 = arith.constant dense<0.000000e+00> : vector<392x128xf32>
    %44 = tpu.matmul %32, %43, %cst_30 {dimension_numbers = #tpu.dot_dimension_numbers<[1], [0], [0], [1], [0, 0, 1, 1], [], []>} : vector<392x128xbf16>, vector<128x128xbf16>, vector<392x128xf32> -> vector<392x128xf32>
    %c0_31 = arith.constant 0 : index
    %c0_32 = arith.constant 0 : index
    %45 = vector.load %arg7[%c0_31, %c0_32] : memref<384x128xf32, #tpu.memory_space<vmem>>, vector<384x128xf32>
    %46 = vector.extract_strided_slice %44 {offsets = [2, 0], sizes = [384, 128], strides = [1, 1]} : vector<392x128xf32> to vector<384x128xf32>
    %47 = arith.addf %45, %46 : vector<384x128xf32>
    %c0_33 = arith.constant 0 : index
    %c0_34 = arith.constant 0 : index
    %48 = vector.load %arg7[%c0_33, %c0_34] : memref<384x128xf32, #tpu.memory_space<vmem>>, vector<384x128xf32>
    tpu.vector_store %arg7[%c0_33, %c0_34], %47 {strides = array<i32>} : memref<384x128xf32, #tpu.memory_space<vmem>>, vector<384x128xf32>,
    %c5 = arith.constant 5 : index
    %49 = arith.index_cast %4 : i32 to index
    %c0_35 = arith.constant 0 : index
    %50 = vector.load %arg4[%c5, %49, %c0_35] : memref<9x128x128xbf16, #tpu.memory_space<vmem>>, vector<1x128x128xbf16>
    %51 = vector.shape_cast %50 : vector<1x128x128xbf16> to vector<128x128xbf16>
    %cst_36 = arith.constant dense<0.000000e+00> : vector<392x128xf32>
    %52 = tpu.matmul %32, %51, %cst_36 {dimension_numbers = #tpu.dot_dimension_numbers<[1], [0], [0], [1], [0, 0, 1, 1], [], []>} : vector<392x128xbf16>, vector<128x128xbf16>, vector<392x128xf32> -> vector<392x128xf32>
    %c0_37 = arith.constant 0 : index
    %c0_38 = arith.constant 0 : index
    %53 = vector.load %arg7[%c0_37, %c0_38] : memref<384x128xf32, #tpu.memory_space<vmem>>, vector<384x128xf32>
    %54 = vector.extract_strided_slice %52 {offsets = [4, 0], sizes = [384, 128], strides = [1, 1]} : vector<392x128xf32> to vector<384x128xf32>
    %55 = arith.addf %53, %54 : vector<384x128xf32>
    %c0_39 = arith.constant 0 : index
    %c0_40 = arith.constant 0 : index
    %56 = vector.load %arg7[%c0_39, %c0_40] : memref<384x128xf32, #tpu.memory_space<vmem>>, vector<384x128xf32>
    tpu.vector_store %arg7[%c0_39, %c0_40], %55 {strides = array<i32>} : memref<384x128xf32, #tpu.memory_space<vmem>>, vector<384x128xf32>,
    %c0_41 = arith.constant 0 : index
    %c96 = arith.constant 96 : index
    %c0_42 = arith.constant 0 : index
    %57 = vector.load %arg3[%c0_41, %c96, %c0_42] : memref<1x504x128xbf16, #tpu.memory_space<vmem>>, vector<1x392x128xbf16>
    %58 = vector.shape_cast %57 : vector<1x392x128xbf16> to vector<392x128xbf16>
    %c6 = arith.constant 6 : index
    %59 = arith.index_cast %4 : i32 to index
    %c0_43 = arith.constant 0 : index
    %60 = vector.load %arg4[%c6, %59, %c0_43] : memref<9x128x128xbf16, #tpu.memory_space<vmem>>, vector<1x128x128xbf16>
    %61 = vector.shape_cast %60 : vector<1x128x128xbf16> to vector<128x128xbf16>
    %cst_44 = arith.constant dense<0.000000e+00> : vector<392x128xf32>
    %62 = tpu.matmul %58, %61, %cst_44 {dimension_numbers = #tpu.dot_dimension_numbers<[1], [0], [0], [1], [0, 0, 1, 1], [], []>} : vector<392x128xbf16>, vector<128x128xbf16>, vector<392x128xf32> -> vector<392x128xf32>
    %c0_45 = arith.constant 0 : index
    %c0_46 = arith.constant 0 : index
    %63 = vector.load %arg7[%c0_45, %c0_46] : memref<384x128xf32, #tpu.memory_space<vmem>>, vector<384x128xf32>
    %64 = vector.extract_strided_slice %62 {offsets = [0, 0], sizes = [384, 128], strides = [1, 1]} : vector<392x128xf32> to vector<384x128xf32>
    %65 = arith.addf %63, %64 : vector<384x128xf32>
    %c0_47 = arith.constant 0 : index
    %c0_48 = arith.constant 0 : index
    %66 = vector.load %arg7[%c0_47, %c0_48] : memref<384x128xf32, #tpu.memory_space<vmem>>, vector<384x128xf32>
    tpu.vector_store %arg7[%c0_47, %c0_48], %65 {strides = array<i32>} : memref<384x128xf32, #tpu.memory_space<vmem>>, vector<384x128xf32>,
    %c7 = arith.constant 7 : index
    %67 = arith.index_cast %4 : i32 to index
    %c0_49 = arith.constant 0 : index
    %68 = vector.load %arg4[%c7, %67, %c0_49] : memref<9x128x128xbf16, #tpu.memory_space<vmem>>, vector<1x128x128xbf16>
    %69 = vector.shape_cast %68 : vector<1x128x128xbf16> to vector<128x128xbf16>
    %cst_50 = arith.constant dense<0.000000e+00> : vector<392x128xf32>
    %70 = tpu.matmul %58, %69, %cst_50 {dimension_numbers = #tpu.dot_dimension_numbers<[1], [0], [0], [1], [0, 0, 1, 1], [], []>} : vector<392x128xbf16>, vector<128x128xbf16>, vector<392x128xf32> -> vector<392x128xf32>
    %c0_51 = arith.constant 0 : index
    %c0_52 = arith.constant 0 : index
    %71 = vector.load %arg7[%c0_51, %c0_52] : memref<384x128xf32, #tpu.memory_space<vmem>>, vector<384x128xf32>
    %72 = vector.extract_strided_slice %70 {offsets = [2, 0], sizes = [384, 128], strides = [1, 1]} : vector<392x128xf32> to vector<384x128xf32>
    %73 = arith.addf %71, %72 : vector<384x128xf32>
    %c0_53 = arith.constant 0 : index
    %c0_54 = arith.constant 0 : index
    %74 = vector.load %arg7[%c0_53, %c0_54] : memref<384x128xf32, #tpu.memory_space<vmem>>, vector<384x128xf32>
    tpu.vector_store %arg7[%c0_53, %c0_54], %73 {strides = array<i32>} : memref<384x128xf32, #tpu.memory_space<vmem>>, vector<384x128xf32>,
    %c8 = arith.constant 8 : index
    %75 = arith.index_cast %4 : i32 to index
    %c0_55 = arith.constant 0 : index
    %76 = vector.load %arg4[%c8, %75, %c0_55] : memref<9x128x128xbf16, #tpu.memory_space<vmem>>, vector<1x128x128xbf16>
    %77 = vector.shape_cast %76 : vector<1x128x128xbf16> to vector<128x128xbf16>
    %cst_56 = arith.constant dense<0.000000e+00> : vector<392x128xf32>
    %78 = tpu.matmul %58, %77, %cst_56 {dimension_numbers = #tpu.dot_dimension_numbers<[1], [0], [0], [1], [0, 0, 1, 1], [], []>} : vector<392x128xbf16>, vector<128x128xbf16>, vector<392x128xf32> -> vector<392x128xf32>
    %c0_57 = arith.constant 0 : index
    %c0_58 = arith.constant 0 : index
    %79 = vector.load %arg7[%c0_57, %c0_58] : memref<384x128xf32, #tpu.memory_space<vmem>>, vector<384x128xf32>
    %80 = vector.extract_strided_slice %78 {offsets = [4, 0], sizes = [384, 128], strides = [1, 1]} : vector<392x128xf32> to vector<384x128xf32>
    %81 = arith.addf %79, %80 : vector<384x128xf32>
    %c0_59 = arith.constant 0 : index
    %c0_60 = arith.constant 0 : index
    %82 = vector.load %arg7[%c0_59, %c0_60] : memref<384x128xf32, #tpu.memory_space<vmem>>, vector<384x128xf32>
    tpu.vector_store %arg7[%c0_59, %c0_60], %81 {strides = array<i32>} : memref<384x128xf32, #tpu.memory_space<vmem>>, vector<384x128xf32>,
    %c0_i32_61 = arith.constant 0 : i32
    %83 = arith.cmpi eq, %arg2, %c0_i32_61 : i32
    %84 = arith.extui %83 : i1 to i32
    %c0_i32_62 = arith.constant 0 : i32
    %85 = arith.cmpi ne, %84, %c0_i32_62 : i32
    scf.if %85 {
      %c0_63 = arith.constant 0 : index
      %c0_64 = arith.constant 0 : index
      %86 = vector.load %arg7[%c0_63, %c0_64] : memref<384x128xf32, #tpu.memory_space<vmem>>, vector<384x128xf32>
      %c0_65 = arith.constant 0 : index
      %c0_66 = arith.constant 0 : index
      %87 = vector.load %arg5[%c0_65, %c0_66] : memref<1x128xf32, #tpu.memory_space<vmem>>, vector<1x128xf32>
      %88 = vector.broadcast %87 : vector<1x128xf32> to vector<384x128xf32>
      %89 = arith.addf %86, %88 : vector<384x128xf32>
      %cst_67 = arith.constant 0.000000e+00 : f32
      %90 = vector.broadcast %cst_67 : f32 to vector<384x128xf32>
      %91 = arith.maximumf %89, %90 : vector<384x128xf32>
      %92 = arith.truncf %91 : vector<384x128xf32> to vector<384x128xbf16>
      %c0_68 = arith.constant 0 : index
      %c0_69 = arith.constant 0 : index
      %c0_70 = arith.constant 0 : index
      %93 = vector.load %arg6[%c0_68, %c0_69, %c0_70] : memref<1x384x128xbf16, #tpu.memory_space<vmem>>, vector<1x384x128xbf16>
      %94 = vector.shape_cast %93 : vector<1x384x128xbf16> to vector<384x128xbf16>
      %95 = vector.shape_cast %92 : vector<384x128xbf16> to vector<1x384x128xbf16>
      tpu.vector_store %arg6[%c0_68, %c0_69, %c0_70], %95 {strides = array<i32>} : memref<1x384x128xbf16, #tpu.memory_space<vmem>>, vector<1x384x128xbf16>,
    } else {
    }
    return
  }
  func.func @transform_0(%arg0: i32, %arg1: i32, %arg2: i32) -> (i32, i32, i32) {
    %c0_i32 = arith.constant 0 : i32
    %c0_i32_0 = arith.constant 0 : i32
    return %arg0, %c0_i32, %arg2 : i32, i32, i32
  }
  func.func @transform_1(%arg0: i32, %arg1: i32, %arg2: i32) -> (i32, i32, i32) {
    %c0_i32 = arith.constant 0 : i32
    %c0_i32_0 = arith.constant 0 : i32
    %c0_i32_1 = arith.constant 0 : i32
    return %c0_i32, %c0_i32_0, %arg1 : i32, i32, i32
  }
  func.func @transform_2(%arg0: i32, %arg1: i32, %arg2: i32) -> (i32, i32) {
    %c0_i32 = arith.constant 0 : i32
    %c0_i32_0 = arith.constant 0 : i32
    return %c0_i32, %arg1 : i32, i32
  }
  func.func @transform_3(%arg0: i32, %arg1: i32, %arg2: i32) -> (i32, i32, i32) {
    %c0_i32 = arith.constant 0 : i32
    %c0_i32_0 = arith.constant 0 : i32
    return %arg0, %c0_i32, %arg1 : i32, i32, i32
  }
}

</mosaic_0001>

<llo_original>
// kernel: aspp_conv_forward.1
$region0: #{aspp_conv_forward.1}
  #allocation0 [shape = 'u32[]', space=smem, size = 0x4, offset = 0x4, fixed_abs, tag = 'smem constant byte address 0x4 - core index']
  #allocation1 [shape = 'u32[144,128]{1,0:T(1,128)}', space=vmem, size = 0x12000, scoped, tag = 'internal scratch']
  #allocation2 [shape = 'f32[384,128]{1,0:T(8,128)}', space=vmem, size = 0x30000, scoped, tag = 'scratch operand']
  %s0 = inlined_call_operand.vmem [shape: bf16[2,504,128], index: 0, kind: input, shape index: {}]
  %s1 = inlined_call_operand.vmem [shape: bf16[9,128,128], index: 1, kind: input, shape index: {}]
  %s2 = inlined_call_operand.vmem [shape: f32[1,128], index: 2, kind: input, shape index: {}]
  %s3 = inlined_call_operand.vmem [shape: bf16[2,384,128], index: 3, kind: output, shape index: {}]
  %s4 = sld [smem:[#allocation0]]
  $region53: #{aspp_conv_forward.1} parent=0
    _
  %s6 = ssub.s32 1, %s4
  %s7 = scalar_select 0, %s6, %s4
  loop: start=0, step=1, limit=4
  $region2: #{aspp_conv_forward.1} parent=0 // loop_pre_header
    _
  $region3: #{aspp_conv_forward.1} parent=0 // loop_header
    %s9 = sphi 0, %s13
    %p10 = scmp.ge.s32.totalorder %s9, 4
    %s16 = sphi 0, %s35
    %s17 = sphi 0, %s31
    %s18 = sphi 0, %s27
    %s19 = sphi 0, %s16
    %s20 = sphi 0, %s17
    %s21 = sphi 0, %s18
    %s22 = sphi 0, %s19
    %s23 = sphi 0, %s20
    %s24 = sphi 0, %s21
    %s40 = sphi 0, %s42
    %s43 = sphi 0, %s40
    %s44 = sphi 0, %s43
    %s60 = sphi 0, %s44
    %s66 = sphi 0, %s68
    %s69 = sphi 0, %s66
    %s70 = sphi 0, %s69
    %s86 = sphi 0, %s70
    %s92 = sphi 0, %s94
    %s95 = sphi 0, %s92
    %s96 = sphi 0, %s95
    %s112 = sphi 0, %s96
    %s120 = sphi 0, %s122
    %s123 = sphi 0, %s120
    %s124 = sphi 0, %s123
    %s140 = sphi 0, %s124
  $region4: #{aspp_conv_forward.1} parent=0 // loop_header_branch
    %12 = sbr.rel (%p10) target = $region8
  $region5: #{aspp_conv_forward.1} parent=0 // loop_body
    %s14 = ssub.s32 %s9, 1
    %s15 = ssub.s32 %s9, 2
    %s25 = sadd.s32 1, %s18
    %p26 = scmp.ge.s32.totalorder %s25, 1
    %s27 = scalar_select %p26, 0, %s25
    %s28 = sadd.s32 1, %s17
    %s29 = scalar_select %p26, %s28, %s17
    %p30 = scmp.ge.s32.totalorder %s29, 1
    %s31 = scalar_select %p30, 0, %s29
    %s32 = sadd.s32 1, %s16
    %s33 = scalar_select %p30, %s32, %s16
    %p34 = scmp.ge.s32.totalorder %s33, 2
    %s35 = scalar_select %p34, 0, %s33
    %s36 = ssub.s32 %s16, %s35
    %s37 = ssub.s32 %s18, %s27
    %s38 = sor.u32 %s36, %s37
    %p39 = scmp.eq.s32.totalorder %s38, 0
    %s41 = sadd.s32 %s40, 1
    %s42 = scalar_select %p39, %s40, %s41
    %p45 = pneg %p39
    %p46 = scmp.eq.s32.totalorder %s9, 1
    %p47 = por %p45, %p46
    %p48 = scmp.ne.s32.totalorder %s40, %s43
    %p49 = scmp.eq.s32.totalorder %s9, 0
    %p50 = por %p48, %p49
    %p51 = scmp.ne.s32.totalorder %s40, %s43
    %p52 = scmp.eq.s32.totalorder %s14, 1
    %p53 = por %p51, %p52
    %p54 = scmp.ne.s32.totalorder %s43, %s44
    %p55 = scmp.eq.s32.totalorder %s14, 0
    %p56 = por %p54, %p55
    %p57 = scmp.ne.s32.totalorder %s43, %s44
    %p58 = scmp.eq.s32.totalorder %s15, 1
    %p59 = por %p57, %p58
    %p61 = scmp.ne.s32.totalorder %s44, %s60
    %p62 = scmp.eq.s32.totalorder %s15, 0
    %p63 = por %p61, %p62
    %s64 = ssub.s32 %s17, %s31
    %p65 = scmp.eq.s32.totalorder %s64, 0
    %s67 = sadd.s32 %s66, 1
    %s68 = scalar_select %p65, %s66, %s67
    %p71 = pneg %p65
    %p72 = scmp.eq.s32.totalorder %s9, 1
    %p73 = por %p71, %p72
    %p74 = scmp.ne.s32.totalorder %s66, %s69
    %p75 = scmp.eq.s32.totalorder %s9, 0
    %p76 = por %p74, %p75
    %p77 = scmp.ne.s32.totalorder %s66, %s69
    %p78 = scmp.eq.s32.totalorder %s14, 1
    %p79 = por %p77, %p78
    %p80 = scmp.ne.s32.totalorder %s69, %s70
    %p81 = scmp.eq.s32.totalorder %s14, 0
    %p82 = por %p80, %p81
    %p83 = scmp.ne.s32.totalorder %s69, %s70
    %p84 = scmp.eq.s32.totalorder %s15, 1
    %p85 = por %p83, %p84
    %p87 = scmp.ne.s32.totalorder %s70, %s86
    %p88 = scmp.eq.s32.totalorder %s15, 0
    %p89 = por %p87, %p88
    %s90 = ssub.s32 %s17, %s31
    %p91 = scmp.eq.s32.totalorder %s90, 0
    %s93 = sadd.s32 %s92, 1
    %s94 = scalar_select %p91, %s92, %s93
    %p97 = pneg %p91
    %p98 = scmp.eq.s32.totalorder %s9, 1
    %p99 = por %p97, %p98
    %p100 = scmp.ne.s32.totalorder %s92, %s95
    %p101 = scmp.eq.s32.totalorder %s9, 0
    %p102 = por %p100, %p101
    %p103 = scmp.ne.s32.totalorder %s92, %s95
    %p104 = scmp.eq.s32.totalorder %s14, 1
    %p105 = por %p103, %p104
    %p106 = scmp.ne.s32.totalorder %s95, %s96
    %p107 = scmp.eq.s32.totalorder %s14, 0
    %p108 = por %p106, %p107
    %p109 = scmp.ne.s32.totalorder %s95, %s96
    %p110 = scmp.eq.s32.totalorder %s15, 1
    %p111 = por %p109, %p110
    %p113 = scmp.ne.s32.totalorder %s96, %s112
    %p114 = scmp.eq.s32.totalorder %s15, 0
    %p115 = por %p113, %p114
    %s116 = ssub.s32 %s16, %s35
    %s117 = ssub.s32 %s17, %s31
    %s118 = sor.u32 %s116, %s117
    %p119 = scmp.eq.s32.totalorder %s118, 0
    %s121 = sadd.s32 %s120, 1
    %s122 = scalar_select %p119, %s120, %s121
    %p125 = pneg %p119
    %p126 = scmp.eq.s32.totalorder %s9, 1
    %p127 = por %p125, %p126
    %p128 = scmp.ne.s32.totalorder %s120, %s123
    %p129 = scmp.eq.s32.totalorder %s9, 0
    %p130 = por %p128, %p129
    %p131 = scmp.ne.s32.totalorder %s120, %s123
    %p132 = scmp.eq.s32.totalorder %s14, 1
    %p133 = por %p131, %p132
    %p134 = scmp.ne.s32.totalorder %s123, %s124
    %p135 = scmp.eq.s32.totalorder %s14, 0
    %p136 = por %p134, %p135
    %p137 = scmp.ne.s32.totalorder %s123, %s124
    %p138 = scmp.eq.s32.totalorder %s15, 1
    %p139 = por %p137, %p138
    %p141 = scmp.ne.s32.totalorder %s124, %s140
    %p142 = scmp.eq.s32.totalorder %s15, 0
    %p143 = por %p141, %p142
    %p144 = scmp.le.s32.totalorder 1, %s9
    %p145 = scmp.lt.s32.totalorder %s9, 3
    %p146 = pnand %p144, %p145
    %p147 = pneg %p146
    // Predicated region
    $region9: #{aspp_conv_forward.1} parent=5 // pred_check
      _
    $region10: #{aspp_conv_forward.1} parent=5 // pred_check_branch
      %149 = sbr.rel (%p146) target = $region12
    $region11: #{aspp_conv_forward.1} parent=5 // pred_region
      %s150 = ssub.s32 %s9, 1
      // Predicated region
      $region13: #{aspp_conv_forward.1} parent=11 // pred_check
        %p151 = pneg %p82
      $region14: #{aspp_conv_forward.1} parent=11 // pred_check_branch
        %153 = sbr.rel (%p151) target = $region16
      $region15: #{aspp_conv_forward.1} parent=11 // pred_region
        %p154 = scmp.lt.s32.totalorder %s20, 0
        %s155 = scalar_select %p154, %s20, 0
        %s156 = smul.addr %s155, 4
        %s157 = scalar_lea.vmem %s1, %s156
      $region16: #{aspp_conv_forward.1} parent=11 // pred_fallthru
        _
      // Predicated region
      $region17: #{aspp_conv_forward.1} parent=11 // pred_check
        %p158 = pneg %p108
      $region18: #{aspp_conv_forward.1} parent=11 // pred_check_branch
        %160 = sbr.rel (%p158) target = $region20
      $region19: #{aspp_conv_forward.1} parent=11 // pred_region
        %p161 = scmp.lt.s32.totalorder %s20, 0
        %s162 = scalar_select %p161, %s20, 0
        %s163 = scalar_lea.vmem %s2, %s162
      $region20: #{aspp_conv_forward.1} parent=11 // pred_fallthru
        _
    $region12: #{aspp_conv_forward.1} parent=5 // pred_fallthru
      _
    %p164 = scmp.lt.s32.totalorder %s9, 2
    // Predicated region
    $region21: #{aspp_conv_forward.1} parent=5 // pred_check
      %p165 = pneg %p164
    $region22: #{aspp_conv_forward.1} parent=5 // pred_check_branch
      %167 = sbr.rel (%p165) target = $region24
    $region23: #{aspp_conv_forward.1} parent=5 // pred_region
      // Predicated region
      $region25: #{aspp_conv_forward.1} parent=23 // pred_check
        %p168 = pneg %p50
      $region26: #{aspp_conv_forward.1} parent=23 // pred_check_branch
        %170 = sbr.rel (%p168) target = $region28
      $region27: #{aspp_conv_forward.1} parent=23 // pred_region
        %p171 = scmp.lt.s32.totalorder %s16, 1
        %s172 = scalar_select %p171, %s16, 1
        %p173 = scmp.lt.s32.totalorder %s18, 0
        %s174 = scalar_select %p173, %s18, 0
        %s175 = smul.addr %s172, 63
        %s176 = sadd.s32 %s174, %s175
        %s177 = smul.addr %s176, 4
        %s178 = scalar_lea.vmem %s0, %s177
      $region28: #{aspp_conv_forward.1} parent=23 // pred_fallthru
        _
    $region24: #{aspp_conv_forward.1} parent=5 // pred_fallthru
      _
    %p179 = scmp.le.s32.totalorder 1, %s9
    %p180 = scmp.lt.s32.totalorder %s9, 3
    %p181 = pnand %p179, %p180
    %p182 = pneg %p181
    // Predicated region
    $region29: #{aspp_conv_forward.1} parent=5 // pred_check
      _
    $region30: #{aspp_conv_forward.1} parent=5 // pred_check_branch
      %184 = sbr.rel (%p181) target = $region32
    $region31: #{aspp_conv_forward.1} parent=5 // pred_region
      %s185 = ssub.s32 %s9, 1
      %p186 = scmp.lt.s32.totalorder %s19, 1
      %s187 = scalar_select %p186, %s19, 1
      %p188 = scmp.lt.s32.totalorder %s21, 0
      %s189 = scalar_select %p188, %s21, 0
      %s190 = smul.addr %s187, 63
      %s191 = sadd.s32 %s189, %s190
      %s192 = smul.addr %s191, 4
      %s193 = scalar_lea.vmem %s0, %s192
      %p194 = pneg %p56
      %p195 = pneg %p53
      %p196 = scmp.lt.s32.totalorder %s20, 0
      %s197 = scalar_select %p196, %s20, 0
      %s198 = smul.addr %s197, 4
      %s199 = scalar_lea.vmem %s1, %s198
      %p200 = pneg %p82
      %p201 = pneg %p79
      %p202 = scmp.lt.s32.totalorder %s20, 0
      %s203 = scalar_select %p202, %s20, 0
      %s204 = scalar_lea.vmem %s2, %s203
      %p205 = pneg %p108
      %p206 = pneg %p105
      %p207 = pneg %p136
      %p208 = pneg %p133
      %p209 = scmp.lt.s32.totalorder %s19, 1
      %s210 = scalar_select %p209, %s19, 1
      %p211 = scmp.lt.s32.totalorder %s20, 0
      %s212 = scalar_select %p211, %s20, 0
      %s213 = smul.addr %s210, 48
      %s214 = sadd.s32 %s212, %s213
      %s215 = smul.addr %s214, 4
      %s216 = scalar_lea.vmem %s3, %s215
      %p217 = scmp.lt.s32.totalorder %s19, 1
      %s218 = scalar_select %p217, %s19, 1
      %p219 = scmp.lt.s32.totalorder %s21, 0
      %s220 = scalar_select %p219, %s21, 0
      %s221 = smul.addr %s218, 63
      %s222 = sadd.s32 %s220, %s221
      %s223 = smul.addr %s222, 4
      %s224 = scalar_lea.vmem %s0, %s223
      %p225 = scmp.lt.s32.totalorder %s20, 0
      %s226 = scalar_select %p225, %s20, 0
      %s227 = smul.addr %s226, 4
      %s228 = scalar_lea.vmem %s1, %s227
      %p229 = scmp.lt.s32.totalorder %s20, 0
      %s230 = scalar_select %p229, %s20, 0
      %s231 = scalar_lea.vmem %s2, %s230
      %p232 = scmp.lt.s32.totalorder %s19, 1
      %s233 = scalar_select %p232, %s19, 1
      %p234 = scmp.lt.s32.totalorder %s20, 0
      %s235 = scalar_select %p234, %s20, 0
      %s236 = smul.addr %s233, 48
      %s237 = sadd.s32 %s235, %s236
      %s238 = smul.addr %s237, 4
      %s239 = scalar_lea.vmem %s3, %s238
      %p241 = scmp.eq.s32.totalorder %s21, 0
      // Predicated region
      $region33: #{aspp_conv_forward.1} parent=31 // pred_check
        %p242 = pneg %p241
      $region34: #{aspp_conv_forward.1} parent=31 // pred_check_branch
        %244 = sbr.rel (%p242) target = $region36
      $region35: #{aspp_conv_forward.1} parent=31 // pred_region
        %245 = vst [vmem:[#allocation2] sm:$0xff] 0.0
        %246 = vst [vmem:[#allocation2 + $0x8] sm:$0xff] 0.0
        %247 = vst [vmem:[#allocation2 + $0x10] sm:$0xff] 0.0
        %248 = vst [vmem:[#allocation2 + $0x18] sm:$0xff] 0.0
        %249 = vst [vmem:[#allocation2 + $0x20] sm:$0xff] 0.0
        %250 = vst [vmem:[#allocation2 + $0x28] sm:$0xff] 0.0
        %251 = vst [vmem:[#allocation2 + $0x30] sm:$0xff] 0.0
        %252 = vst [vmem:[#allocation2 + $0x38] sm:$0xff] 0.0
        %253 = vst [vmem:[#allocation2 + $0x40] sm:$0xff] 0.0
        %254 = vst [vmem:[#allocation2 + $0x48] sm:$0xff] 0.0
        %255 = vst [vmem:[#allocation2 + $0x50] sm:$0xff] 0.0
        %256 = vst [vmem:[#allocation2 + $0x58] sm:$0xff] 0.0
        %257 = vst [vmem:[#allocation2 + $0x60] sm:$0xff] 0.0
        %258 = vst [vmem:[#allocation2 + $0x68] sm:$0xff] 0.0
        %259 = vst [vmem:[#allocation2 + $0x70] sm:$0xff] 0.0
        %260 = vst [vmem:[#allocation2 + $0x78] sm:$0xff] 0.0
        %261 = vst [vmem:[#allocation2 + $0x80] sm:$0xff] 0.0
        %262 = vst [vmem:[#allocation2 + $0x88] sm:$0xff] 0.0
        %263 = vst [vmem:[#allocation2 + $0x90] sm:$0xff] 0.0
        %264 = vst [vmem:[#allocation2 + $0x98] sm:$0xff] 0.0
        %265 = vst [vmem:[#allocation2 + $0xa0] sm:$0xff] 0.0
        %266 = vst [vmem:[#allocation2 + $0xa8] sm:$0xff] 0.0
        %267 = vst [vmem:[#allocation2 + $0xb0] sm:$0xff] 0.0
        %268 = vst [vmem:[#allocation2 + $0xb8] sm:$0xff] 0.0
        %269 = vst [vmem:[#allocation2 + $0xc0] sm:$0xff] 0.0
        %270 = vst [vmem:[#allocation2 + $0xc8] sm:$0xff] 0.0
        %271 = vst [vmem:[#allocation2 + $0xd0] sm:$0xff] 0.0
        %272 = vst [vmem:[#allocation2 + $0xd8] sm:$0xff] 0.0
        %273 = vst [vmem:[#allocation2 + $0xe0] sm:$0xff] 0.0
        %274 = vst [vmem:[#allocation2 + $0xe8] sm:$0xff] 0.0
        %275 = vst [vmem:[#allocation2 + $0xf0] sm:$0xff] 0.0
        %276 = vst [vmem:[#allocation2 + $0xf8] sm:$0xff] 0.0
        %277 = vst [vmem:[#allocation2 + $0x100] sm:$0xff] 0.0
        %278 = vst [vmem:[#allocation2 + $0x108] sm:$0xff] 0.0
        %279 = vst [vmem:[#allocation2 + $0x110] sm:$0xff] 0.0
        %280 = vst [vmem:[#allocation2 + $0x118] sm:$0xff] 0.0
        %281 = vst [vmem:[#allocation2 + $0x120] sm:$0xff] 0.0
        %282 = vst [vmem:[#allocation2 + $0x128] sm:$0xff] 0.0
        %283 = vst [vmem:[#allocation2 + $0x130] sm:$0xff] 0.0
        %284 = vst [vmem:[#allocation2 + $0x138] sm:$0xff] 0.0
        %285 = vst [vmem:[#allocation2 + $0x140] sm:$0xff] 0.0
        %286 = vst [vmem:[#allocation2 + $0x148] sm:$0xff] 0.0
        %287 = vst [vmem:[#allocation2 + $0x150] sm:$0xff] 0.0
        %288 = vst [vmem:[#allocation2 + $0x158] sm:$0xff] 0.0
        %289 = vst [vmem:[#allocation2 + $0x160] sm:$0xff] 0.0
        %290 = vst [vmem:[#allocation2 + $0x168] sm:$0xff] 0.0
        %291 = vst [vmem:[#allocation2 + $0x170] sm:$0xff] 0.0
        %292 = vst [vmem:[#allocation2 + $0x178] sm:$0xff] 0.0
      $region36: #{aspp_conv_forward.1} parent=31 // pred_fallthru
        _
      %s293 = smul.u32 %s21, 128
      %v294 = vld [vmem:[%s224] sm:$0xf]
      %v295 = vld [vmem:[%s224 + $0x4] sm:$0xf]
      %v296 = vld [vmem:[%s224 + $0x8] sm:$0xf]
      %v297 = vld [vmem:[%s224 + $0xc] sm:$0xf]
      %v298 = vld [vmem:[%s224 + $0x10] sm:$0xf]
      %v299 = vld [vmem:[%s224 + $0x14] sm:$0xf]
      %v300 = vld [vmem:[%s224 + $0x18] sm:$0xf]
      %v301 = vld [vmem:[%s224 + $0x1c] sm:$0xf]
      %v302 = vld [vmem:[%s224 + $0x20] sm:$0xf]
      %v303 = vld [vmem:[%s224 + $0x24] sm:$0xf]
      %v304 = vld [vmem:[%s224 + $0x28] sm:$0xf]
      %v305 = vld [vmem:[%s224 + $0x2c] sm:$0xf]
      %v306 = vld [vmem:[%s224 + $0x30] sm:$0xf]
      %v307 = vld [vmem:[%s224 + $0x34] sm:$0xf]
      %v308 = vld [vmem:[%s224 + $0x38] sm:$0xf]
      %v309 = vld [vmem:[%s224 + $0x3c] sm:$0xf]
      %v310 = vld [vmem:[%s224 + $0x40] sm:$0xf]
      %v311 = vld [vmem:[%s224 + $0x44] sm:$0xf]
      %v312 = vld [vmem:[%s224 + $0x48] sm:$0xf]
      %v313 = vld [vmem:[%s224 + $0x4c] sm:$0xf]
      %v314 = vld [vmem:[%s224 + $0x50] sm:$0xf]
      %v315 = vld [vmem:[%s224 + $0x54] sm:$0xf]
      %v316 = vld [vmem:[%s224 + $0x58] sm:$0xf]
      %v317 = vld [vmem:[%s224 + $0x5c] sm:$0xf]
      %v318 = vld [vmem:[%s224 + $0x60] sm:$0xf]
      %v319 = vld [vmem:[%s224 + $0x64] sm:$0xf]
      %v320 = vld [vmem:[%s224 + $0x68] sm:$0xf]
      %v321 = vld [vmem:[%s224 + $0x6c] sm:$0xf]
      %v322 = vld [vmem:[%s224 + $0x70] sm:$0xf]
      %v323 = vld [vmem:[%s224 + $0x74] sm:$0xf]
      %v324 = vld [vmem:[%s224 + $0x78] sm:$0xf]
      %v325 = vld [vmem:[%s224 + $0x7c] sm:$0xf]
      %v326 = vld [vmem:[%s224 + $0x80] sm:$0xf]
      %v327 = vld [vmem:[%s224 + $0x84] sm:$0xf]
      %v328 = vld [vmem:[%s224 + $0x88] sm:$0xf]
      %v329 = vld [vmem:[%s224 + $0x8c] sm:$0xf]
      %v330 = vld [vmem:[%s224 + $0x90] sm:$0xf]
      %v331 = vld [vmem:[%s224 + $0x94] sm:$0xf]
      %v332 = vld [vmem:[%s224 + $0x98] sm:$0xf]
      %v333 = vld [vmem:[%s224 + $0x9c] sm:$0xf]
      %v334 = vld [vmem:[%s224 + $0xa0] sm:$0xf]
      %v335 = vld [vmem:[%s224 + $0xa4] sm:$0xf]
      %v336 = vld [vmem:[%s224 + $0xa8] sm:$0xf]
      %v337 = vld [vmem:[%s224 + $0xac] sm:$0xf]
      %v338 = vld [vmem:[%s224 + $0xb0] sm:$0xf]
      %v339 = vld [vmem:[%s224 + $0xb4] sm:$0xf]
      %v340 = vld [vmem:[%s224 + $0xb8] sm:$0xf]
      %v341 = vld [vmem:[%s224 + $0xbc] sm:$0xf]
      %v342 = vld [vmem:[%s224 + $0xc0] sm:$0xf]
      %s343 = sshra.s32 %s293, 3
      %s344 = sand.u32 %s293, 7
      %s345 = smul.addr %s343, 4
      %s346 = scalar_lea.vmem %s228, %s345
      %v347 = vld [vmem:[%s346] sm:$0xf]
      %v348 = vld [vmem:[%s346 + $0x4] sm:$0xf]
      %v349 = vld [vmem:[%s346 + $0x8] sm:$0xf]
      %v350 = vld [vmem:[%s346 + $0xc] sm:$0xf]
      %v351 = vld [vmem:[%s346 + $0x10] sm:$0xf]
      %v352 = vld [vmem:[%s346 + $0x14] sm:$0xf]
      %v353 = vld [vmem:[%s346 + $0x18] sm:$0xf]
      %v354 = vld [vmem:[%s346 + $0x1c] sm:$0xf]
      %v355 = vld [vmem:[%s346 + $0x20] sm:$0xf]
      %v356 = vld [vmem:[%s346 + $0x24] sm:$0xf]
      %v357 = vld [vmem:[%s346 + $0x28] sm:$0xf]
      %v358 = vld [vmem:[%s346 + $0x2c] sm:$0xf]
      %v359 = vld [vmem:[%s346 + $0x30] sm:$0xf]
      %v360 = vld [vmem:[%s346 + $0x34] sm:$0xf]
      %v361 = vld [vmem:[%s346 + $0x38] sm:$0xf]
      %v362 = vld [vmem:[%s346 + $0x3c] sm:$0xf]
      %v412 = vunpack.c.l.b16 %v294
      %v413 = vunpack.c.l.b16 %v295
      %v414 = vunpack.c.l.b16 %v296
      %v415 = vunpack.c.l.b16 %v297
      %v416 = vunpack.c.l.b16 %v298
      %v417 = vunpack.c.l.b16 %v299
      %v418 = vunpack.c.l.b16 %v300
      %v419 = vunpack.c.l.b16 %v301
      %v420 = vunpack.c.l.b16 %v302
      %v421 = vunpack.c.l.b16 %v303
      %v422 = vunpack.c.l.b16 %v304
      %v423 = vunpack.c.l.b16 %v305
      %v424 = vunpack.c.l.b16 %v306
      %v425 = vunpack.c.l.b16 %v307
      %v426 = vunpack.c.l.b16 %v308
      %v427 = vunpack.c.l.b16 %v309
      %v428 = vunpack.c.l.b16 %v310
      %v429 = vunpack.c.l.b16 %v311
      %v430 = vunpack.c.l.b16 %v312
      %v431 = vunpack.c.l.b16 %v313
      %v432 = vunpack.c.l.b16 %v314
      %v433 = vunpack.c.l.b16 %v315
      %v434 = vunpack.c.l.b16 %v316
      %v435 = vunpack.c.l.b16 %v317
      %v436 = vunpack.c.l.b16 %v318
      %v437 = vunpack.c.l.b16 %v319
      %v438 = vunpack.c.l.b16 %v320
      %v439 = vunpack.c.l.b16 %v321
      %v440 = vunpack.c.l.b16 %v322
      %v441 = vunpack.c.l.b16 %v323
      %v442 = vunpack.c.l.b16 %v324
      %v443 = vunpack.c.l.b16 %v325
      %v444 = vunpack.c.l.b16 %v326
      %v445 = vunpack.c.l.b16 %v327
      %v446 = vunpack.c.l.b16 %v328
      %v447 = vunpack.c.l.b16 %v329
      %v448 = vunpack.c.l.b16 %v330
      %v449 = vunpack.c.l.b16 %v331
      %v450 = vunpack.c.l.b16 %v332
      %v451 = vunpack.c.l.b16 %v333
      %v452 = vunpack.c.l.b16 %v334
      %v453 = vunpack.c.l.b16 %v335
      %v454 = vunpack.c.l.b16 %v336
      %v455 = vunpack.c.l.b16 %v337
      %v456 = vunpack.c.l.b16 %v338
      %v457 = vunpack.c.l.b16 %v339
      %v458 = vunpack.c.l.b16 %v340
      %v459 = vunpack.c.l.b16 %v341
      %v460 = vunpack.c.l.b16 %v342
      %v461 = vpack.c.b16 %v413, %v412
      %v462 = vpack.c.b16 %v415, %v414
      %v463 = vpack.c.b16 %v417, %v416
      %v464 = vpack.c.b16 %v419, %v418
      %v465 = vpack.c.b16 %v421, %v420
      %v466 = vpack.c.b16 %v423, %v422
      %v467 = vpack.c.b16 %v425, %v424
      %v468 = vpack.c.b16 %v427, %v426
      %v469 = vpack.c.b16 %v429, %v428
      %v470 = vpack.c.b16 %v431, %v430
      %v471 = vpack.c.b16 %v433, %v432
      %v472 = vpack.c.b16 %v435, %v434
      %v473 = vpack.c.b16 %v437, %v436
      %v474 = vpack.c.b16 %v439, %v438
      %v475 = vpack.c.b16 %v441, %v440
      %v476 = vpack.c.b16 %v443, %v442
      %v477 = vpack.c.b16 %v445, %v444
      %v478 = vpack.c.b16 %v447, %v446
      %v479 = vpack.c.b16 %v449, %v448
      %v480 = vpack.c.b16 %v451, %v450
      %v481 = vpack.c.b16 %v453, %v452
      %v482 = vpack.c.b16 %v455, %v454
      %v483 = vpack.c.b16 %v457, %v456
      %v484 = vpack.c.b16 %v459, %v458
      %v485 = vpack.c.b16 %v460, %v460
      %v527 = vunpack.c.l.b16 %v347
      %v528 = vunpack.c.l.b16 %v348
      %v529 = vunpack.c.l.b16 %v349
      %v530 = vunpack.c.l.b16 %v350
      %v531 = vunpack.c.l.b16 %v351
      %v532 = vunpack.c.l.b16 %v352
      %v533 = vunpack.c.l.b16 %v353
      %v534 = vunpack.c.l.b16 %v354
      %v535 = vunpack.c.l.b16 %v355
      %v536 = vunpack.c.l.b16 %v356
      %v537 = vunpack.c.l.b16 %v357
      %v538 = vunpack.c.l.b16 %v358
      %v539 = vunpack.c.l.b16 %v359
      %v540 = vunpack.c.l.b16 %v360
      %v541 = vunpack.c.l.b16 %v361
      %v542 = vunpack.c.l.b16 %v362
      %v543 = vpack.c.b16 %v528, %v527
      %v544 = vpack.c.b16 %v530, %v529
      %v545 = vpack.c.b16 %v532, %v531
      %v546 = vpack.c.b16 %v534, %v533
      %v547 = vpack.c.b16 %v536, %v535
      %v548 = vpack.c.b16 %v538, %v537
      %v549 = vpack.c.b16 %v540, %v539
      %v550 = vpack.c.b16 %v542, %v541
      %559 = vmatprep.subr.bf16.mxu0 0
      %560 = vmatpush1.bf16.msra.mxu0 %v550
      %561 = vmatprep.subr.bf16.mxu0 0
      %562 = vmatpush1.bf16.msra.mxu0 %v549
      %563 = vmatprep.subr.bf16.mxu0 0
      %564 = vmatpush1.bf16.msra.mxu0 %v548
      %565 = vmatprep.subr.bf16.mxu0 0
      %566 = vmatpush1.bf16.msra.mxu0 %v547
      %567 = vmatprep.subr.bf16.mxu0 0
      %568 = vmatpush1.bf16.msra.mxu0 %v546
      %569 = vmatprep.subr.bf16.mxu0 0
      %570 = vmatpush1.bf16.msra.mxu0 %v545
      %571 = vmatprep.subr.bf16.mxu0 0
      %572 = vmatpush1.bf16.msra.mxu0 %v544
      %573 = vmatprep.subr.bf16.mxu0 0
      %574 = vmatpush1.bf16.msra.mxu0 %v543
      %575 = vmatprep.subr.bf16.mxu0 0
      %576 = vmatpush2.bf16.msra.mxu0 0
      %577 = vmatprep.subr.bf16.mxu0 0
      %578 = vmatpush2.bf16.msra.mxu0 0
      %579 = vmatprep.subr.bf16.mxu0 0
      %580 = vmatpush2.bf16.msra.mxu0 0
      %581 = vmatprep.subr.bf16.mxu0 0
      %582 = vmatpush2.bf16.msra.mxu0 0
      %583 = vmatprep.subr.bf16.mxu0 0
      %584 = vmatpush2.bf16.msra.mxu0 0
      %585 = vmatprep.subr.bf16.mxu0 0
      %586 = vmatpush2.bf16.msra.mxu0 0
      %587 = vmatprep.subr.bf16.mxu0 0
      %588 = vmatpush2.bf16.msra.mxu0 0
      %589 = vmatprep.subr.bf16.mxu0 0
      %590 = vmatpush2.bf16.msra.mxu0 0
      %591 = vmatprep.mubr.bf16.mxu0 0
      %592 = vmatmul.mubr.bf16.gmra.mxu0 %v461
      %v593 = vpop.f32.mrf.mxu0
      %v594 = vadd.f32 0.0, %v593
      %v595 = vpop.f32.mrf.mxu0
      %v596 = vpop.f32.mrf.mxu0
      %v597 = vadd.f32 0.0, %v596
      %v598 = vpop.f32.mrf.mxu0
      %599 = vmatprep.mubr.bf16.mxu0 0
      %600 = vmatmul.mubr.bf16.gmra.mxu0 %v462
      %v601 = vpop.f32.mrf.mxu0
      %v602 = vadd.f32 0.0, %v601
      %v603 = vpop.f32.mrf.mxu0
      %v604 = vpop.f32.mrf.mxu0
      %v605 = vadd.f32 0.0, %v604
      %v606 = vpop.f32.mrf.mxu0
      %607 = vmatprep.mubr.bf16.mxu0 0
      %608 = vmatmul.mubr.bf16.gmra.mxu0 %v463
      %v609 = vpop.f32.mrf.mxu0
      %v610 = vadd.f32 0.0, %v609
      %v611 = vpop.f32.mrf.mxu0
      %v612 = vpop.f32.mrf.mxu0
      %v613 = vadd.f32 0.0, %v612
      %v614 = vpop.f32.mrf.mxu0
      %615 = vmatprep.mubr.bf16.mxu0 0
      %616 = vmatmul.mubr.bf16.gmra.mxu0 %v464
      %v617 = vpop.f32.mrf.mxu0
      %v618 = vadd.f32 0.0, %v617
      %v619 = vpop.f32.mrf.mxu0
      %v620 = vpop.f32.mrf.mxu0
      %v621 = vadd.f32 0.0, %v620
      %v622 = vpop.f32.mrf.mxu0
      %623 = vmatprep.mubr.bf16.mxu0 0
      %624 = vmatmul.mubr.bf16.gmra.mxu0 %v465
      %v625 = vpop.f32.mrf.mxu0
      %v626 = vadd.f32 0.0, %v625
      %v627 = vpop.f32.mrf.mxu0
      %v628 = vpop.f32.mrf.mxu0
      %v629 = vadd.f32 0.0, %v628
      %v630 = vpop.f32.mrf.mxu0
      %631 = vmatprep.mubr.bf16.mxu0 0
      %632 = vmatmul.mubr.bf16.gmra.mxu0 %v466
      %v633 = vpop.f32.mrf.mxu0
      %v634 = vadd.f32 0.0, %v633
      %v635 = vpop.f32.mrf.mxu0
      %v636 = vpop.f32.mrf.mxu0
      %v637 = vadd.f32 0.0, %v636
      %v638 = vpop.f32.mrf.mxu0
      %639 = vmatprep.mubr.bf16.mxu0 0
      %640 = vmatmul.mubr.bf16.gmra.mxu0 %v467
      %v641 = vpop.f32.mrf.mxu0
      %v642 = vadd.f32 0.0, %v641
      %v643 = vpop.f32.mrf.mxu0
      %v644 = vpop.f32.mrf.mxu0
      %v645 = vadd.f32 0.0, %v644
      %v646 = vpop.f32.mrf.mxu0
      %647 = vmatprep.mubr.bf16.mxu0 0
      %648 = vmatmul.mubr.bf16.gmra.mxu0 %v468
      %v649 = vpop.f32.mrf.mxu0
      %v650 = vadd.f32 0.0, %v649
      %v651 = vpop.f32.mrf.mxu0
      %v652 = vpop.f32.mrf.mxu0
      %v653 = vadd.f32 0.0, %v652
      %v654 = vpop.f32.mrf.mxu0
      %655 = vmatprep.mubr.bf16.mxu0 0
      %656 = vmatmul.mubr.bf16.gmra.mxu0 %v469
      %v657 = vpop.f32.mrf.mxu0
      %v658 = vadd.f32 0.0, %v657
      %v659 = vpop.f32.mrf.mxu0
      %v660 = vpop.f32.mrf.mxu0
      %v661 = vadd.f32 0.0, %v660
      %v662 = vpop.f32.mrf.mxu0
      %663 = vmatprep.mubr.bf16.mxu0 0
      %664 = vmatmul.mubr.bf16.gmra.mxu0 %v470
      %v665 = vpop.f32.mrf.mxu0
      %v666 = vadd.f32 0.0, %v665
      %v667 = vpop.f32.mrf.mxu0
      %v668 = vpop.f32.mrf.mxu0
      %v669 = vadd.f32 0.0, %v668
      %v670 = vpop.f32.mrf.mxu0
      %671 = vmatprep.mubr.bf16.mxu0 0
      %672 = vmatmul.mubr.bf16.gmra.mxu0 %v471
      %v673 = vpop.f32.mrf.mxu0
      %v674 = vadd.f32 0.0, %v673
      %v675 = vpop.f32.mrf.mxu0
      %v676 = vpop.f32.mrf.mxu0
      %v677 = vadd.f32 0.0, %v676
      %v678 = vpop.f32.mrf.mxu0
      %679 = vmatprep.mubr.bf16.mxu0 0
      %680 = vmatmul.mubr.bf16.gmra.mxu0 %v472
      %v681 = vpop.f32.mrf.mxu0
      %v682 = vadd.f32 0.0, %v681
      %v683 = vpop.f32.mrf.mxu0
      %v684 = vpop.f32.mrf.mxu0
      %v685 = vadd.f32 0.0, %v684
      %v686 = vpop.f32.mrf.mxu0
      %687 = vmatprep.mubr.bf16.mxu0 0
      %688 = vmatmul.mubr.bf16.gmra.mxu0 %v473
      %v689 = vpop.f32.mrf.mxu0
      %v690 = vadd.f32 0.0, %v689
      %v691 = vpop.f32.mrf.mxu0
      %v692 = vpop.f32.mrf.mxu0
      %v693 = vadd.f32 0.0, %v692
      %v694 = vpop.f32.mrf.mxu0
      %695 = vmatprep.mubr.bf16.mxu0 0
      %696 = vmatmul.mubr.bf16.gmra.mxu0 %v474
      %v697 = vpop.f32.mrf.mxu0
      %v698 = vadd.f32 0.0, %v697
      %v699 = vpop.f32.mrf.mxu0
      %v700 = vpop.f32.mrf.mxu0
      %v701 = vadd.f32 0.0, %v700
      %v702 = vpop.f32.mrf.mxu0
      %703 = vmatprep.mubr.bf16.mxu0 0
      %704 = vmatmul.mubr.bf16.gmra.mxu0 %v475
      %v705 = vpop.f32.mrf.mxu0
      %v706 = vadd.f32 0.0, %v705
      %v707 = vpop.f32.mrf.mxu0
      %v708 = vpop.f32.mrf.mxu0
      %v709 = vadd.f32 0.0, %v708
      %v710 = vpop.f32.mrf.mxu0
      %711 = vmatprep.mubr.bf16.mxu0 0
      %712 = vmatmul.mubr.bf16.gmra.mxu0 %v476
      %v713 = vpop.f32.mrf.mxu0
      %v714 = vadd.f32 0.0, %v713
      %v715 = vpop.f32.mrf.mxu0
      %v716 = vpop.f32.mrf.mxu0
      %v717 = vadd.f32 0.0, %v716
      %v718 = vpop.f32.mrf.mxu0
      %719 = vmatprep.mubr.bf16.mxu0 0
      %720 = vmatmul.mubr.bf16.gmra.mxu0 %v477
      %v721 = vpop.f32.mrf.mxu0
      %v722 = vadd.f32 0.0, %v721
      %v723 = vpop.f32.mrf.mxu0
      %v724 = vpop.f32.mrf.mxu0
      %v725 = vadd.f32 0.0, %v724
      %v726 = vpop.f32.mrf.mxu0
      %727 = vmatprep.mubr.bf16.mxu0 0
      %728 = vmatmul.mubr.bf16.gmra.mxu0 %v478
      %v729 = vpop.f32.mrf.mxu0
      %v730 = vadd.f32 0.0, %v729
      %v731 = vpop.f32.mrf.mxu0
      %v732 = vpop.f32.mrf.mxu0
      %v733 = vadd.f32 0.0, %v732
      %v734 = vpop.f32.mrf.mxu0
      %735 = vmatprep.mubr.bf16.mxu0 0
      %736 = vmatmul.mubr.bf16.gmra.mxu0 %v479
      %v737 = vpop.f32.mrf.mxu0
      %v738 = vadd.f32 0.0, %v737
      %v739 = vpop.f32.mrf.mxu0
      %v740 = vpop.f32.mrf.mxu0
      %v741 = vadd.f32 0.0, %v740
      %v742 = vpop.f32.mrf.mxu0
      %743 = vmatprep.mubr.bf16.mxu0 0
      %744 = vmatmul.mubr.bf16.gmra.mxu0 %v480
      %v745 = vpop.f32.mrf.mxu0
      %v746 = vadd.f32 0.0, %v745
      %v747 = vpop.f32.mrf.mxu0
      %v748 = vpop.f32.mrf.mxu0
      %v749 = vadd.f32 0.0, %v748
      %v750 = vpop.f32.mrf.mxu0
      %751 = vmatprep.mubr.bf16.mxu0 0
      %752 = vmatmul.mubr.bf16.gmra.mxu0 %v481
      %v753 = vpop.f32.mrf.mxu0
      %v754 = vadd.f32 0.0, %v753
      %v755 = vpop.f32.mrf.mxu0
      %v756 = vpop.f32.mrf.mxu0
      %v757 = vadd.f32 0.0, %v756
      %v758 = vpop.f32.mrf.mxu0
      %759 = vmatprep.mubr.bf16.mxu0 0
      %760 = vmatmul.mubr.bf16.gmra.mxu0 %v482
      %v761 = vpop.f32.mrf.mxu0
      %v762 = vadd.f32 0.0, %v761
      %v763 = vpop.f32.mrf.mxu0
      %v764 = vpop.f32.mrf.mxu0
      %v765 = vadd.f32 0.0, %v764
      %v766 = vpop.f32.mrf.mxu0
      %767 = vmatprep.mubr.bf16.mxu0 0
      %768 = vmatmul.mubr.bf16.gmra.mxu0 %v483
      %v769 = vpop.f32.mrf.mxu0
      %v770 = vadd.f32 0.0, %v769
      %v771 = vpop.f32.mrf.mxu0
      %v772 = vpop.f32.mrf.mxu0
      %v773 = vadd.f32 0.0, %v772
      %v774 = vpop.f32.mrf.mxu0
      %775 = vmatprep.mubr.bf16.mxu0 0
      %776 = vmatmul.mubr.bf16.gmra.mxu0 %v484
      %v777 = vpop.f32.mrf.mxu0
      %v778 = vadd.f32 0.0, %v777
      %v779 = vpop.f32.mrf.mxu0
      %v780 = vpop.f32.mrf.mxu0
      %v781 = vadd.f32 0.0, %v780
      %v782 = vpop.f32.mrf.mxu0
      %783 = vmatprep.mubr.bf16.mxu0 0
      %784 = vmatmul.mubr.bf16.gmra.mxu0 %v485
      %v785 = vpop.f32.mrf.mxu0
      %v786 = vpop.f32.mrf.mxu0
      %v787 = vpop.f32.mrf.mxu0
      %v788 = vpop.f32.mrf.mxu0
      %789 = vdwg.mxu0
      %v790 = vld [vmem:[#allocation2] sm:$0xff]
      %v791 = vld [vmem:[#allocation2 + $0x8] sm:$0xff]
      %v792 = vld [vmem:[#allocation2 + $0x10] sm:$0xff]
      %v793 = vld [vmem:[#allocation2 + $0x18] sm:$0xff]
      %v794 = vld [vmem:[#allocation2 + $0x20] sm:$0xff]
      %v795 = vld [vmem:[#allocation2 + $0x28] sm:$0xff]
      %v796 = vld [vmem:[#allocation2 + $0x30] sm:$0xff]
      %v797 = vld [vmem:[#allocation2 + $0x38] sm:$0xff]
      %v798 = vld [vmem:[#allocation2 + $0x40] sm:$0xff]
      %v799 = vld [vmem:[#allocation2 + $0x48] sm:$0xff]
      %v800 = vld [vmem:[#allocation2 + $0x50] sm:$0xff]
      %v801 = vld [vmem:[#allocation2 + $0x58] sm:$0xff]
      %v802 = vld [vmem:[#allocation2 + $0x60] sm:$0xff]
      %v803 = vld [vmem:[#allocation2 + $0x68] sm:$0xff]
      %v804 = vld [vmem:[#allocation2 + $0x70] sm:$0xff]
      %v805 = vld [vmem:[#allocation2 + $0x78] sm:$0xff]
      %v806 = vld [vmem:[#allocation2 + $0x80] sm:$0xff]
      %v807 = vld [vmem:[#allocation2 + $0x88] sm:$0xff]
      %v808 = vld [vmem:[#allocation2 + $0x90] sm:$0xff]
      %v809 = vld [vmem:[#allocation2 + $0x98] sm:$0xff]
      %v810 = vld [vmem:[#allocation2 + $0xa0] sm:$0xff]
      %v811 = vld [vmem:[#allocation2 + $0xa8] sm:$0xff]
      %v812 = vld [vmem:[#allocation2 + $0xb0] sm:$0xff]
      %v813 = vld [vmem:[#allocation2 + $0xb8] sm:$0xff]
      %v814 = vld [vmem:[#allocation2 + $0xc0] sm:$0xff]
      %v815 = vld [vmem:[#allocation2 + $0xc8] sm:$0xff]
      %v816 = vld [vmem:[#allocation2 + $0xd0] sm:$0xff]
      %v817 = vld [vmem:[#allocation2 + $0xd8] sm:$0xff]
      %v818 = vld [vmem:[#allocation2 + $0xe0] sm:$0xff]
      %v819 = vld [vmem:[#allocation2 + $0xe8] sm:$0xff]
      %v820 = vld [vmem:[#allocation2 + $0xf0] sm:$0xff]
      %v821 = vld [vmem:[#allocation2 + $0xf8] sm:$0xff]
      %v822 = vld [vmem:[#allocation2 + $0x100] sm:$0xff]
      %v823 = vld [vmem:[#allocation2 + $0x108] sm:$0xff]
      %v824 = vld [vmem:[#allocation2 + $0x110] sm:$0xff]
      %v825 = vld [vmem:[#allocation2 + $0x118] sm:$0xff]
      %v826 = vld [vmem:[#allocation2 + $0x120] sm:$0xff]
      %v827 = vld [vmem:[#allocation2 + $0x128] sm:$0xff]
      %v828 = vld [vmem:[#allocation2 + $0x130] sm:$0xff]
      %v829 = vld [vmem:[#allocation2 + $0x138] sm:$0xff]
      %v830 = vld [vmem:[#allocation2 + $0x140] sm:$0xff]
      %v831 = vld [vmem:[#allocation2 + $0x148] sm:$0xff]
      %v832 = vld [vmem:[#allocation2 + $0x150] sm:$0xff]
      %v833 = vld [vmem:[#allocation2 + $0x158] sm:$0xff]
      %v834 = vld [vmem:[#allocation2 + $0x160] sm:$0xff]
      %v835 = vld [vmem:[#allocation2 + $0x168] sm:$0xff]
      %v836 = vld [vmem:[#allocation2 + $0x170] sm:$0xff]
      %v837 = vld [vmem:[#allocation2 + $0x178] sm:$0xff]
      %v838 = vadd.f32 %v790, %v594
      %v839 = vadd.f32 %v791, %v597
      %v840 = vadd.f32 %v792, %v602
      %v841 = vadd.f32 %v793, %v605
      %v842 = vadd.f32 %v794, %v610
      %v843 = vadd.f32 %v795, %v613
      %v844 = vadd.f32 %v796, %v618
      %v845 = vadd.f32 %v797, %v621
      %v846 = vadd.f32 %v798, %v626
      %v847 = vadd.f32 %v799, %v629
      %v848 = vadd.f32 %v800, %v634
      %v849 = vadd.f32 %v801, %v637
      %v850 = vadd.f32 %v802, %v642
      %v851 = vadd.f32 %v803, %v645
      %v852 = vadd.f32 %v804, %v650
      %v853 = vadd.f32 %v805, %v653
      %v854 = vadd.f32 %v806, %v658
      %v855 = vadd.f32 %v807, %v661
      %v856 = vadd.f32 %v808, %v666
      %v857 = vadd.f32 %v809, %v669
      %v858 = vadd.f32 %v810, %v674
      %v859 = vadd.f32 %v811, %v677
      %v860 = vadd.f32 %v812, %v682
      %v861 = vadd.f32 %v813, %v685
      %v862 = vadd.f32 %v814, %v690
      %v863 = vadd.f32 %v815, %v693
      %v864 = vadd.f32 %v816, %v698
      %v865 = vadd.f32 %v817, %v701
      %v866 = vadd.f32 %v818, %v706
      %v867 = vadd.f32 %v819, %v709
      %v868 = vadd.f32 %v820, %v714
      %v869 = vadd.f32 %v821, %v717
      %v870 = vadd.f32 %v822, %v722
      %v871 = vadd.f32 %v823, %v725
      %v872 = vadd.f32 %v824, %v730
      %v873 = vadd.f32 %v825, %v733
      %v874 = vadd.f32 %v826, %v738
      %v875 = vadd.f32 %v827, %v741
      %v876 = vadd.f32 %v828, %v746
      %v877 = vadd.f32 %v829, %v749
      %v878 = vadd.f32 %v830, %v754
      %v879 = vadd.f32 %v831, %v757
      %v880 = vadd.f32 %v832, %v762
      %v881 = vadd.f32 %v833, %v765
      %v882 = vadd.f32 %v834, %v770
      %v883 = vadd.f32 %v835, %v773
      %v884 = vadd.f32 %v836, %v778
      %v885 = vadd.f32 %v837, %v781
      %886 = vst [vmem:[#allocation2] sm:$0xff] %v838
      %887 = vst [vmem:[#allocation2 + $0x8] sm:$0xff] %v839
      %888 = vst [vmem:[#allocation2 + $0x10] sm:$0xff] %v840
      %889 = vst [vmem:[#allocation2 + $0x18] sm:$0xff] %v841
      %890 = vst [vmem:[#allocation2 + $0x20] sm:$0xff] %v842
      %891 = vst [vmem:[#allocation2 + $0x28] sm:$0xff] %v843
      %892 = vst [vmem:[#allocation2 + $0x30] sm:$0xff] %v844
      %893 = vst [vmem:[#allocation2 + $0x38] sm:$0xff] %v845
      %894 = vst [vmem:[#allocation2 + $0x40] sm:$0xff] %v846
      %895 = vst [vmem:[#allocation2 + $0x48] sm:$0xff] %v847
      %896 = vst [vmem:[#allocation2 + $0x50] sm:$0xff] %v848
      %897 = vst [vmem:[#allocation2 + $0x58] sm:$0xff] %v849
      %898 = vst [vmem:[#allocation2 + $0x60] sm:$0xff] %v850
      %899 = vst [vmem:[#allocation2 + $0x68] sm:$0xff] %v851
      %900 = vst [vmem:[#allocation2 + $0x70] sm:$0xff] %v852
      %901 = vst [vmem:[#allocation2 + $0x78] sm:$0xff] %v853
      %902 = vst [vmem:[#allocation2 + $0x80] sm:$0xff] %v854
      %903 = vst [vmem:[#allocation2 + $0x88] sm:$0xff] %v855
      %904 = vst [vmem:[#allocation2 + $0x90] sm:$0xff] %v856
      %905 = vst [vmem:[#allocation2 + $0x98] sm:$0xff] %v857
      %906 = vst [vmem:[#allocation2 + $0xa0] sm:$0xff] %v858
      %907 = vst [vmem:[#allocation2 + $0xa8] sm:$0xff] %v859
      %908 = vst [vmem:[#allocation2 + $0xb0] sm:$0xff] %v860
      %909 = vst [vmem:[#allocation2 + $0xb8] sm:$0xff] %v861
      %910 = vst [vmem:[#allocation2 + $0xc0] sm:$0xff] %v862
      %911 = vst [vmem:[#allocation2 + $0xc8] sm:$0xff] %v863
      %912 = vst [vmem:[#allocation2 + $0xd0] sm:$0xff] %v864
      %913 = vst [vmem:[#allocation2 + $0xd8] sm:$0xff] %v865
      %914 = vst [vmem:[#allocation2 + $0xe0] sm:$0xff] %v866
      %915 = vst [vmem:[#allocation2 + $0xe8] sm:$0xff] %v867
      %916 = vst [vmem:[#allocation2 + $0xf0] sm:$0xff] %v868
      %917 = vst [vmem:[#allocation2 + $0xf8] sm:$0xff] %v869
      %918 = vst [vmem:[#allocation2 + $0x100] sm:$0xff] %v870
      %919 = vst [vmem:[#allocation2 + $0x108] sm:$0xff] %v871
      %920 = vst [vmem:[#allocation2 + $0x110] sm:$0xff] %v872
      %921 = vst [vmem:[#allocation2 + $0x118] sm:$0xff] %v873
      %922 = vst [vmem:[#allocation2 + $0x120] sm:$0xff] %v874
      %923 = vst [vmem:[#allocation2 + $0x128] sm:$0xff] %v875
      %924 = vst [vmem:[#allocation2 + $0x130] sm:$0xff] %v876
      %925 = vst [vmem:[#allocation2 + $0x138] sm:$0xff] %v877
      %926 = vst [vmem:[#allocation2 + $0x140] sm:$0xff] %v878
      %927 = vst [vmem:[#allocation2 + $0x148] sm:$0xff] %v879
      %928 = vst [vmem:[#allocation2 + $0x150] sm:$0xff] %v880
      %929 = vst [vmem:[#allocation2 + $0x158] sm:$0xff] %v881
      %930 = vst [vmem:[#allocation2 + $0x160] sm:$0xff] %v882
      %931 = vst [vmem:[#allocation2 + $0x168] sm:$0xff] %v883
      %932 = vst [vmem:[#allocation2 + $0x170] sm:$0xff] %v884
      %933 = vst [vmem:[#allocation2 + $0x178] sm:$0xff] %v885
      %s934 = sadd.s32 %s343, 16
      %s935 = smul.addr %s934, 4
      %s936 = scalar_lea.vmem %s228, %s935
      %v937 = vld [vmem:[%s936] sm:$0xf]
      %v938 = vld [vmem:[%s936 + $0x4] sm:$0xf]
      %v939 = vld [vmem:[%s936 + $0x8] sm:$0xf]
      %v940 = vld [vmem:[%s936 + $0xc] sm:$0xf]
      %v941 = vld [vmem:[%s936 + $0x10] sm:$0xf]
      %v942 = vld [vmem:[%s936 + $0x14] sm:$0xf]
      %v943 = vld [vmem:[%s936 + $0x18] sm:$0xf]
      %v944 = vld [vmem:[%s936 + $0x1c] sm:$0xf]
      %v945 = vld [vmem:[%s936 + $0x20] sm:$0xf]
      %v946 = vld [vmem:[%s936 + $0x24] sm:$0xf]
      %v947 = vld [vmem:[%s936 + $0x28] sm:$0xf]
      %v948 = vld [vmem:[%s936 + $0x2c] sm:$0xf]
      %v949 = vld [vmem:[%s936 + $0x30] sm:$0xf]
      %v950 = vld [vmem:[%s936 + $0x34] sm:$0xf]
      %v951 = vld [vmem:[%s936 + $0x38] sm:$0xf]
      %v952 = vld [vmem:[%s936 + $0x3c] sm:$0xf]
      %v969 = vunpack.c.l.b16 %v937
      %v970 = vunpack.c.l.b16 %v938
      %v971 = vunpack.c.l.b16 %v939
      %v972 = vunpack.c.l.b16 %v940
      %v973 = vunpack.c.l.b16 %v941
      %v974 = vunpack.c.l.b16 %v942
      %v975 = vunpack.c.l.b16 %v943
      %v976 = vunpack.c.l.b16 %v944
      %v977 = vunpack.c.l.b16 %v945
      %v978 = vunpack.c.l.b16 %v946
      %v979 = vunpack.c.l.b16 %v947
      %v980 = vunpack.c.l.b16 %v948
      %v981 = vunpack.c.l.b16 %v949
      %v982 = vunpack.c.l.b16 %v950
      %v983 = vunpack.c.l.b16 %v951
      %v984 = vunpack.c.l.b16 %v952
      %v985 = vpack.c.b16 %v970, %v969
      %v986 = vpack.c.b16 %v972, %v971
      %v987 = vpack.c.b16 %v974, %v973
      %v988 = vpack.c.b16 %v976, %v975
      %v989 = vpack.c.b16 %v978, %v977
      %v990 = vpack.c.b16 %v980, %v979
      %v991 = vpack.c.b16 %v982, %v981
      %v992 = vpack.c.b16 %v984, %v983
      %1001 = vmatprep.subr.bf16.mxu0 0
      %1002 = vmatpush1.bf16.msra.mxu0 %v992
      %1003 = vmatprep.subr.bf16.mxu0 0
      %1004 = vmatpush1.bf16.msra.mxu0 %v991
      %1005 = vmatprep.subr.bf16.mxu0 0
      %1006 = vmatpush1.bf16.msra.mxu0 %v990
      %1007 = vmatprep.subr.bf16.mxu0 0
      %1008 = vmatpush1.bf16.msra.mxu0 %v989
      %1009 = vmatprep.subr.bf16.mxu0 0
      %1010 = vmatpush1.bf16.msra.mxu0 %v988
      %1011 = vmatprep.subr.bf16.mxu0 0
      %1012 = vmatpush1.bf16.msra.mxu0 %v987
      %1013 = vmatprep.subr.bf16.mxu0 0
      %1014 = vmatpush1.bf16.msra.mxu0 %v986
      %1015 = vmatprep.subr.bf16.mxu0 0
      %1016 = vmatpush1.bf16.msra.mxu0 %v985
      %1017 = vmatprep.subr.bf16.mxu0 0
      %1018 = vmatpush2.bf16.msra.mxu0 0
      %1019 = vmatprep.subr.bf16.mxu0 0
      %1020 = vmatpush2.bf16.msra.mxu0 0
      %1021 = vmatprep.subr.bf16.mxu0 0
      %1022 = vmatpush2.bf16.msra.mxu0 0
      %1023 = vmatprep.subr.bf16.mxu0 0
      %1024 = vmatpush2.bf16.msra.mxu0 0
      %1025 = vmatprep.subr.bf16.mxu0 0
      %1026 = vmatpush2.bf16.msra.mxu0 0
      %1027 = vmatprep.subr.bf16.mxu0 0
      %1028 = vmatpush2.bf16.msra.mxu0 0
      %1029 = vmatprep.subr.bf16.mxu0 0
      %1030 = vmatpush2.bf16.msra.mxu0 0
      %1031 = vmatprep.subr.bf16.mxu0 0
      %1032 = vmatpush2.bf16.msra.mxu0 0
      %1033 = vmatprep.mubr.bf16.mxu0 0
      %1034 = vmatmul.mubr.bf16.gmra.mxu0 %v461
      %v1035 = vpop.f32.mrf.mxu0
      %v1036 = vadd.f32 0.0, %v1035
      %v1037 = vpop.f32.mrf.mxu0
      %v1038 = vpop.f32.mrf.mxu0
      %v1039 = vadd.f32 0.0, %v1038
      %v1040 = vpop.f32.mrf.mxu0
      %1041 = vmatprep.mubr.bf16.mxu0 0
      %1042 = vmatmul.mubr.bf16.gmra.mxu0 %v462
      %v1043 = vpop.f32.mrf.mxu0
      %v1044 = vadd.f32 0.0, %v1043
      %v1045 = vpop.f32.mrf.mxu0
      %v1046 = vpop.f32.mrf.mxu0
      %v1047 = vadd.f32 0.0, %v1046
      %v1048 = vpop.f32.mrf.mxu0
      %1049 = vmatprep.mubr.bf16.mxu0 0
      %1050 = vmatmul.mubr.bf16.gmra.mxu0 %v463
      %v1051 = vpop.f32.mrf.mxu0
      %v1052 = vadd.f32 0.0, %v1051
      %v1053 = vpop.f32.mrf.mxu0
      %v1054 = vpop.f32.mrf.mxu0
      %v1055 = vadd.f32 0.0, %v1054
      %v1056 = vpop.f32.mrf.mxu0
      %1057 = vmatprep.mubr.bf16.mxu0 0
      %1058 = vmatmul.mubr.bf16.gmra.mxu0 %v464
      %v1059 = vpop.f32.mrf.mxu0
      %v1060 = vadd.f32 0.0, %v1059
      %v1061 = vpop.f32.mrf.mxu0
      %v1062 = vpop.f32.mrf.mxu0
      %v1063 = vadd.f32 0.0, %v1062
      %v1064 = vpop.f32.mrf.mxu0
      %1065 = vmatprep.mubr.bf16.mxu0 0
      %1066 = vmatmul.mubr.bf16.gmra.mxu0 %v465
      %v1067 = vpop.f32.mrf.mxu0
      %v1068 = vadd.f32 0.0, %v1067
      %v1069 = vpop.f32.mrf.mxu0
      %v1070 = vpop.f32.mrf.mxu0
      %v1071 = vadd.f32 0.0, %v1070
      %v1072 = vpop.f32.mrf.mxu0
      %1073 = vmatprep.mubr.bf16.mxu0 0
      %1074 = vmatmul.mubr.bf16.gmra.mxu0 %v466
      %v1075 = vpop.f32.mrf.mxu0
      %v1076 = vadd.f32 0.0, %v1075
      %v1077 = vpop.f32.mrf.mxu0
      %v1078 = vpop.f32.mrf.mxu0
      %v1079 = vadd.f32 0.0, %v1078
      %v1080 = vpop.f32.mrf.mxu0
      %1081 = vmatprep.mubr.bf16.mxu0 0
      %1082 = vmatmul.mubr.bf16.gmra.mxu0 %v467
      %v1083 = vpop.f32.mrf.mxu0
      %v1084 = vadd.f32 0.0, %v1083
      %v1085 = vpop.f32.mrf.mxu0
      %v1086 = vpop.f32.mrf.mxu0
      %v1087 = vadd.f32 0.0, %v1086
      %v1088 = vpop.f32.mrf.mxu0
      %1089 = vmatprep.mubr.bf16.mxu0 0
      %1090 = vmatmul.mubr.bf16.gmra.mxu0 %v468
      %v1091 = vpop.f32.mrf.mxu0
      %v1092 = vadd.f32 0.0, %v1091
      %v1093 = vpop.f32.mrf.mxu0
      %v1094 = vpop.f32.mrf.mxu0
      %v1095 = vadd.f32 0.0, %v1094
      %v1096 = vpop.f32.mrf.mxu0
      %1097 = vmatprep.mubr.bf16.mxu0 0
      %1098 = vmatmul.mubr.bf16.gmra.mxu0 %v469
      %v1099 = vpop.f32.mrf.mxu0
      %v1100 = vadd.f32 0.0, %v1099
      %v1101 = vpop.f32.mrf.mxu0
      %v1102 = vpop.f32.mrf.mxu0
      %v1103 = vadd.f32 0.0, %v1102
      %v1104 = vpop.f32.mrf.mxu0
      %1105 = vmatprep.mubr.bf16.mxu0 0
      %1106 = vmatmul.mubr.bf16.gmra.mxu0 %v470
      %v1107 = vpop.f32.mrf.mxu0
      %v1108 = vadd.f32 0.0, %v1107
      %v1109 = vpop.f32.mrf.mxu0
      %v1110 = vpop.f32.mrf.mxu0
      %v1111 = vadd.f32 0.0, %v1110
      %v1112 = vpop.f32.mrf.mxu0
      %1113 = vmatprep.mubr.bf16.mxu0 0
      %1114 = vmatmul.mubr.bf16.gmra.mxu0 %v471
      %v1115 = vpop.f32.mrf.mxu0
      %v1116 = vadd.f32 0.0, %v1115
      %v1117 = vpop.f32.mrf.mxu0
      %v1118 = vpop.f32.mrf.mxu0
      %v1119 = vadd.f32 0.0, %v1118
      %v1120 = vpop.f32.mrf.mxu0
      %1121 = vmatprep.mubr.bf16.mxu0 0
      %1122 = vmatmul.mubr.bf16.gmra.mxu0 %v472
      %v1123 = vpop.f32.mrf.mxu0
      %v1124 = vadd.f32 0.0, %v1123
      %v1125 = vpop.f32.mrf.mxu0
      %v1126 = vpop.f32.mrf.mxu0
      %v1127 = vadd.f32 0.0, %v1126
      %v1128 = vpop.f32.mrf.mxu0
      %1129 = vmatprep.mubr.bf16.mxu0 0
      %1130 = vmatmul.mubr.bf16.gmra.mxu0 %v473
      %v1131 = vpop.f32.mrf.mxu0
      %v1132 = vadd.f32 0.0, %v1131
      %v1133 = vpop.f32.mrf.mxu0
      %v1134 = vpop.f32.mrf.mxu0
      %v1135 = vadd.f32 0.0, %v1134
      %v1136 = vpop.f32.mrf.mxu0
      %1137 = vmatprep.mubr.bf16.mxu0 0
      %1138 = vmatmul.mubr.bf16.gmra.mxu0 %v474
      %v1139 = vpop.f32.mrf.mxu0
      %v1140 = vadd.f32 0.0, %v1139
      %v1141 = vpop.f32.mrf.mxu0
      %v1142 = vpop.f32.mrf.mxu0
      %v1143 = vadd.f32 0.0, %v1142
      %v1144 = vpop.f32.mrf.mxu0
      %1145 = vmatprep.mubr.bf16.mxu0 0
      %1146 = vmatmul.mubr.bf16.gmra.mxu0 %v475
      %v1147 = vpop.f32.mrf.mxu0
      %v1148 = vadd.f32 0.0, %v1147
      %v1149 = vpop.f32.mrf.mxu0
      %v1150 = vpop.f32.mrf.mxu0
      %v1151 = vadd.f32 0.0, %v1150
      %v1152 = vpop.f32.mrf.mxu0
      %1153 = vmatprep.mubr.bf16.mxu0 0
      %1154 = vmatmul.mubr.bf16.gmra.mxu0 %v476
      %v1155 = vpop.f32.mrf.mxu0
      %v1156 = vadd.f32 0.0, %v1155
      %v1157 = vpop.f32.mrf.mxu0
      %v1158 = vpop.f32.mrf.mxu0
      %v1159 = vadd.f32 0.0, %v1158
      %v1160 = vpop.f32.mrf.mxu0
      %1161 = vmatprep.mubr.bf16.mxu0 0
      %1162 = vmatmul.mubr.bf16.gmra.mxu0 %v477
      %v1163 = vpop.f32.mrf.mxu0
      %v1164 = vadd.f32 0.0, %v1163
      %v1165 = vpop.f32.mrf.mxu0
      %v1166 = vpop.f32.mrf.mxu0
      %v1167 = vadd.f32 0.0, %v1166
      %v1168 = vpop.f32.mrf.mxu0
      %1169 = vmatprep.mubr.bf16.mxu0 0
      %1170 = vmatmul.mubr.bf16.gmra.mxu0 %v478
      %v1171 = vpop.f32.mrf.mxu0
      %v1172 = vadd.f32 0.0, %v1171
      %v1173 = vpop.f32.mrf.mxu0
      %v1174 = vpop.f32.mrf.mxu0
      %v1175 = vadd.f32 0.0, %v1174
      %v1176 = vpop.f32.mrf.mxu0
      %1177 = vmatprep.mubr.bf16.mxu0 0
      %1178 = vmatmul.mubr.bf16.gmra.mxu0 %v479
      %v1179 = vpop.f32.mrf.mxu0
      %v1180 = vadd.f32 0.0, %v1179
      %v1181 = vpop.f32.mrf.mxu0
      %v1182 = vpop.f32.mrf.mxu0
      %v1183 = vadd.f32 0.0, %v1182
      %v1184 = vpop.f32.mrf.mxu0
      %1185 = vmatprep.mubr.bf16.mxu0 0
      %1186 = vmatmul.mubr.bf16.gmra.mxu0 %v480
      %v1187 = vpop.f32.mrf.mxu0
      %v1188 = vadd.f32 0.0, %v1187
      %v1189 = vpop.f32.mrf.mxu0
      %v1190 = vpop.f32.mrf.mxu0
      %v1191 = vadd.f32 0.0, %v1190
      %v1192 = vpop.f32.mrf.mxu0
      %1193 = vmatprep.mubr.bf16.mxu0 0
      %1194 = vmatmul.mubr.bf16.gmra.mxu0 %v481
      %v1195 = vpop.f32.mrf.mxu0
      %v1196 = vadd.f32 0.0, %v1195
      %v1197 = vpop.f32.mrf.mxu0
      %v1198 = vpop.f32.mrf.mxu0
      %v1199 = vadd.f32 0.0, %v1198
      %v1200 = vpop.f32.mrf.mxu0
      %1201 = vmatprep.mubr.bf16.mxu0 0
      %1202 = vmatmul.mubr.bf16.gmra.mxu0 %v482
      %v1203 = vpop.f32.mrf.mxu0
      %v1204 = vadd.f32 0.0, %v1203
      %v1205 = vpop.f32.mrf.mxu0
      %v1206 = vpop.f32.mrf.mxu0
      %v1207 = vadd.f32 0.0, %v1206
      %v1208 = vpop.f32.mrf.mxu0
      %1209 = vmatprep.mubr.bf16.mxu0 0
      %1210 = vmatmul.mubr.bf16.gmra.mxu0 %v483
      %v1211 = vpop.f32.mrf.mxu0
      %v1212 = vadd.f32 0.0, %v1211
      %v1213 = vpop.f32.mrf.mxu0
      %v1214 = vpop.f32.mrf.mxu0
      %v1215 = vadd.f32 0.0, %v1214
      %v1216 = vpop.f32.mrf.mxu0
      %1217 = vmatprep.mubr.bf16.mxu0 0
      %1218 = vmatmul.mubr.bf16.gmra.mxu0 %v484
      %v1219 = vpop.f32.mrf.mxu0
      %v1220 = vadd.f32 0.0, %v1219
      %v1221 = vpop.f32.mrf.mxu0
      %v1222 = vpop.f32.mrf.mxu0
      %v1223 = vadd.f32 0.0, %v1222
      %v1224 = vpop.f32.mrf.mxu0
      %1225 = vmatprep.mubr.bf16.mxu0 0
      %1226 = vmatmul.mubr.bf16.gmra.mxu0 %v485
      %v1227 = vpop.f32.mrf.mxu0
      %v1228 = vadd.f32 0.0, %v1227
      %v1229 = vpop.f32.mrf.mxu0
      %v1230 = vpop.f32.mrf.mxu0
      %v1231 = vpop.f32.mrf.mxu0
      %1232 = vdwg.mxu0
      %v1233 = vld [vmem:[#allocation2] sm:$0xff]
      %v1234 = vld [vmem:[#allocation2 + $0x8] sm:$0xff]
      %v1235 = vld [vmem:[#allocation2 + $0x10] sm:$0xff]
      %v1236 = vld [vmem:[#allocation2 + $0x18] sm:$0xff]
      %v1237 = vld [vmem:[#allocation2 + $0x20] sm:$0xff]
      %v1238 = vld [vmem:[#allocation2 + $0x28] sm:$0xff]
      %v1239 = vld [vmem:[#allocation2 + $0x30] sm:$0xff]
      %v1240 = vld [vmem:[#allocation2 + $0x38] sm:$0xff]
      %v1241 = vld [vmem:[#allocation2 + $0x40] sm:$0xff]
      %v1242 = vld [vmem:[#allocation2 + $0x48] sm:$0xff]
      %v1243 = vld [vmem:[#allocation2 + $0x50] sm:$0xff]
      %v1244 = vld [vmem:[#allocation2 + $0x58] sm:$0xff]
      %v1245 = vld [vmem:[#allocation2 + $0x60] sm:$0xff]
      %v1246 = vld [vmem:[#allocation2 + $0x68] sm:$0xff]
      %v1247 = vld [vmem:[#allocation2 + $0x70] sm:$0xff]
      %v1248 = vld [vmem:[#allocation2 + $0x78] sm:$0xff]
      %v1249 = vld [vmem:[#allocation2 + $0x80] sm:$0xff]
      %v1250 = vld [vmem:[#allocation2 + $0x88] sm:$0xff]
      %v1251 = vld [vmem:[#allocation2 + $0x90] sm:$0xff]
      %v1252 = vld [vmem:[#allocation2 + $0x98] sm:$0xff]
      %v1253 = vld [vmem:[#allocation2 + $0xa0] sm:$0xff]
      %v1254 = vld [vmem:[#allocation2 + $0xa8] sm:$0xff]
      %v1255 = vld [vmem:[#allocation2 + $0xb0] sm:$0xff]
      %v1256 = vld [vmem:[#allocation2 + $0xb8] sm:$0xff]
      %v1257 = vld [vmem:[#allocation2 + $0xc0] sm:$0xff]
      %v1258 = vld [vmem:[#allocation2 + $0xc8] sm:$0xff]
      %v1259 = vld [vmem:[#allocation2 + $0xd0] sm:$0xff]
      %v1260 = vld [vmem:[#allocation2 + $0xd8] sm:$0xff]
      %v1261 = vld [vmem:[#allocation2 + $0xe0] sm:$0xff]
      %v1262 = vld [vmem:[#allocation2 + $0xe8] sm:$0xff]
      %v1263 = vld [vmem:[#allocation2 + $0xf0] sm:$0xff]
      %v1264 = vld [vmem:[#allocation2 + $0xf8] sm:$0xff]
      %v1265 = vld [vmem:[#allocation2 + $0x100] sm:$0xff]
      %v1266 = vld [vmem:[#allocation2 + $0x108] sm:$0xff]
      %v1267 = vld [vmem:[#allocation2 + $0x110] sm:$0xff]
      %v1268 = vld [vmem:[#allocation2 + $0x118] sm:$0xff]
      %v1269 = vld [vmem:[#allocation2 + $0x120] sm:$0xff]
      %v1270 = vld [vmem:[#allocation2 + $0x128] sm:$0xff]
      %v1271 = vld [vmem:[#allocation2 + $0x130] sm:$0xff]
      %v1272 = vld [vmem:[#allocation2 + $0x138] sm:$0xff]
      %v1273 = vld [vmem:[#allocation2 + $0x140] sm:$0xff]
      %v1274 = vld [vmem:[#allocation2 + $0x148] sm:$0xff]
      %v1275 = vld [vmem:[#allocation2 + $0x150] sm:$0xff]
      %v1276 = vld [vmem:[#allocation2 + $0x158] sm:$0xff]
      %v1277 = vld [vmem:[#allocation2 + $0x160] sm:$0xff]
      %v1278 = vld [vmem:[#allocation2 + $0x168] sm:$0xff]
      %v1279 = vld [vmem:[#allocation2 + $0x170] sm:$0xff]
      %v1280 = vld [vmem:[#allocation2 + $0x178] sm:$0xff]
      %vm1330 = vcmask 1045504
      %v1331 = vrot.slane %v1036, 2
      %v1332 = vrot.slane %v1039, 2
      %v1333 = vsel %vm1330, %v1331, %v1332
      %v1334 = vrot.slane %v1044, 2
      %v1335 = vsel %vm1330, %v1332, %v1334
      %v1336 = vrot.slane %v1047, 2
      %v1337 = vsel %vm1330, %v1334, %v1336
      %v1338 = vrot.slane %v1052, 2
      %v1339 = vsel %vm1330, %v1336, %v1338
      %v1340 = vrot.slane %v1055, 2
      %v1341 = vsel %vm1330, %v1338, %v1340
      %v1342 = vrot.slane %v1060, 2
      %v1343 = vsel %vm1330, %v1340, %v1342
      %v1344 = vrot.slane %v1063, 2
      %v1345 = vsel %vm1330, %v1342, %v1344
      %v1346 = vrot.slane %v1068, 2
      %v1347 = vsel %vm1330, %v1344, %v1346
      %v1348 = vrot.slane %v1071, 2
      %v1349 = vsel %vm1330, %v1346, %v1348
      %v1350 = vrot.slane %v1076, 2
      %v1351 = vsel %vm1330, %v1348, %v1350
      %v1352 = vrot.slane %v1079, 2
      %v1353 = vsel %vm1330, %v1350, %v1352
      %v1354 = vrot.slane %v1084, 2
      %v1355 = vsel %vm1330, %v1352, %v1354
      %v1356 = vrot.slane %v1087, 2
      %v1357 = vsel %vm1330, %v1354, %v1356
      %v1358 = vrot.slane %v1092, 2
      %v1359 = vsel %vm1330, %v1356, %v1358
      %v1360 = vrot.slane %v1095, 2
      %v1361 = vsel %vm1330, %v1358, %v1360
      %v1362 = vrot.slane %v1100, 2
      %v1363 = vsel %vm1330, %v1360, %v1362
      %v1364 = vrot.slane %v1103, 2
      %v1365 = vsel %vm1330, %v1362, %v1364
      %v1366 = vrot.slane %v1108, 2
      %v1367 = vsel %vm1330, %v1364, %v1366
      %v1368 = vrot.slane %v1111, 2
      %v1369 = vsel %vm1330, %v1366, %v1368
      %v1370 = vrot.slane %v1116, 2
      %v1371 = vsel %vm1330, %v1368, %v1370
      %v1372 = vrot.slane %v1119, 2
      %v1373 = vsel %vm1330, %v1370, %v1372
      %v1374 = vrot.slane %v1124, 2
      %v1375 = vsel %vm1330, %v1372, %v1374
      %v1376 = vrot.slane %v1127, 2
      %v1377 = vsel %vm1330, %v1374, %v1376
      %v1378 = vrot.slane %v1132, 2
      %v1379 = vsel %vm1330, %v1376, %v1378
      %v1380 = vrot.slane %v1135, 2
      %v1381 = vsel %vm1330, %v1378, %v1380
      %v1382 = vrot.slane %v1140, 2
      %v1383 = vsel %vm1330, %v1380, %v1382
      %v1384 = vrot.slane %v1143, 2
      %v1385 = vsel %vm1330, %v1382, %v1384
      %v1386 = vrot.slane %v1148, 2
      %v1387 = vsel %vm1330, %v1384, %v1386
      %v1388 = vrot.slane %v1151, 2
      %v1389 = vsel %vm1330, %v1386, %v1388
      %v1390 = vrot.slane %v1156, 2
      %v1391 = vsel %vm1330, %v1388, %v1390
      %v1392 = vrot.slane %v1159, 2
      %v1393 = vsel %vm1330, %v1390, %v1392
      %v1394 = vrot.slane %v1164, 2
      %v1395 = vsel %vm1330, %v1392, %v1394
      %v1396 = vrot.slane %v1167, 2
      %v1397 = vsel %vm1330, %v1394, %v1396
      %v1398 = vrot.slane %v1172, 2
      %v1399 = vsel %vm1330, %v1396, %v1398
      %v1400 = vrot.slane %v1175, 2
      %v1401 = vsel %vm1330, %v1398, %v1400
      %v1402 = vrot.slane %v1180, 2
      %v1403 = vsel %vm1330, %v1400, %v1402
      %v1404 = vrot.slane %v1183, 2
      %v1405 = vsel %vm1330, %v1402, %v1404
      %v1406 = vrot.slane %v1188, 2
      %v1407 = vsel %vm1330, %v1404, %v1406
      %v1408 = vrot.slane %v1191, 2
      %v1409 = vsel %vm1330, %v1406, %v1408
      %v1410 = vrot.slane %v1196, 2
      %v1411 = vsel %vm1330, %v1408, %v1410
      %v1412 = vrot.slane %v1199, 2
      %v1413 = vsel %vm1330, %v1410, %v1412
      %v1414 = vrot.slane %v1204, 2
      %v1415 = vsel %vm1330, %v1412, %v1414
      %v1416 = vrot.slane %v1207, 2
      %v1417 = vsel %vm1330, %v1414, %v1416
      %v1418 = vrot.slane %v1212, 2
      %v1419 = vsel %vm1330, %v1416, %v1418
      %v1420 = vrot.slane %v1215, 2
      %v1421 = vsel %vm1330, %v1418, %v1420
      %v1422 = vrot.slane %v1220, 2
      %v1423 = vsel %vm1330, %v1420, %v1422
      %v1424 = vrot.slane %v1223, 2
      %v1425 = vsel %vm1330, %v1422, %v1424
      %v1426 = vrot.slane %v1228, 2
      %v1427 = vsel %vm1330, %v1424, %v1426
      %v1476 = vadd.f32 %v1233, %v1333
      %v1477 = vadd.f32 %v1234, %v1335
      %v1478 = vadd.f32 %v1235, %v1337
      %v1479 = vadd.f32 %v1236, %v1339
      %v1480 = vadd.f32 %v1237, %v1341
      %v1481 = vadd.f32 %v1238, %v1343
      %v1482 = vadd.f32 %v1239, %v1345
      %v1483 = vadd.f32 %v1240, %v1347
      %v1484 = vadd.f32 %v1241, %v1349
      %v1485 = vadd.f32 %v1242, %v1351
      %v1486 = vadd.f32 %v1243, %v1353
      %v1487 = vadd.f32 %v1244, %v1355
      %v1488 = vadd.f32 %v1245, %v1357
      %v1489 = vadd.f32 %v1246, %v1359
      %v1490 = vadd.f32 %v1247, %v1361
      %v1491 = vadd.f32 %v1248, %v1363
      %v1492 = vadd.f32 %v1249, %v1365
      %v1493 = vadd.f32 %v1250, %v1367
      %v1494 = vadd.f32 %v1251, %v1369
      %v1495 = vadd.f32 %v1252, %v1371
      %v1496 = vadd.f32 %v1253, %v1373
      %v1497 = vadd.f32 %v1254, %v1375
      %v1498 = vadd.f32 %v1255, %v1377
      %v1499 = vadd.f32 %v1256, %v1379
      %v1500 = vadd.f32 %v1257, %v1381
      %v1501 = vadd.f32 %v1258, %v1383
      %v1502 = vadd.f32 %v1259, %v1385
      %v1503 = vadd.f32 %v1260, %v1387
      %v1504 = vadd.f32 %v1261, %v1389
      %v1505 = vadd.f32 %v1262, %v1391
      %v1506 = vadd.f32 %v1263, %v1393
      %v1507 = vadd.f32 %v1264, %v1395
      %v1508 = vadd.f32 %v1265, %v1397
      %v1509 = vadd.f32 %v1266, %v1399
      %v1510 = vadd.f32 %v1267, %v1401
      %v1511 = vadd.f32 %v1268, %v1403
      %v1512 = vadd.f32 %v1269, %v1405
      %v1513 = vadd.f32 %v1270, %v1407
      %v1514 = vadd.f32 %v1271, %v1409
      %v1515 = vadd.f32 %v1272, %v1411
      %v1516 = vadd.f32 %v1273, %v1413
      %v1517 = vadd.f32 %v1274, %v1415
      %v1518 = vadd.f32 %v1275, %v1417
      %v1519 = vadd.f32 %v1276, %v1419
      %v1520 = vadd.f32 %v1277, %v1421
      %v1521 = vadd.f32 %v1278, %v1423
      %v1522 = vadd.f32 %v1279, %v1425
      %v1523 = vadd.f32 %v1280, %v1427
      %1524 = vst [vmem:[#allocation2] sm:$0xff] %v1476
      %1525 = vst [vmem:[#allocation2 + $0x8] sm:$0xff] %v1477
      %1526 = vst [vmem:[#allocation2 + $0x10] sm:$0xff] %v1478
      %1527 = vst [vmem:[#allocation2 + $0x18] sm:$0xff] %v1479
      %1528 = vst [vmem:[#allocation2 + $0x20] sm:$0xff] %v1480
      %1529 = vst [vmem:[#allocation2 + $0x28] sm:$0xff] %v1481
      %1530 = vst [vmem:[#allocation2 + $0x30] sm:$0xff] %v1482
      %1531 = vst [vmem:[#allocation2 + $0x38] sm:$0xff] %v1483
      %1532 = vst [vmem:[#allocation2 + $0x40] sm:$0xff] %v1484
      %1533 = vst [vmem:[#allocation2 + $0x48] sm:$0xff] %v1485
      %1534 = vst [vmem:[#allocation2 + $0x50] sm:$0xff] %v1486
      %1535 = vst [vmem:[#allocation2 + $0x58] sm:$0xff] %v1487
      %1536 = vst [vmem:[#allocation2 + $0x60] sm:$0xff] %v1488
      %1537 = vst [vmem:[#allocation2 + $0x68] sm:$0xff] %v1489
      %1538 = vst [vmem:[#allocation2 + $0x70] sm:$0xff] %v1490
      %1539 = vst [vmem:[#allocation2 + $0x78] sm:$0xff] %v1491
      %1540 = vst [vmem:[#allocation2 + $0x80] sm:$0xff] %v1492
      %1541 = vst [vmem:[#allocation2 + $0x88] sm:$0xff] %v1493
      %1542 = vst [vmem:[#allocation2 + $0x90] sm:$0xff] %v1494
      %1543 = vst [vmem:[#allocation2 + $0x98] sm:$0xff] %v1495
      %1544 = vst [vmem:[#allocation2 + $0xa0] sm:$0xff] %v1496
      %1545 = vst [vmem:[#allocation2 + $0xa8] sm:$0xff] %v1497
      %1546 = vst [vmem:[#allocation2 + $0xb0] sm:$0xff] %v1498
      %1547 = vst [vmem:[#allocation2 + $0xb8] sm:$0xff] %v1499
      %1548 = vst [vmem:[#allocation2 + $0xc0] sm:$0xff] %v1500
      %1549 = vst [vmem:[#allocation2 + $0xc8] sm:$0xff] %v1501
      %1550 = vst [vmem:[#allocation2 + $0xd0] sm:$0xff] %v1502
      %1551 = vst [vmem:[#allocation2 + $0xd8] sm:$0xff] %v1503
      %1552 = vst [vmem:[#allocation2 + $0xe0] sm:$0xff] %v1504
      %1553 = vst [vmem:[#allocation2 + $0xe8] sm:$0xff] %v1505
      %1554 = vst [vmem:[#allocation2 + $0xf0] sm:$0xff] %v1506
      %1555 = vst [vmem:[#allocation2 + $0xf8] sm:$0xff] %v1507
      %1556 = vst [vmem:[#allocation2 + $0x100] sm:$0xff] %v1508
      %1557 = vst [vmem:[#allocation2 + $0x108] sm:$0xff] %v1509
      %1558 = vst [vmem:[#allocation2 + $0x110] sm:$0xff] %v1510
      %1559 = vst [vmem:[#allocation2 + $0x118] sm:$0xff] %v1511
      %1560 = vst [vmem:[#allocation2 + $0x120] sm:$0xff] %v1512
      %1561 = vst [vmem:[#allocation2 + $0x128] sm:$0xff] %v1513
      %1562 = vst [vmem:[#allocation2 + $0x130] sm:$0xff] %v1514
      %1563 = vst [vmem:[#allocation2 + $0x138] sm:$0xff] %v1515
      %1564 = vst [vmem:[#allocation2 + $0x140] sm:$0xff] %v1516
      %1565 = vst [vmem:[#allocation2 + $0x148] sm:$0xff] %v1517
      %1566 = vst [vmem:[#allocation2 + $0x150] sm:$0xff] %v1518
      %1567 = vst [vmem:[#allocation2 + $0x158] sm:$0xff] %v1519
      %1568 = vst [vmem:[#allocation2 + $0x160] sm:$0xff] %v1520
      %1569 = vst [vmem:[#allocation2 + $0x168] sm:$0xff] %v1521
      %1570 = vst [vmem:[#allocation2 + $0x170] sm:$0xff] %v1522
      %1571 = vst [vmem:[#allocation2 + $0x178] sm:$0xff] %v1523
      %s1572 = sadd.s32 %s343, 32
      %s1573 = smul.addr %s1572, 4
      %s1574 = scalar_lea.vmem %s228, %s1573
      %v1575 = vld [vmem:[%s1574] sm:$0xf]
      %v1576 = vld [vmem:[%s1574 + $0x4] sm:$0xf]
      %v1577 = vld [vmem:[%s1574 + $0x8] sm:$0xf]
      %v1578 = vld [vmem:[%s1574 + $0xc] sm:$0xf]
      %v1579 = vld [vmem:[%s1574 + $0x10] sm:$0xf]
      %v1580 = vld [vmem:[%s1574 + $0x14] sm:$0xf]
      %v1581 = vld [vmem:[%s1574 + $0x18] sm:$0xf]
      %v1582 = vld [vmem:[%s1574 + $0x1c] sm:$0xf]
      %v1583 = vld [vmem:[%s1574 + $0x20] sm:$0xf]
      %v1584 = vld [vmem:[%s1574 + $0x24] sm:$0xf]
      %v1585 = vld [vmem:[%s1574 + $0x28] sm:$0xf]
      %v1586 = vld [vmem:[%s1574 + $0x2c] sm:$0xf]
      %v1587 = vld [vmem:[%s1574 + $0x30] sm:$0xf]
      %v1588 = vld [vmem:[%s1574 + $0x34] sm:$0xf]
      %v1589 = vld [vmem:[%s1574 + $0x38] sm:$0xf]
      %v1590 = vld [vmem:[%s1574 + $0x3c] sm:$0xf]
      %v1607 = vunpack.c.l.b16 %v1575
      %v1608 = vunpack.c.l.b16 %v1576
      %v1609 = vunpack.c.l.b16 %v1577
      %v1610 = vunpack.c.l.b16 %v1578
      %v1611 = vunpack.c.l.b16 %v1579
      %v1612 = vunpack.c.l.b16 %v1580
      %v1613 = vunpack.c.l.b16 %v1581
      %v1614 = vunpack.c.l.b16 %v1582
      %v1615 = vunpack.c.l.b16 %v1583
      %v1616 = vunpack.c.l.b16 %v1584
      %v1617 = vunpack.c.l.b16 %v1585
      %v1618 = vunpack.c.l.b16 %v1586
      %v1619 = vunpack.c.l.b16 %v1587
      %v1620 = vunpack.c.l.b16 %v1588
      %v1621 = vunpack.c.l.b16 %v1589
      %v1622 = vunpack.c.l.b16 %v1590
      %v1623 = vpack.c.b16 %v1608, %v1607
      %v1624 = vpack.c.b16 %v1610, %v1609
      %v1625 = vpack.c.b16 %v1612, %v1611
      %v1626 = vpack.c.b16 %v1614, %v1613
      %v1627 = vpack.c.b16 %v1616, %v1615
      %v1628 = vpack.c.b16 %v1618, %v1617
      %v1629 = vpack.c.b16 %v1620, %v1619
      %v1630 = vpack.c.b16 %v1622, %v1621
      %1639 = vmatprep.subr.bf16.mxu0 0
      %1640 = vmatpush1.bf16.msra.mxu0 %v1630
      %1641 = vmatprep.subr.bf16.mxu0 0
      %1642 = vmatpush1.bf16.msra.mxu0 %v1629
      %1643 = vmatprep.subr.bf16.mxu0 0
      %1644 = vmatpush1.bf16.msra.mxu0 %v1628
      %1645 = vmatprep.subr.bf16.mxu0 0
      %1646 = vmatpush1.bf16.msra.mxu0 %v1627
      %1647 = vmatprep.subr.bf16.mxu0 0
      %1648 = vmatpush1.bf16.msra.mxu0 %v1626
      %1649 = vmatprep.subr.bf16.mxu0 0
      %1650 = vmatpush1.bf16.msra.mxu0 %v1625
      %1651 = vmatprep.subr.bf16.mxu0 0
      %1652 = vmatpush1.bf16.msra.mxu0 %v1624
      %1653 = vmatprep.subr.bf16.mxu0 0
      %1654 = vmatpush1.bf16.msra.mxu0 %v1623
      %1655 = vmatprep.subr.bf16.mxu0 0
      %1656 = vmatpush2.bf16.msra.mxu0 0
      %1657 = vmatprep.subr.bf16.mxu0 0
      %1658 = vmatpush2.bf16.msra.mxu0 0
      %1659 = vmatprep.subr.bf16.mxu0 0
      %1660 = vmatpush2.bf16.msra.mxu0 0
      %1661 = vmatprep.subr.bf16.mxu0 0
      %1662 = vmatpush2.bf16.msra.mxu0 0
      %1663 = vmatprep.subr.bf16.mxu0 0
      %1664 = vmatpush2.bf16.msra.mxu0 0
      %1665 = vmatprep.subr.bf16.mxu0 0
      %1666 = vmatpush2.bf16.msra.mxu0 0
      %1667 = vmatprep.subr.bf16.mxu0 0
      %1668 = vmatpush2.bf16.msra.mxu0 0
      %1669 = vmatprep.subr.bf16.mxu0 0
      %1670 = vmatpush2.bf16.msra.mxu0 0
      %1671 = vmatprep.mubr.bf16.mxu0 0
      %1672 = vmatmul.mubr.bf16.gmra.mxu0 %v461
      %v1673 = vpop.f32.mrf.mxu0
      %v1674 = vadd.f32 0.0, %v1673
      %v1675 = vpop.f32.mrf.mxu0
      %v1676 = vpop.f32.mrf.mxu0
      %v1677 = vadd.f32 0.0, %v1676
      %v1678 = vpop.f32.mrf.mxu0
      %1679 = vmatprep.mubr.bf16.mxu0 0
      %1680 = vmatmul.mubr.bf16.gmra.mxu0 %v462
      %v1681 = vpop.f32.mrf.mxu0
      %v1682 = vadd.f32 0.0, %v1681
      %v1683 = vpop.f32.mrf.mxu0
      %v1684 = vpop.f32.mrf.mxu0
      %v1685 = vadd.f32 0.0, %v1684
      %v1686 = vpop.f32.mrf.mxu0
      %1687 = vmatprep.mubr.bf16.mxu0 0
      %1688 = vmatmul.mubr.bf16.gmra.mxu0 %v463
      %v1689 = vpop.f32.mrf.mxu0
      %v1690 = vadd.f32 0.0, %v1689
      %v1691 = vpop.f32.mrf.mxu0
      %v1692 = vpop.f32.mrf.mxu0
      %v1693 = vadd.f32 0.0, %v1692
      %v1694 = vpop.f32.mrf.mxu0
      %1695 = vmatprep.mubr.bf16.mxu0 0
      %1696 = vmatmul.mubr.bf16.gmra.mxu0 %v464
      %v1697 = vpop.f32.mrf.mxu0
      %v1698 = vadd.f32 0.0, %v1697
      %v1699 = vpop.f32.mrf.mxu0
      %v1700 = vpop.f32.mrf.mxu0
      %v1701 = vadd.f32 0.0, %v1700
      %v1702 = vpop.f32.mrf.mxu0
      %1703 = vmatprep.mubr.bf16.mxu0 0
      %1704 = vmatmul.mubr.bf16.gmra.mxu0 %v465
      %v1705 = vpop.f32.mrf.mxu0
      %v1706 = vadd.f32 0.0, %v1705
      %v1707 = vpop.f32.mrf.mxu0
      %v1708 = vpop.f32.mrf.mxu0
      %v1709 = vadd.f32 0.0, %v1708
      %v1710 = vpop.f32.mrf.mxu0
      %1711 = vmatprep.mubr.bf16.mxu0 0
      %1712 = vmatmul.mubr.bf16.gmra.mxu0 %v466
      %v1713 = vpop.f32.mrf.mxu0
      %v1714 = vadd.f32 0.0, %v1713
      %v1715 = vpop.f32.mrf.mxu0
      %v1716 = vpop.f32.mrf.mxu0
      %v1717 = vadd.f32 0.0, %v1716
      %v1718 = vpop.f32.mrf.mxu0
      %1719 = vmatprep.mubr.bf16.mxu0 0
      %1720 = vmatmul.mubr.bf16.gmra.mxu0 %v467
      %v1721 = vpop.f32.mrf.mxu0
      %v1722 = vadd.f32 0.0, %v1721
      %v1723 = vpop.f32.mrf.mxu0
      %v1724 = vpop.f32.mrf.mxu0
      %v1725 = vadd.f32 0.0, %v1724
      %v1726 = vpop.f32.mrf.mxu0
      %1727 = vmatprep.mubr.bf16.mxu0 0
      %1728 = vmatmul.mubr.bf16.gmra.mxu0 %v468
      %v1729 = vpop.f32.mrf.mxu0
      %v1730 = vadd.f32 0.0, %v1729
      %v1731 = vpop.f32.mrf.mxu0
      %v1732 = vpop.f32.mrf.mxu0
      %v1733 = vadd.f32 0.0, %v1732
      %v1734 = vpop.f32.mrf.mxu0
      %1735 = vmatprep.mubr.bf16.mxu0 0
      %1736 = vmatmul.mubr.bf16.gmra.mxu0 %v469
      %v1737 = vpop.f32.mrf.mxu0
      %v1738 = vadd.f32 0.0, %v1737
      %v1739 = vpop.f32.mrf.mxu0
      %v1740 = vpop.f32.mrf.mxu0
      %v1741 = vadd.f32 0.0, %v1740
      %v1742 = vpop.f32.mrf.mxu0
      %1743 = vmatprep.mubr.bf16.mxu0 0
      %1744 = vmatmul.mubr.bf16.gmra.mxu0 %v470
      %v1745 = vpop.f32.mrf.mxu0
      %v1746 = vadd.f32 0.0, %v1745
      %v1747 = vpop.f32.mrf.mxu0
      %v1748 = vpop.f32.mrf.mxu0
      %v1749 = vadd.f32 0.0, %v1748
      %v1750 = vpop.f32.mrf.mxu0
      %1751 = vmatprep.mubr.bf16.mxu0 0
      %1752 = vmatmul.mubr.bf16.gmra.mxu0 %v471
      %v1753 = vpop.f32.mrf.mxu0
      %v1754 = vadd.f32 0.0, %v1753
      %v1755 = vpop.f32.mrf.mxu0
      %v1756 = vpop.f32.mrf.mxu0
      %v1757 = vadd.f32 0.0, %v1756
      %v1758 = vpop.f32.mrf.mxu0
      %1759 = vmatprep.mubr.bf16.mxu0 0
      %1760 = vmatmul.mubr.bf16.gmra.mxu0 %v472
      %v1761 = vpop.f32.mrf.mxu0
      %v1762 = vadd.f32 0.0, %v1761
      %v1763 = vpop.f32.mrf.mxu0
      %v1764 = vpop.f32.mrf.mxu0
      %v1765 = vadd.f32 0.0, %v1764
      %v1766 = vpop.f32.mrf.mxu0
      %1767 = vmatprep.mubr.bf16.mxu0 0
      %1768 = vmatmul.mubr.bf16.gmra.mxu0 %v473
      %v1769 = vpop.f32.mrf.mxu0
      %v1770 = vadd.f32 0.0, %v1769
      %v1771 = vpop.f32.mrf.mxu0
      %v1772 = vpop.f32.mrf.mxu0
      %v1773 = vadd.f32 0.0, %v1772
      %v1774 = vpop.f32.mrf.mxu0
      %1775 = vmatprep.mubr.bf16.mxu0 0
      %1776 = vmatmul.mubr.bf16.gmra.mxu0 %v474
      %v1777 = vpop.f32.mrf.mxu0
      %v1778 = vadd.f32 0.0, %v1777
      %v1779 = vpop.f32.mrf.mxu0
      %v1780 = vpop.f32.mrf.mxu0
      %v1781 = vadd.f32 0.0, %v1780
      %v1782 = vpop.f32.mrf.mxu0
      %1783 = vmatprep.mubr.bf16.mxu0 0
      %1784 = vmatmul.mubr.bf16.gmra.mxu0 %v475
      %v1785 = vpop.f32.mrf.mxu0
      %v1786 = vadd.f32 0.0, %v1785
      %v1787 = vpop.f32.mrf.mxu0
      %v1788 = vpop.f32.mrf.mxu0
      %v1789 = vadd.f32 0.0, %v1788
      %v1790 = vpop.f32.mrf.mxu0
      %1791 = vmatprep.mubr.bf16.mxu0 0
      %1792 = vmatmul.mubr.bf16.gmra.mxu0 %v476
      %v1793 = vpop.f32.mrf.mxu0
      %v1794 = vadd.f32 0.0, %v1793
      %v1795 = vpop.f32.mrf.mxu0
      %v1796 = vpop.f32.mrf.mxu0
      %v1797 = vadd.f32 0.0, %v1796
      %v1798 = vpop.f32.mrf.mxu0
      %1799 = vmatprep.mubr.bf16.mxu0 0
      %1800 = vmatmul.mubr.bf16.gmra.mxu0 %v477
      %v1801 = vpop.f32.mrf.mxu0
      %v1802 = vadd.f32 0.0, %v1801
      %v1803 = vpop.f32.mrf.mxu0
      %v1804 = vpop.f32.mrf.mxu0
      %v1805 = vadd.f32 0.0, %v1804
      %v1806 = vpop.f32.mrf.mxu0
      %1807 = vmatprep.mubr.bf16.mxu0 0
      %1808 = vmatmul.mubr.bf16.gmra.mxu0 %v478
      %v1809 = vpop.f32.mrf.mxu0
      %v1810 = vadd.f32 0.0, %v1809
      %v1811 = vpop.f32.mrf.mxu0
      %v1812 = vpop.f32.mrf.mxu0
      %v1813 = vadd.f32 0.0, %v1812
      %v1814 = vpop.f32.mrf.mxu0
      %1815 = vmatprep.mubr.bf16.mxu0 0
      %1816 = vmatmul.mubr.bf16.gmra.mxu0 %v479
      %v1817 = vpop.f32.mrf.mxu0
      %v1818 = vadd.f32 0.0, %v1817
      %v1819 = vpop.f32.mrf.mxu0
      %v1820 = vpop.f32.mrf.mxu0
      %v1821 = vadd.f32 0.0, %v1820
      %v1822 = vpop.f32.mrf.mxu0
      %1823 = vmatprep.mubr.bf16.mxu0 0
      %1824 = vmatmul.mubr.bf16.gmra.mxu0 %v480
      %v1825 = vpop.f32.mrf.mxu0
      %v1826 = vadd.f32 0.0, %v1825
      %v1827 = vpop.f32.mrf.mxu0
      %v1828 = vpop.f32.mrf.mxu0
      %v1829 = vadd.f32 0.0, %v1828
      %v1830 = vpop.f32.mrf.mxu0
      %1831 = vmatprep.mubr.bf16.mxu0 0
      %1832 = vmatmul.mubr.bf16.gmra.mxu0 %v481
      %v1833 = vpop.f32.mrf.mxu0
      %v1834 = vadd.f32 0.0, %v1833
      %v1835 = vpop.f32.mrf.mxu0
      %v1836 = vpop.f32.mrf.mxu0
      %v1837 = vadd.f32 0.0, %v1836
      %v1838 = vpop.f32.mrf.mxu0
      %1839 = vmatprep.mubr.bf16.mxu0 0
      %1840 = vmatmul.mubr.bf16.gmra.mxu0 %v482
      %v1841 = vpop.f32.mrf.mxu0
      %v1842 = vadd.f32 0.0, %v1841
      %v1843 = vpop.f32.mrf.mxu0
      %v1844 = vpop.f32.mrf.mxu0
      %v1845 = vadd.f32 0.0, %v1844
      %v1846 = vpop.f32.mrf.mxu0
      %1847 = vmatprep.mubr.bf16.mxu0 0
      %1848 = vmatmul.mubr.bf16.gmra.mxu0 %v483
      %v1849 = vpop.f32.mrf.mxu0
      %v1850 = vadd.f32 0.0, %v1849
      %v1851 = vpop.f32.mrf.mxu0
      %v1852 = vpop.f32.mrf.mxu0
      %v1853 = vadd.f32 0.0, %v1852
      %v1854 = vpop.f32.mrf.mxu0
      %1855 = vmatprep.mubr.bf16.mxu0 0
      %1856 = vmatmul.mubr.bf16.gmra.mxu0 %v484
      %v1857 = vpop.f32.mrf.mxu0
      %v1858 = vadd.f32 0.0, %v1857
      %v1859 = vpop.f32.mrf.mxu0
      %v1860 = vpop.f32.mrf.mxu0
      %v1861 = vadd.f32 0.0, %v1860
      %v1862 = vpop.f32.mrf.mxu0
      %1863 = vmatprep.mubr.bf16.mxu0 0
      %1864 = vmatmul.mubr.bf16.gmra.mxu0 %v485
      %v1865 = vpop.f32.mrf.mxu0
      %v1866 = vadd.f32 0.0, %v1865
      %v1867 = vpop.f32.mrf.mxu0
      %v1868 = vpop.f32.mrf.mxu0
      %v1869 = vpop.f32.mrf.mxu0
      %1870 = vdwg.mxu0
      %v1871 = vld [vmem:[#allocation2] sm:$0xff]
      %v1872 = vld [vmem:[#allocation2 + $0x8] sm:$0xff]
      %v1873 = vld [vmem:[#allocation2 + $0x10] sm:$0xff]
      %v1874 = vld [vmem:[#allocation2 + $0x18] sm:$0xff]
      %v1875 = vld [vmem:[#allocation2 + $0x20] sm:$0xff]
      %v1876 = vld [vmem:[#allocation2 + $0x28] sm:$0xff]
      %v1877 = vld [vmem:[#allocation2 + $0x30] sm:$0xff]
      %v1878 = vld [vmem:[#allocation2 + $0x38] sm:$0xff]
      %v1879 = vld [vmem:[#allocation2 + $0x40] sm:$0xff]
      %v1880 = vld [vmem:[#allocation2 + $0x48] sm:$0xff]
      %v1881 = vld [vmem:[#allocation2 + $0x50] sm:$0xff]
      %v1882 = vld [vmem:[#allocation2 + $0x58] sm:$0xff]
      %v1883 = vld [vmem:[#allocation2 + $0x60] sm:$0xff]
      %v1884 = vld [vmem:[#allocation2 + $0x68] sm:$0xff]
      %v1885 = vld [vmem:[#allocation2 + $0x70] sm:$0xff]
      %v1886 = vld [vmem:[#allocation2 + $0x78] sm:$0xff]
      %v1887 = vld [vmem:[#allocation2 + $0x80] sm:$0xff]
      %v1888 = vld [vmem:[#allocation2 + $0x88] sm:$0xff]
      %v1889 = vld [vmem:[#allocation2 + $0x90] sm:$0xff]
      %v1890 = vld [vmem:[#allocation2 + $0x98] sm:$0xff]
      %v1891 = vld [vmem:[#allocation2 + $0xa0] sm:$0xff]
      %v1892 = vld [vmem:[#allocation2 + $0xa8] sm:$0xff]
      %v1893 = vld [vmem:[#allocation2 + $0xb0] sm:$0xff]
      %v1894 = vld [vmem:[#allocation2 + $0xb8] sm:$0xff]
      %v1895 = vld [vmem:[#allocation2 + $0xc0] sm:$0xff]
      %v1896 = vld [vmem:[#allocation2 + $0xc8] sm:$0xff]
      %v1897 = vld [vmem:[#allocation2 + $0xd0] sm:$0xff]
      %v1898 = vld [vmem:[#allocation2 + $0xd8] sm:$0xff]
      %v1899 = vld [vmem:[#allocation2 + $0xe0] sm:$0xff]
      %v1900 = vld [vmem:[#allocation2 + $0xe8] sm:$0xff]
      %v1901 = vld [vmem:[#allocation2 + $0xf0] sm:$0xff]
      %v1902 = vld [vmem:[#allocation2 + $0xf8] sm:$0xff]
      %v1903 = vld [vmem:[#allocation2 + $0x100] sm:$0xff]
      %v1904 = vld [vmem:[#allocation2 + $0x108] sm:$0xff]
      %v1905 = vld [vmem:[#allocation2 + $0x110] sm:$0xff]
      %v1906 = vld [vmem:[#allocation2 + $0x118] sm:$0xff]
      %v1907 = vld [vmem:[#allocation2 + $0x120] sm:$0xff]
      %v1908 = vld [vmem:[#allocation2 + $0x128] sm:$0xff]
      %v1909 = vld [vmem:[#allocation2 + $0x130] sm:$0xff]
      %v1910 = vld [vmem:[#allocation2 + $0x138] sm:$0xff]
      %v1911 = vld [vmem:[#allocation2 + $0x140] sm:$0xff]
      %v1912 = vld [vmem:[#allocation2 + $0x148] sm:$0xff]
      %v1913 = vld [vmem:[#allocation2 + $0x150] sm:$0xff]
      %v1914 = vld [vmem:[#allocation2 + $0x158] sm:$0xff]
      %v1915 = vld [vmem:[#allocation2 + $0x160] sm:$0xff]
      %v1916 = vld [vmem:[#allocation2 + $0x168] sm:$0xff]
      %v1917 = vld [vmem:[#allocation2 + $0x170] sm:$0xff]
      %v1918 = vld [vmem:[#allocation2 + $0x178] sm:$0xff]
      %vm1968 = vcmask 1043456
      %v1969 = vrot.slane %v1674, 4
      %v1970 = vrot.slane %v1677, 4
      %v1971 = vsel %vm1968, %v1969, %v1970
      %v1972 = vrot.slane %v1682, 4
      %v1973 = vsel %vm1968, %v1970, %v1972
      %v1974 = vrot.slane %v1685, 4
      %v1975 = vsel %vm1968, %v1972, %v1974
      %v1976 = vrot.slane %v1690, 4
      %v1977 = vsel %vm1968, %v1974, %v1976
      %v1978 = vrot.slane %v1693, 4
      %v1979 = vsel %vm1968, %v1976, %v1978
      %v1980 = vrot.slane %v1698, 4
      %v1981 = vsel %vm1968, %v1978, %v1980
      %v1982 = vrot.slane %v1701, 4
      %v1983 = vsel %vm1968, %v1980, %v1982
      %v1984 = vrot.slane %v1706, 4
      %v1985 = vsel %vm1968, %v1982, %v1984
      %v1986 = vrot.slane %v1709, 4
      %v1987 = vsel %vm1968, %v1984, %v1986
      %v1988 = vrot.slane %v1714, 4
      %v1989 = vsel %vm1968, %v1986, %v1988
      %v1990 = vrot.slane %v1717, 4
      %v1991 = vsel %vm1968, %v1988, %v1990
      %v1992 = vrot.slane %v1722, 4
      %v1993 = vsel %vm1968, %v1990, %v1992
      %v1994 = vrot.slane %v1725, 4
      %v1995 = vsel %vm1968, %v1992, %v1994
      %v1996 = vrot.slane %v1730, 4
      %v1997 = vsel %vm1968, %v1994, %v1996
      %v1998 = vrot.slane %v1733, 4
      %v1999 = vsel %vm1968, %v1996, %v1998
      %v2000 = vrot.slane %v1738, 4
      %v2001 = vsel %vm1968, %v1998, %v2000
      %v2002 = vrot.slane %v1741, 4
      %v2003 = vsel %vm1968, %v2000, %v2002
      %v2004 = vrot.slane %v1746, 4
      %v2005 = vsel %vm1968, %v2002, %v2004
      %v2006 = vrot.slane %v1749, 4
      %v2007 = vsel %vm1968, %v2004, %v2006
      %v2008 = vrot.slane %v1754, 4
      %v2009 = vsel %vm1968, %v2006, %v2008
      %v2010 = vrot.slane %v1757, 4
      %v2011 = vsel %vm1968, %v2008, %v2010
      %v2012 = vrot.slane %v1762, 4
      %v2013 = vsel %vm1968, %v2010, %v2012
      %v2014 = vrot.slane %v1765, 4
      %v2015 = vsel %vm1968, %v2012, %v2014
      %v2016 = vrot.slane %v1770, 4
      %v2017 = vsel %vm1968, %v2014, %v2016
      %v2018 = vrot.slane %v1773, 4
      %v2019 = vsel %vm1968, %v2016, %v2018
      %v2020 = vrot.slane %v1778, 4
      %v2021 = vsel %vm1968, %v2018, %v2020
      %v2022 = vrot.slane %v1781, 4
      %v2023 = vsel %vm1968, %v2020, %v2022
      %v2024 = vrot.slane %v1786, 4
      %v2025 = vsel %vm1968, %v2022, %v2024
      %v2026 = vrot.slane %v1789, 4
      %v2027 = vsel %vm1968, %v2024, %v2026
      %v2028 = vrot.slane %v1794, 4
      %v2029 = vsel %vm1968, %v2026, %v2028
      %v2030 = vrot.slane %v1797, 4
      %v2031 = vsel %vm1968, %v2028, %v2030
      %v2032 = vrot.slane %v1802, 4
      %v2033 = vsel %vm1968, %v2030, %v2032
      %v2034 = vrot.slane %v1805, 4
      %v2035 = vsel %vm1968, %v2032, %v2034
      %v2036 = vrot.slane %v1810, 4
      %v2037 = vsel %vm1968, %v2034, %v2036
      %v2038 = vrot.slane %v1813, 4
      %v2039 = vsel %vm1968, %v2036, %v2038
      %v2040 = vrot.slane %v1818, 4
      %v2041 = vsel %vm1968, %v2038, %v2040
      %v2042 = vrot.slane %v1821, 4
      %v2043 = vsel %vm1968, %v2040, %v2042
      %v2044 = vrot.slane %v1826, 4
      %v2045 = vsel %vm1968, %v2042, %v2044
      %v2046 = vrot.slane %v1829, 4
      %v2047 = vsel %vm1968, %v2044, %v2046
      %v2048 = vrot.slane %v1834, 4
      %v2049 = vsel %vm1968, %v2046, %v2048
      %v2050 = vrot.slane %v1837, 4
      %v2051 = vsel %vm1968, %v2048, %v2050
      %v2052 = vrot.slane %v1842, 4
      %v2053 = vsel %vm1968, %v2050, %v2052
      %v2054 = vrot.slane %v1845, 4
      %v2055 = vsel %vm1968, %v2052, %v2054
      %v2056 = vrot.slane %v1850, 4
      %v2057 = vsel %vm1968, %v2054, %v2056
      %v2058 = vrot.slane %v1853, 4
      %v2059 = vsel %vm1968, %v2056, %v2058
      %v2060 = vrot.slane %v1858, 4
      %v2061 = vsel %vm1968, %v2058, %v2060
      %v2062 = vrot.slane %v1861, 4
      %v2063 = vsel %vm1968, %v2060, %v2062
      %v2064 = vrot.slane %v1866, 4
      %v2065 = vsel %vm1968, %v2062, %v2064
      %v2114 = vadd.f32 %v1871, %v1971
      %v2115 = vadd.f32 %v1872, %v1973
      %v2116 = vadd.f32 %v1873, %v1975
      %v2117 = vadd.f32 %v1874, %v1977
      %v2118 = vadd.f32 %v1875, %v1979
      %v2119 = vadd.f32 %v1876, %v1981
      %v2120 = vadd.f32 %v1877, %v1983
      %v2121 = vadd.f32 %v1878, %v1985
      %v2122 = vadd.f32 %v1879, %v1987
      %v2123 = vadd.f32 %v1880, %v1989
      %v2124 = vadd.f32 %v1881, %v1991
      %v2125 = vadd.f32 %v1882, %v1993
      %v2126 = vadd.f32 %v1883, %v1995
      %v2127 = vadd.f32 %v1884, %v1997
      %v2128 = vadd.f32 %v1885, %v1999
      %v2129 = vadd.f32 %v1886, %v2001
      %v2130 = vadd.f32 %v1887, %v2003
      %v2131 = vadd.f32 %v1888, %v2005
      %v2132 = vadd.f32 %v1889, %v2007
      %v2133 = vadd.f32 %v1890, %v2009
      %v2134 = vadd.f32 %v1891, %v2011
      %v2135 = vadd.f32 %v1892, %v2013
      %v2136 = vadd.f32 %v1893, %v2015
      %v2137 = vadd.f32 %v1894, %v2017
      %v2138 = vadd.f32 %v1895, %v2019
      %v2139 = vadd.f32 %v1896, %v2021
      %v2140 = vadd.f32 %v1897, %v2023
      %v2141 = vadd.f32 %v1898, %v2025
      %v2142 = vadd.f32 %v1899, %v2027
      %v2143 = vadd.f32 %v1900, %v2029
      %v2144 = vadd.f32 %v1901, %v2031
      %v2145 = vadd.f32 %v1902, %v2033
      %v2146 = vadd.f32 %v1903, %v2035
      %v2147 = vadd.f32 %v1904, %v2037
      %v2148 = vadd.f32 %v1905, %v2039
      %v2149 = vadd.f32 %v1906, %v2041
      %v2150 = vadd.f32 %v1907, %v2043
      %v2151 = vadd.f32 %v1908, %v2045
      %v2152 = vadd.f32 %v1909, %v2047
      %v2153 = vadd.f32 %v1910, %v2049
      %v2154 = vadd.f32 %v1911, %v2051
      %v2155 = vadd.f32 %v1912, %v2053
      %v2156 = vadd.f32 %v1913, %v2055
      %v2157 = vadd.f32 %v1914, %v2057
      %v2158 = vadd.f32 %v1915, %v2059
      %v2159 = vadd.f32 %v1916, %v2061
      %v2160 = vadd.f32 %v1917, %v2063
      %v2161 = vadd.f32 %v1918, %v2065
      %2162 = vst [vmem:[#allocation2] sm:$0xff] %v2114
      %2163 = vst [vmem:[#allocation2 + $0x8] sm:$0xff] %v2115
      %2164 = vst [vmem:[#allocation2 + $0x10] sm:$0xff] %v2116
      %2165 = vst [vmem:[#allocation2 + $0x18] sm:$0xff] %v2117
      %2166 = vst [vmem:[#allocation2 + $0x20] sm:$0xff] %v2118
      %2167 = vst [vmem:[#allocation2 + $0x28] sm:$0xff] %v2119
      %2168 = vst [vmem:[#allocation2 + $0x30] sm:$0xff] %v2120
      %2169 = vst [vmem:[#allocation2 + $0x38] sm:$0xff] %v2121
      %2170 = vst [vmem:[#allocation2 + $0x40] sm:$0xff] %v2122
      %2171 = vst [vmem:[#allocation2 + $0x48] sm:$0xff] %v2123
      %2172 = vst [vmem:[#allocation2 + $0x50] sm:$0xff] %v2124
      %2173 = vst [vmem:[#allocation2 + $0x58] sm:$0xff] %v2125
      %2174 = vst [vmem:[#allocation2 + $0x60] sm:$0xff] %v2126
      %2175 = vst [vmem:[#allocation2 + $0x68] sm:$0xff] %v2127
      %2176 = vst [vmem:[#allocation2 + $0x70] sm:$0xff] %v2128
      %2177 = vst [vmem:[#allocation2 + $0x78] sm:$0xff] %v2129
      %2178 = vst [vmem:[#allocation2 + $0x80] sm:$0xff] %v2130
      %2179 = vst [vmem:[#allocation2 + $0x88] sm:$0xff] %v2131
      %2180 = vst [vmem:[#allocation2 + $0x90] sm:$0xff] %v2132
      %2181 = vst [vmem:[#allocation2 + $0x98] sm:$0xff] %v2133
      %2182 = vst [vmem:[#allocation2 + $0xa0] sm:$0xff] %v2134
      %2183 = vst [vmem:[#allocation2 + $0xa8] sm:$0xff] %v2135
      %2184 = vst [vmem:[#allocation2 + $0xb0] sm:$0xff] %v2136
      %2185 = vst [vmem:[#allocation2 + $0xb8] sm:$0xff] %v2137
      %2186 = vst [vmem:[#allocation2 + $0xc0] sm:$0xff] %v2138
      %2187 = vst [vmem:[#allocation2 + $0xc8] sm:$0xff] %v2139
      %2188 = vst [vmem:[#allocation2 + $0xd0] sm:$0xff] %v2140
      %2189 = vst [vmem:[#allocation2 + $0xd8] sm:$0xff] %v2141
      %2190 = vst [vmem:[#allocation2 + $0xe0] sm:$0xff] %v2142
      %2191 = vst [vmem:[#allocation2 + $0xe8] sm:$0xff] %v2143
      %2192 = vst [vmem:[#allocation2 + $0xf0] sm:$0xff] %v2144
      %2193 = vst [vmem:[#allocation2 + $0xf8] sm:$0xff] %v2145
      %2194 = vst [vmem:[#allocation2 + $0x100] sm:$0xff] %v2146
      %2195 = vst [vmem:[#allocation2 + $0x108] sm:$0xff] %v2147
      %2196 = vst [vmem:[#allocation2 + $0x110] sm:$0xff] %v2148
      %2197 = vst [vmem:[#allocation2 + $0x118] sm:$0xff] %v2149
      %2198 = vst [vmem:[#allocation2 + $0x120] sm:$0xff] %v2150
      %2199 = vst [vmem:[#allocation2 + $0x128] sm:$0xff] %v2151
      %2200 = vst [vmem:[#allocation2 + $0x130] sm:$0xff] %v2152
      %2201 = vst [vmem:[#allocation2 + $0x138] sm:$0xff] %v2153
      %2202 = vst [vmem:[#allocation2 + $0x140] sm:$0xff] %v2154
      %2203 = vst [vmem:[#allocation2 + $0x148] sm:$0xff] %v2155
      %2204 = vst [vmem:[#allocation2 + $0x150] sm:$0xff] %v2156
      %2205 = vst [vmem:[#allocation2 + $0x158] sm:$0xff] %v2157
      %2206 = vst [vmem:[#allocation2 + $0x160] sm:$0xff] %v2158
      %2207 = vst [vmem:[#allocation2 + $0x168] sm:$0xff] %v2159
      %2208 = vst [vmem:[#allocation2 + $0x170] sm:$0xff] %v2160
      %2209 = vst [vmem:[#allocation2 + $0x178] sm:$0xff] %v2161
      %v2210 = vld [vmem:[%s224 + $0x18] sm:$0xf]
      %v2211 = vld [vmem:[%s224 + $0x1c] sm:$0xf]
      %v2212 = vld [vmem:[%s224 + $0x20] sm:$0xf]
      %v2213 = vld [vmem:[%s224 + $0x24] sm:$0xf]
      %v2214 = vld [vmem:[%s224 + $0x28] sm:$0xf]
      %v2215 = vld [vmem:[%s224 + $0x2c] sm:$0xf]
      %v2216 = vld [vmem:[%s224 + $0x30] sm:$0xf]
      %v2217 = vld [vmem:[%s224 + $0x34] sm:$0xf]
      %v2218 = vld [vmem:[%s224 + $0x38] sm:$0xf]
      %v2219 = vld [vmem:[%s224 + $0x3c] sm:$0xf]
      %v2220 = vld [vmem:[%s224 + $0x40] sm:$0xf]
      %v2221 = vld [vmem:[%s224 + $0x44] sm:$0xf]
      %v2222 = vld [vmem:[%s224 + $0x48] sm:$0xf]
      %v2223 = vld [vmem:[%s224 + $0x4c] sm:$0xf]
      %v2224 = vld [vmem:[%s224 + $0x50] sm:$0xf]
      %v2225 = vld [vmem:[%s224 + $0x54] sm:$0xf]
      %v2226 = vld [vmem:[%s224 + $0x58] sm:$0xf]
      %v2227 = vld [vmem:[%s224 + $0x5c] sm:$0xf]
      %v2228 = vld [vmem:[%s224 + $0x60] sm:$0xf]
      %v2229 = vld [vmem:[%s224 + $0x64] sm:$0xf]
      %v2230 = vld [vmem:[%s224 + $0x68] sm:$0xf]
      %v2231 = vld [vmem:[%s224 + $0x6c] sm:$0xf]
      %v2232 = vld [vmem:[%s224 + $0x70] sm:$0xf]
      %v2233 = vld [vmem:[%s224 + $0x74] sm:$0xf]
      %v2234 = vld [vmem:[%s224 + $0x78] sm:$0xf]
      %v2235 = vld [vmem:[%s224 + $0x7c] sm:$0xf]
      %v2236 = vld [vmem:[%s224 + $0x80] sm:$0xf]
      %v2237 = vld [vmem:[%s224 + $0x84] sm:$0xf]
      %v2238 = vld [vmem:[%s224 + $0x88] sm:$0xf]
      %v2239 = vld [vmem:[%s224 + $0x8c] sm:$0xf]
      %v2240 = vld [vmem:[%s224 + $0x90] sm:$0xf]
      %v2241 = vld [vmem:[%s224 + $0x94] sm:$0xf]
      %v2242 = vld [vmem:[%s224 + $0x98] sm:$0xf]
      %v2243 = vld [vmem:[%s224 + $0x9c] sm:$0xf]
      %v2244 = vld [vmem:[%s224 + $0xa0] sm:$0xf]
      %v2245 = vld [vmem:[%s224 + $0xa4] sm:$0xf]
      %v2246 = vld [vmem:[%s224 + $0xa8] sm:$0xf]
      %v2247 = vld [vmem:[%s224 + $0xac] sm:$0xf]
      %v2248 = vld [vmem:[%s224 + $0xb0] sm:$0xf]
      %v2249 = vld [vmem:[%s224 + $0xb4] sm:$0xf]
      %v2250 = vld [vmem:[%s224 + $0xb8] sm:$0xf]
      %v2251 = vld [vmem:[%s224 + $0xbc] sm:$0xf]
      %v2252 = vld [vmem:[%s224 + $0xc0] sm:$0xf]
      %v2253 = vld [vmem:[%s224 + $0xc4] sm:$0xf]
      %v2254 = vld [vmem:[%s224 + $0xc8] sm:$0xf]
      %v2255 = vld [vmem:[%s224 + $0xcc] sm:$0xf]
      %v2256 = vld [vmem:[%s224 + $0xd0] sm:$0xf]
      %v2257 = vld [vmem:[%s224 + $0xd4] sm:$0xf]
      %v2258 = vld [vmem:[%s224 + $0xd8] sm:$0xf]
      %s2259 = sadd.s32 %s343, 48
      %s2260 = smul.addr %s2259, 4
      %s2261 = scalar_lea.vmem %s228, %s2260
      %v2262 = vld [vmem:[%s2261] sm:$0xf]
      %v2263 = vld [vmem:[%s2261 + $0x4] sm:$0xf]
      %v2264 = vld [vmem:[%s2261 + $0x8] sm:$0xf]
      %v2265 = vld [vmem:[%s2261 + $0xc] sm:$0xf]
      %v2266 = vld [vmem:[%s2261 + $0x10] sm:$0xf]
      %v2267 = vld [vmem:[%s2261 + $0x14] sm:$0xf]
      %v2268 = vld [vmem:[%s2261 + $0x18] sm:$0xf]
      %v2269 = vld [vmem:[%s2261 + $0x1c] sm:$0xf]
      %v2270 = vld [vmem:[%s2261 + $0x20] sm:$0xf]
      %v2271 = vld [vmem:[%s2261 + $0x24] sm:$0xf]
      %v2272 = vld [vmem:[%s2261 + $0x28] sm:$0xf]
      %v2273 = vld [vmem:[%s2261 + $0x2c] sm:$0xf]
      %v2274 = vld [vmem:[%s2261 + $0x30] sm:$0xf]
      %v2275 = vld [vmem:[%s2261 + $0x34] sm:$0xf]
      %v2276 = vld [vmem:[%s2261 + $0x38] sm:$0xf]
      %v2277 = vld [vmem:[%s2261 + $0x3c] sm:$0xf]
      %v2327 = vunpack.c.l.b16 %v2210
      %v2328 = vunpack.c.l.b16 %v2211
      %v2329 = vunpack.c.l.b16 %v2212
      %v2330 = vunpack.c.l.b16 %v2213
      %v2331 = vunpack.c.l.b16 %v2214
      %v2332 = vunpack.c.l.b16 %v2215
      %v2333 = vunpack.c.l.b16 %v2216
      %v2334 = vunpack.c.l.b16 %v2217
      %v2335 = vunpack.c.l.b16 %v2218
      %v2336 = vunpack.c.l.b16 %v2219
      %v2337 = vunpack.c.l.b16 %v2220
      %v2338 = vunpack.c.l.b16 %v2221
      %v2339 = vunpack.c.l.b16 %v2222
      %v2340 = vunpack.c.l.b16 %v2223
      %v2341 = vunpack.c.l.b16 %v2224
      %v2342 = vunpack.c.l.b16 %v2225
      %v2343 = vunpack.c.l.b16 %v2226
      %v2344 = vunpack.c.l.b16 %v2227
      %v2345 = vunpack.c.l.b16 %v2228
      %v2346 = vunpack.c.l.b16 %v2229
      %v2347 = vunpack.c.l.b16 %v2230
      %v2348 = vunpack.c.l.b16 %v2231
      %v2349 = vunpack.c.l.b16 %v2232
      %v2350 = vunpack.c.l.b16 %v2233
      %v2351 = vunpack.c.l.b16 %v2234
      %v2352 = vunpack.c.l.b16 %v2235
      %v2353 = vunpack.c.l.b16 %v2236
      %v2354 = vunpack.c.l.b16 %v2237
      %v2355 = vunpack.c.l.b16 %v2238
      %v2356 = vunpack.c.l.b16 %v2239
      %v2357 = vunpack.c.l.b16 %v2240
      %v2358 = vunpack.c.l.b16 %v2241
      %v2359 = vunpack.c.l.b16 %v2242
      %v2360 = vunpack.c.l.b16 %v2243
      %v2361 = vunpack.c.l.b16 %v2244
      %v2362 = vunpack.c.l.b16 %v2245
      %v2363 = vunpack.c.l.b16 %v2246
      %v2364 = vunpack.c.l.b16 %v2247
      %v2365 = vunpack.c.l.b16 %v2248
      %v2366 = vunpack.c.l.b16 %v2249
      %v2367 = vunpack.c.l.b16 %v2250
      %v2368 = vunpack.c.l.b16 %v2251
      %v2369 = vunpack.c.l.b16 %v2252
      %v2370 = vunpack.c.l.b16 %v2253
      %v2371 = vunpack.c.l.b16 %v2254
      %v2372 = vunpack.c.l.b16 %v2255
      %v2373 = vunpack.c.l.b16 %v2256
      %v2374 = vunpack.c.l.b16 %v2257
      %v2375 = vunpack.c.l.b16 %v2258
      %v2376 = vpack.c.b16 %v2328, %v2327
      %v2377 = vpack.c.b16 %v2330, %v2329
      %v2378 = vpack.c.b16 %v2332, %v2331
      %v2379 = vpack.c.b16 %v2334, %v2333
      %v2380 = vpack.c.b16 %v2336, %v2335
      %v2381 = vpack.c.b16 %v2338, %v2337
      %v2382 = vpack.c.b16 %v2340, %v2339
      %v2383 = vpack.c.b16 %v2342, %v2341
      %v2384 = vpack.c.b16 %v2344, %v2343
      %v2385 = vpack.c.b16 %v2346, %v2345
      %v2386 = vpack.c.b16 %v2348, %v2347
      %v2387 = vpack.c.b16 %v2350, %v2349
      %v2388 = vpack.c.b16 %v2352, %v2351
      %v2389 = vpack.c.b16 %v2354, %v2353
      %v2390 = vpack.c.b16 %v2356, %v2355
      %v2391 = vpack.c.b16 %v2358, %v2357
      %v2392 = vpack.c.b16 %v2360, %v2359
      %v2393 = vpack.c.b16 %v2362, %v2361
      %v2394 = vpack.c.b16 %v2364, %v2363
      %v2395 = vpack.c.b16 %v2366, %v2365
      %v2396 = vpack.c.b16 %v2368, %v2367
      %v2397 = vpack.c.b16 %v2370, %v2369
      %v2398 = vpack.c.b16 %v2372, %v2371
      %v2399 = vpack.c.b16 %v2374, %v2373
      %v2400 = vpack.c.b16 %v2375, %v2375
      %v2442 = vunpack.c.l.b16 %v2262
      %v2443 = vunpack.c.l.b16 %v2263
      %v2444 = vunpack.c.l.b16 %v2264
      %v2445 = vunpack.c.l.b16 %v2265
      %v2446 = vunpack.c.l.b16 %v2266
      %v2447 = vunpack.c.l.b16 %v2267
      %v2448 = vunpack.c.l.b16 %v2268
      %v2449 = vunpack.c.l.b16 %v2269
      %v2450 = vunpack.c.l.b16 %v2270
      %v2451 = vunpack.c.l.b16 %v2271
      %v2452 = vunpack.c.l.b16 %v2272
      %v2453 = vunpack.c.l.b16 %v2273
      %v2454 = vunpack.c.l.b16 %v2274
      %v2455 = vunpack.c.l.b16 %v2275
      %v2456 = vunpack.c.l.b16 %v2276
      %v2457 = vunpack.c.l.b16 %v2277
      %v2458 = vpack.c.b16 %v2443, %v2442
      %v2459 = vpack.c.b16 %v2445, %v2444
      %v2460 = vpack.c.b16 %v2447, %v2446
      %v2461 = vpack.c.b16 %v2449, %v2448
      %v2462 = vpack.c.b16 %v2451, %v2450
      %v2463 = vpack.c.b16 %v2453, %v2452
      %v2464 = vpack.c.b16 %v2455, %v2454
      %v2465 = vpack.c.b16 %v2457, %v2456
      %2474 = vmatprep.subr.bf16.mxu0 0
      %2475 = vmatpush1.bf16.msra.mxu0 %v2465
      %2476 = vmatprep.subr.bf16.mxu0 0
      %2477 = vmatpush1.bf16.msra.mxu0 %v2464
      %2478 = vmatprep.subr.bf16.mxu0 0
      %2479 = vmatpush1.bf16.msra.mxu0 %v2463
      %2480 = vmatprep.subr.bf16.mxu0 0
      %2481 = vmatpush1.bf16.msra.mxu0 %v2462
      %2482 = vmatprep.subr.bf16.mxu0 0
      %2483 = vmatpush1.bf16.msra.mxu0 %v2461
      %2484 = vmatprep.subr.bf16.mxu0 0
      %2485 = vmatpush1.bf16.msra.mxu0 %v2460
      %2486 = vmatprep.subr.bf16.mxu0 0
      %2487 = vmatpush1.bf16.msra.mxu0 %v2459
      %2488 = vmatprep.subr.bf16.mxu0 0
      %2489 = vmatpush1.bf16.msra.mxu0 %v2458
      %2490 = vmatprep.subr.bf16.mxu0 0
      %2491 = vmatpush2.bf16.msra.mxu0 0
      %2492 = vmatprep.subr.bf16.mxu0 0
      %2493 = vmatpush2.bf16.msra.mxu0 0
      %2494 = vmatprep.subr.bf16.mxu0 0
      %2495 = vmatpush2.bf16.msra.mxu0 0
      %2496 = vmatprep.subr.bf16.mxu0 0
      %2497 = vmatpush2.bf16.msra.mxu0 0
      %2498 = vmatprep.subr.bf16.mxu0 0
      %2499 = vmatpush2.bf16.msra.mxu0 0
      %2500 = vmatprep.subr.bf16.mxu0 0
      %2501 = vmatpush2.bf16.msra.mxu0 0
      %2502 = vmatprep.subr.bf16.mxu0 0
      %2503 = vmatpush2.bf16.msra.mxu0 0
      %2504 = vmatprep.subr.bf16.mxu0 0
      %2505 = vmatpush2.bf16.msra.mxu0 0
      %2506 = vmatprep.mubr.bf16.mxu0 0
      %2507 = vmatmul.mubr.bf16.gmra.mxu0 %v2376
      %v2508 = vpop.f32.mrf.mxu0
      %v2509 = vadd.f32 0.0, %v2508
      %v2510 = vpop.f32.mrf.mxu0
      %v2511 = vpop.f32.mrf.mxu0
      %v2512 = vadd.f32 0.0, %v2511
      %v2513 = vpop.f32.mrf.mxu0
      %2514 = vmatprep.mubr.bf16.mxu0 0
      %2515 = vmatmul.mubr.bf16.gmra.mxu0 %v2377
      %v2516 = vpop.f32.mrf.mxu0
      %v2517 = vadd.f32 0.0, %v2516
      %v2518 = vpop.f32.mrf.mxu0
      %v2519 = vpop.f32.mrf.mxu0
      %v2520 = vadd.f32 0.0, %v2519
      %v2521 = vpop.f32.mrf.mxu0
      %2522 = vmatprep.mubr.bf16.mxu0 0
      %2523 = vmatmul.mubr.bf16.gmra.mxu0 %v2378
      %v2524 = vpop.f32.mrf.mxu0
      %v2525 = vadd.f32 0.0, %v2524
      %v2526 = vpop.f32.mrf.mxu0
      %v2527 = vpop.f32.mrf.mxu0
      %v2528 = vadd.f32 0.0, %v2527
      %v2529 = vpop.f32.mrf.mxu0
      %2530 = vmatprep.mubr.bf16.mxu0 0
      %2531 = vmatmul.mubr.bf16.gmra.mxu0 %v2379
      %v2532 = vpop.f32.mrf.mxu0
      %v2533 = vadd.f32 0.0, %v2532
      %v2534 = vpop.f32.mrf.mxu0
      %v2535 = vpop.f32.mrf.mxu0
      %v2536 = vadd.f32 0.0, %v2535
      %v2537 = vpop.f32.mrf.mxu0
      %2538 = vmatprep.mubr.bf16.mxu0 0
      %2539 = vmatmul.mubr.bf16.gmra.mxu0 %v2380
      %v2540 = vpop.f32.mrf.mxu0
      %v2541 = vadd.f32 0.0, %v2540
      %v2542 = vpop.f32.mrf.mxu0
      %v2543 = vpop.f32.mrf.mxu0
      %v2544 = vadd.f32 0.0, %v2543
      %v2545 = vpop.f32.mrf.mxu0
      %2546 = vmatprep.mubr.bf16.mxu0 0
      %2547 = vmatmul.mubr.bf16.gmra.mxu0 %v2381
      %v2548 = vpop.f32.mrf.mxu0
      %v2549 = vadd.f32 0.0, %v2548
      %v2550 = vpop.f32.mrf.mxu0
      %v2551 = vpop.f32.mrf.mxu0
      %v2552 = vadd.f32 0.0, %v2551
      %v2553 = vpop.f32.mrf.mxu0
      %2554 = vmatprep.mubr.bf16.mxu0 0
      %2555 = vmatmul.mubr.bf16.gmra.mxu0 %v2382
      %v2556 = vpop.f32.mrf.mxu0
      %v2557 = vadd.f32 0.0, %v2556
      %v2558 = vpop.f32.mrf.mxu0
      %v2559 = vpop.f32.mrf.mxu0
      %v2560 = vadd.f32 0.0, %v2559
      %v2561 = vpop.f32.mrf.mxu0
      %2562 = vmatprep.mubr.bf16.mxu0 0
      %2563 = vmatmul.mubr.bf16.gmra.mxu0 %v2383
      %v2564 = vpop.f32.mrf.mxu0
      %v2565 = vadd.f32 0.0, %v2564
      %v2566 = vpop.f32.mrf.mxu0
      %v2567 = vpop.f32.mrf.mxu0
      %v2568 = vadd.f32 0.0, %v2567
      %v2569 = vpop.f32.mrf.mxu0
      %2570 = vmatprep.mubr.bf16.mxu0 0
      %2571 = vmatmul.mubr.bf16.gmra.mxu0 %v2384
      %v2572 = vpop.f32.mrf.mxu0
      %v2573 = vadd.f32 0.0, %v2572
      %v2574 = vpop.f32.mrf.mxu0
      %v2575 = vpop.f32.mrf.mxu0
      %v2576 = vadd.f32 0.0, %v2575
      %v2577 = vpop.f32.mrf.mxu0
      %2578 = vmatprep.mubr.bf16.mxu0 0
      %2579 = vmatmul.mubr.bf16.gmra.mxu0 %v2385
      %v2580 = vpop.f32.mrf.mxu0
      %v2581 = vadd.f32 0.0, %v2580
      %v2582 = vpop.f32.mrf.mxu0
      %v2583 = vpop.f32.mrf.mxu0
      %v2584 = vadd.f32 0.0, %v2583
      %v2585 = vpop.f32.mrf.mxu0
      %2586 = vmatprep.mubr.bf16.mxu0 0
      %2587 = vmatmul.mubr.bf16.gmra.mxu0 %v2386
      %v2588 = vpop.f32.mrf.mxu0
      %v2589 = vadd.f32 0.0, %v2588
      %v2590 = vpop.f32.mrf.mxu0
      %v2591 = vpop.f32.mrf.mxu0
      %v2592 = vadd.f32 0.0, %v2591
      %v2593 = vpop.f32.mrf.mxu0
      %2594 = vmatprep.mubr.bf16.mxu0 0
      %2595 = vmatmul.mubr.bf16.gmra.mxu0 %v2387
      %v2596 = vpop.f32.mrf.mxu0
      %v2597 = vadd.f32 0.0, %v2596
      %v2598 = vpop.f32.mrf.mxu0
      %v2599 = vpop.f32.mrf.mxu0
      %v2600 = vadd.f32 0.0, %v2599
      %v2601 = vpop.f32.mrf.mxu0
      %2602 = vmatprep.mubr.bf16.mxu0 0
      %2603 = vmatmul.mubr.bf16.gmra.mxu0 %v2388
      %v2604 = vpop.f32.mrf.mxu0
      %v2605 = vadd.f32 0.0, %v2604
      %v2606 = vpop.f32.mrf.mxu0
      %v2607 = vpop.f32.mrf.mxu0
      %v2608 = vadd.f32 0.0, %v2607
      %v2609 = vpop.f32.mrf.mxu0
      %2610 = vmatprep.mubr.bf16.mxu0 0
      %2611 = vmatmul.mubr.bf16.gmra.mxu0 %v2389
      %v2612 = vpop.f32.mrf.mxu0
      %v2613 = vadd.f32 0.0, %v2612
      %v2614 = vpop.f32.mrf.mxu0
      %v2615 = vpop.f32.mrf.mxu0
      %v2616 = vadd.f32 0.0, %v2615
      %v2617 = vpop.f32.mrf.mxu0
      %2618 = vmatprep.mubr.bf16.mxu0 0
      %2619 = vmatmul.mubr.bf16.gmra.mxu0 %v2390
      %v2620 = vpop.f32.mrf.mxu0
      %v2621 = vadd.f32 0.0, %v2620
      %v2622 = vpop.f32.mrf.mxu0
      %v2623 = vpop.f32.mrf.mxu0
      %v2624 = vadd.f32 0.0, %v2623
      %v2625 = vpop.f32.mrf.mxu0
      %2626 = vmatprep.mubr.bf16.mxu0 0
      %2627 = vmatmul.mubr.bf16.gmra.mxu0 %v2391
      %v2628 = vpop.f32.mrf.mxu0
      %v2629 = vadd.f32 0.0, %v2628
      %v2630 = vpop.f32.mrf.mxu0
      %v2631 = vpop.f32.mrf.mxu0
      %v2632 = vadd.f32 0.0, %v2631
      %v2633 = vpop.f32.mrf.mxu0
      %2634 = vmatprep.mubr.bf16.mxu0 0
      %2635 = vmatmul.mubr.bf16.gmra.mxu0 %v2392
      %v2636 = vpop.f32.mrf.mxu0
      %v2637 = vadd.f32 0.0, %v2636
      %v2638 = vpop.f32.mrf.mxu0
      %v2639 = vpop.f32.mrf.mxu0
      %v2640 = vadd.f32 0.0, %v2639
      %v2641 = vpop.f32.mrf.mxu0
      %2642 = vmatprep.mubr.bf16.mxu0 0
      %2643 = vmatmul.mubr.bf16.gmra.mxu0 %v2393
      %v2644 = vpop.f32.mrf.mxu0
      %v2645 = vadd.f32 0.0, %v2644
      %v2646 = vpop.f32.mrf.mxu0
      %v2647 = vpop.f32.mrf.mxu0
      %v2648 = vadd.f32 0.0, %v2647
      %v2649 = vpop.f32.mrf.mxu0
      %2650 = vmatprep.mubr.bf16.mxu0 0
      %2651 = vmatmul.mubr.bf16.gmra.mxu0 %v2394
      %v2652 = vpop.f32.mrf.mxu0
      %v2653 = vadd.f32 0.0, %v2652
      %v2654 = vpop.f32.mrf.mxu0
      %v2655 = vpop.f32.mrf.mxu0
      %v2656 = vadd.f32 0.0, %v2655
      %v2657 = vpop.f32.mrf.mxu0
      %2658 = vmatprep.mubr.bf16.mxu0 0
      %2659 = vmatmul.mubr.bf16.gmra.mxu0 %v2395
      %v2660 = vpop.f32.mrf.mxu0
      %v2661 = vadd.f32 0.0, %v2660
      %v2662 = vpop.f32.mrf.mxu0
      %v2663 = vpop.f32.mrf.mxu0
      %v2664 = vadd.f32 0.0, %v2663
      %v2665 = vpop.f32.mrf.mxu0
      %2666 = vmatprep.mubr.bf16.mxu0 0
      %2667 = vmatmul.mubr.bf16.gmra.mxu0 %v2396
      %v2668 = vpop.f32.mrf.mxu0
      %v2669 = vadd.f32 0.0, %v2668
      %v2670 = vpop.f32.mrf.mxu0
      %v2671 = vpop.f32.mrf.mxu0
      %v2672 = vadd.f32 0.0, %v2671
      %v2673 = vpop.f32.mrf.mxu0
      %2674 = vmatprep.mubr.bf16.mxu0 0
      %2675 = vmatmul.mubr.bf16.gmra.mxu0 %v2397
      %v2676 = vpop.f32.mrf.mxu0
      %v2677 = vadd.f32 0.0, %v2676
      %v2678 = vpop.f32.mrf.mxu0
      %v2679 = vpop.f32.mrf.mxu0
      %v2680 = vadd.f32 0.0, %v2679
      %v2681 = vpop.f32.mrf.mxu0
      %2682 = vmatprep.mubr.bf16.mxu0 0
      %2683 = vmatmul.mubr.bf16.gmra.mxu0 %v2398
      %v2684 = vpop.f32.mrf.mxu0
      %v2685 = vadd.f32 0.0, %v2684
      %v2686 = vpop.f32.mrf.mxu0
      %v2687 = vpop.f32.mrf.mxu0
      %v2688 = vadd.f32 0.0, %v2687
      %v2689 = vpop.f32.mrf.mxu0
      %2690 = vmatprep.mubr.bf16.mxu0 0
      %2691 = vmatmul.mubr.bf16.gmra.mxu0 %v2399
      %v2692 = vpop.f32.mrf.mxu0
      %v2693 = vadd.f32 0.0, %v2692
      %v2694 = vpop.f32.mrf.mxu0
      %v2695 = vpop.f32.mrf.mxu0
      %v2696 = vadd.f32 0.0, %v2695
      %v2697 = vpop.f32.mrf.mxu0
      %2698 = vmatprep.mubr.bf16.mxu0 0
      %2699 = vmatmul.mubr.bf16.gmra.mxu0 %v2400
      %v2700 = vpop.f32.mrf.mxu0
      %v2701 = vpop.f32.mrf.mxu0
      %v2702 = vpop.f32.mrf.mxu0
      %v2703 = vpop.f32.mrf.mxu0
      %2704 = vdwg.mxu0
      %v2705 = vld [vmem:[#allocation2] sm:$0xff]
      %v2706 = vld [vmem:[#allocation2 + $0x8] sm:$0xff]
      %v2707 = vld [vmem:[#allocation2 + $0x10] sm:$0xff]
      %v2708 = vld [vmem:[#allocation2 + $0x18] sm:$0xff]
      %v2709 = vld [vmem:[#allocation2 + $0x20] sm:$0xff]
      %v2710 = vld [vmem:[#allocation2 + $0x28] sm:$0xff]
      %v2711 = vld [vmem:[#allocation2 + $0x30] sm:$0xff]
      %v2712 = vld [vmem:[#allocation2 + $0x38] sm:$0xff]
      %v2713 = vld [vmem:[#allocation2 + $0x40] sm:$0xff]
      %v2714 = vld [vmem:[#allocation2 + $0x48] sm:$0xff]
      %v2715 = vld [vmem:[#allocation2 + $0x50] sm:$0xff]
      %v2716 = vld [vmem:[#allocation2 + $0x58] sm:$0xff]
      %v2717 = vld [vmem:[#allocation2 + $0x60] sm:$0xff]
      %v2718 = vld [vmem:[#allocation2 + $0x68] sm:$0xff]
      %v2719 = vld [vmem:[#allocation2 + $0x70] sm:$0xff]
      %v2720 = vld [vmem:[#allocation2 + $0x78] sm:$0xff]
      %v2721 = vld [vmem:[#allocation2 + $0x80] sm:$0xff]
      %v2722 = vld [vmem:[#allocation2 + $0x88] sm:$0xff]
      %v2723 = vld [vmem:[#allocation2 + $0x90] sm:$0xff]
      %v2724 = vld [vmem:[#allocation2 + $0x98] sm:$0xff]
      %v2725 = vld [vmem:[#allocation2 + $0xa0] sm:$0xff]
      %v2726 = vld [vmem:[#allocation2 + $0xa8] sm:$0xff]
      %v2727 = vld [vmem:[#allocation2 + $0xb0] sm:$0xff]
      %v2728 = vld [vmem:[#allocation2 + $0xb8] sm:$0xff]
      %v2729 = vld [vmem:[#allocation2 + $0xc0] sm:$0xff]
      %v2730 = vld [vmem:[#allocation2 + $0xc8] sm:$0xff]
      %v2731 = vld [vmem:[#allocation2 + $0xd0] sm:$0xff]
      %v2732 = vld [vmem:[#allocation2 + $0xd8] sm:$0xff]
      %v2733 = vld [vmem:[#allocation2 + $0xe0] sm:$0xff]
      %v2734 = vld [vmem:[#allocation2 + $0xe8] sm:$0xff]
      %v2735 = vld [vmem:[#allocation2 + $0xf0] sm:$0xff]
      %v2736 = vld [vmem:[#allocation2 + $0xf8] sm:$0xff]
      %v2737 = vld [vmem:[#allocation2 + $0x100] sm:$0xff]
      %v2738 = vld [vmem:[#allocation2 + $0x108] sm:$0xff]
      %v2739 = vld [vmem:[#allocation2 + $0x110] sm:$0xff]
      %v2740 = vld [vmem:[#allocation2 + $0x118] sm:$0xff]
      %v2741 = vld [vmem:[#allocation2 + $0x120] sm:$0xff]
      %v2742 = vld [vmem:[#allocation2 + $0x128] sm:$0xff]
      %v2743 = vld [vmem:[#allocation2 + $0x130] sm:$0xff]
      %v2744 = vld [vmem:[#allocation2 + $0x138] sm:$0xff]
      %v2745 = vld [vmem:[#allocation2 + $0x140] sm:$0xff]
      %v2746 = vld [vmem:[#allocation2 + $0x148] sm:$0xff]
      %v2747 = vld [vmem:[#allocation2 + $0x150] sm:$0xff]
      %v2748 = vld [vmem:[#allocation2 + $0x158] sm:$0xff]
      %v2749 = vld [vmem:[#allocation2 + $0x160] sm:$0xff]
      %v2750 = vld [vmem:[#allocation2 + $0x168] sm:$0xff]
      %v2751 = vld [vmem:[#allocation2 + $0x170] sm:$0xff]
      %v2752 = vld [vmem:[#allocation2 + $0x178] sm:$0xff]
      %v2753 = vadd.f32 %v2705, %v2509
      %v2754 = vadd.f32 %v2706, %v2512
      %v2755 = vadd.f32 %v2707, %v2517
      %v2756 = vadd.f32 %v2708, %v2520
      %v2757 = vadd.f32 %v2709, %v2525
      %v2758 = vadd.f32 %v2710, %v2528
      %v2759 = vadd.f32 %v2711, %v2533
      %v2760 = vadd.f32 %v2712, %v2536
      %v2761 = vadd.f32 %v2713, %v2541
      %v2762 = vadd.f32 %v2714, %v2544
      %v2763 = vadd.f32 %v2715, %v2549
      %v2764 = vadd.f32 %v2716, %v2552
      %v2765 = vadd.f32 %v2717, %v2557
      %v2766 = vadd.f32 %v2718, %v2560
      %v2767 = vadd.f32 %v2719, %v2565
      %v2768 = vadd.f32 %v2720, %v2568
      %v2769 = vadd.f32 %v2721, %v2573
      %v2770 = vadd.f32 %v2722, %v2576
      %v2771 = vadd.f32 %v2723, %v2581
      %v2772 = vadd.f32 %v2724, %v2584
      %v2773 = vadd.f32 %v2725, %v2589
      %v2774 = vadd.f32 %v2726, %v2592
      %v2775 = vadd.f32 %v2727, %v2597
      %v2776 = vadd.f32 %v2728, %v2600
      %v2777 = vadd.f32 %v2729, %v2605
      %v2778 = vadd.f32 %v2730, %v2608
      %v2779 = vadd.f32 %v2731, %v2613
      %v2780 = vadd.f32 %v2732, %v2616
      %v2781 = vadd.f32 %v2733, %v2621
      %v2782 = vadd.f32 %v2734, %v2624
      %v2783 = vadd.f32 %v2735, %v2629
      %v2784 = vadd.f32 %v2736, %v2632
      %v2785 = vadd.f32 %v2737, %v2637
      %v2786 = vadd.f32 %v2738, %v2640
      %v2787 = vadd.f32 %v2739, %v2645
      %v2788 = vadd.f32 %v2740, %v2648
      %v2789 = vadd.f32 %v2741, %v2653
      %v2790 = vadd.f32 %v2742, %v2656
      %v2791 = vadd.f32 %v2743, %v2661
      %v2792 = vadd.f32 %v2744, %v2664
      %v2793 = vadd.f32 %v2745, %v2669
      %v2794 = vadd.f32 %v2746, %v2672
      %v2795 = vadd.f32 %v2747, %v2677
      %v2796 = vadd.f32 %v2748, %v2680
      %v2797 = vadd.f32 %v2749, %v2685
      %v2798 = vadd.f32 %v2750, %v2688
      %v2799 = vadd.f32 %v2751, %v2693
      %v2800 = vadd.f32 %v2752, %v2696
      %2801 = vst [vmem:[#allocation2] sm:$0xff] %v2753
      %2802 = vst [vmem:[#allocation2 + $0x8] sm:$0xff] %v2754
      %2803 = vst [vmem:[#allocation2 + $0x10] sm:$0xff] %v2755
      %2804 = vst [vmem:[#allocation2 + $0x18] sm:$0xff] %v2756
      %2805 = vst [vmem:[#allocation2 + $0x20] sm:$0xff] %v2757
      %2806 = vst [vmem:[#allocation2 + $0x28] sm:$0xff] %v2758
      %2807 = vst [vmem:[#allocation2 + $0x30] sm:$0xff] %v2759
      %2808 = vst [vmem:[#allocation2 + $0x38] sm:$0xff] %v2760
      %2809 = vst [vmem:[#allocation2 + $0x40] sm:$0xff] %v2761
      %2810 = vst [vmem:[#allocation2 + $0x48] sm:$0xff] %v2762
      %2811 = vst [vmem:[#allocation2 + $0x50] sm:$0xff] %v2763
      %2812 = vst [vmem:[#allocation2 + $0x58] sm:$0xff] %v2764
      %2813 = vst [vmem:[#allocation2 + $0x60] sm:$0xff] %v2765
      %2814 = vst [vmem:[#allocation2 + $0x68] sm:$0xff] %v2766
      %2815 = vst [vmem:[#allocation2 + $0x70] sm:$0xff] %v2767
      %2816 = vst [vmem:[#allocation2 + $0x78] sm:$0xff] %v2768
      %2817 = vst [vmem:[#allocation2 + $0x80] sm:$0xff] %v2769
      %2818 = vst [vmem:[#allocation2 + $0x88] sm:$0xff] %v2770
      %2819 = vst [vmem:[#allocation2 + $0x90] sm:$0xff] %v2771
      %2820 = vst [vmem:[#allocation2 + $0x98] sm:$0xff] %v2772
      %2821 = vst [vmem:[#allocation2 + $0xa0] sm:$0xff] %v2773
      %2822 = vst [vmem:[#allocation2 + $0xa8] sm:$0xff] %v2774
      %2823 = vst [vmem:[#allocation2 + $0xb0] sm:$0xff] %v2775
      %2824 = vst [vmem:[#allocation2 + $0xb8] sm:$0xff] %v2776
      %2825 = vst [vmem:[#allocation2 + $0xc0] sm:$0xff] %v2777
      %2826 = vst [vmem:[#allocation2 + $0xc8] sm:$0xff] %v2778
      %2827 = vst [vmem:[#allocation2 + $0xd0] sm:$0xff] %v2779
      %2828 = vst [vmem:[#allocation2 + $0xd8] sm:$0xff] %v2780
      %2829 = vst [vmem:[#allocation2 + $0xe0] sm:$0xff] %v2781
      %2830 = vst [vmem:[#allocation2 + $0xe8] sm:$0xff] %v2782
      %2831 = vst [vmem:[#allocation2 + $0xf0] sm:$0xff] %v2783
      %2832 = vst [vmem:[#allocation2 + $0xf8] sm:$0xff] %v2784
      %2833 = vst [vmem:[#allocation2 + $0x100] sm:$0xff] %v2785
      %2834 = vst [vmem:[#allocation2 + $0x108] sm:$0xff] %v2786
      %2835 = vst [vmem:[#allocation2 + $0x110] sm:$0xff] %v2787
      %2836 = vst [vmem:[#allocation2 + $0x118] sm:$0xff] %v2788
      %2837 = vst [vmem:[#allocation2 + $0x120] sm:$0xff] %v2789
      %2838 = vst [vmem:[#allocation2 + $0x128] sm:$0xff] %v2790
      %2839 = vst [vmem:[#allocation2 + $0x130] sm:$0xff] %v2791
      %2840 = vst [vmem:[#allocation2 + $0x138] sm:$0xff] %v2792
      %2841 = vst [vmem:[#allocation2 + $0x140] sm:$0xff] %v2793
      %2842 = vst [vmem:[#allocation2 + $0x148] sm:$0xff] %v2794
      %2843 = vst [vmem:[#allocation2 + $0x150] sm:$0xff] %v2795
      %2844 = vst [vmem:[#allocation2 + $0x158] sm:$0xff] %v2796
      %2845 = vst [vmem:[#allocation2 + $0x160] sm:$0xff] %v2797
      %2846 = vst [vmem:[#allocation2 + $0x168] sm:$0xff] %v2798
      %2847 = vst [vmem:[#allocation2 + $0x170] sm:$0xff] %v2799
      %2848 = vst [vmem:[#allocation2 + $0x178] sm:$0xff] %v2800
      %s2849 = sadd.s32 %s343, 64
      %s2850 = smul.addr %s2849, 4
      %s2851 = scalar_lea.vmem %s228, %s2850
      %v2852 = vld [vmem:[%s2851] sm:$0xf]
      %v2853 = vld [vmem:[%s2851 + $0x4] sm:$0xf]
      %v2854 = vld [vmem:[%s2851 + $0x8] sm:$0xf]
      %v2855 = vld [vmem:[%s2851 + $0xc] sm:$0xf]
      %v2856 = vld [vmem:[%s2851 + $0x10] sm:$0xf]
      %v2857 = vld [vmem:[%s2851 + $0x14] sm:$0xf]
      %v2858 = vld [vmem:[%s2851 + $0x18] sm:$0xf]
      %v2859 = vld [vmem:[%s2851 + $0x1c] sm:$0xf]
      %v2860 = vld [vmem:[%s2851 + $0x20] sm:$0xf]
      %v2861 = vld [vmem:[%s2851 + $0x24] sm:$0xf]
      %v2862 = vld [vmem:[%s2851 + $0x28] sm:$0xf]
      %v2863 = vld [vmem:[%s2851 + $0x2c] sm:$0xf]
      %v2864 = vld [vmem:[%s2851 + $0x30] sm:$0xf]
      %v2865 = vld [vmem:[%s2851 + $0x34] sm:$0xf]
      %v2866 = vld [vmem:[%s2851 + $0x38] sm:$0xf]
      %v2867 = vld [vmem:[%s2851 + $0x3c] sm:$0xf]
      %v2884 = vunpack.c.l.b16 %v2852
      %v2885 = vunpack.c.l.b16 %v2853
      %v2886 = vunpack.c.l.b16 %v2854
      %v2887 = vunpack.c.l.b16 %v2855
      %v2888 = vunpack.c.l.b16 %v2856
      %v2889 = vunpack.c.l.b16 %v2857
      %v2890 = vunpack.c.l.b16 %v2858
      %v2891 = vunpack.c.l.b16 %v2859
      %v2892 = vunpack.c.l.b16 %v2860
      %v2893 = vunpack.c.l.b16 %v2861
      %v2894 = vunpack.c.l.b16 %v2862
      %v2895 = vunpack.c.l.b16 %v2863
      %v2896 = vunpack.c.l.b16 %v2864
      %v2897 = vunpack.c.l.b16 %v2865
      %v2898 = vunpack.c.l.b16 %v2866
      %v2899 = vunpack.c.l.b16 %v2867
      %v2900 = vpack.c.b16 %v2885, %v2884
      %v2901 = vpack.c.b16 %v2887, %v2886
      %v2902 = vpack.c.b16 %v2889, %v2888
      %v2903 = vpack.c.b16 %v2891, %v2890
      %v2904 = vpack.c.b16 %v2893, %v2892
      %v2905 = vpack.c.b16 %v2895, %v2894
      %v2906 = vpack.c.b16 %v2897, %v2896
      %v2907 = vpack.c.b16 %v2899, %v2898
      %2916 = vmatprep.subr.bf16.mxu0 0
      %2917 = vmatpush1.bf16.msra.mxu0 %v2907
      %2918 = vmatprep.subr.bf16.mxu0 0
      %2919 = vmatpush1.bf16.msra.mxu0 %v2906
      %2920 = vmatprep.subr.bf16.mxu0 0
      %2921 = vmatpush1.bf16.msra.mxu0 %v2905
      %2922 = vmatprep.subr.bf16.mxu0 0
      %2923 = vmatpush1.bf16.msra.mxu0 %v2904
      %2924 = vmatprep.subr.bf16.mxu0 0
      %2925 = vmatpush1.bf16.msra.mxu0 %v2903
      %2926 = vmatprep.subr.bf16.mxu0 0
      %2927 = vmatpush1.bf16.msra.mxu0 %v2902
      %2928 = vmatprep.subr.bf16.mxu0 0
      %2929 = vmatpush1.bf16.msra.mxu0 %v2901
      %2930 = vmatprep.subr.bf16.mxu0 0
      %2931 = vmatpush1.bf16.msra.mxu0 %v2900
      %2932 = vmatprep.subr.bf16.mxu0 0
      %2933 = vmatpush2.bf16.msra.mxu0 0
      %2934 = vmatprep.subr.bf16.mxu0 0
      %2935 = vmatpush2.bf16.msra.mxu0 0
      %2936 = vmatprep.subr.bf16.mxu0 0
      %2937 = vmatpush2.bf16.msra.mxu0 0
      %2938 = vmatprep.subr.bf16.mxu0 0
      %2939 = vmatpush2.bf16.msra.mxu0 0
      %2940 = vmatprep.subr.bf16.mxu0 0
      %2941 = vmatpush2.bf16.msra.mxu0 0
      %2942 = vmatprep.subr.bf16.mxu0 0
      %2943 = vmatpush2.bf16.msra.mxu0 0
      %2944 = vmatprep.subr.bf16.mxu0 0
      %2945 = vmatpush2.bf16.msra.mxu0 0
      %2946 = vmatprep.subr.bf16.mxu0 0
      %2947 = vmatpush2.bf16.msra.mxu0 0
      %2948 = vmatprep.mubr.bf16.mxu0 0
      %2949 = vmatmul.mubr.bf16.gmra.mxu0 %v2376
      %v2950 = vpop.f32.mrf.mxu0
      %v2951 = vadd.f32 0.0, %v2950
      %v2952 = vpop.f32.mrf.mxu0
      %v2953 = vpop.f32.mrf.mxu0
      %v2954 = vadd.f32 0.0, %v2953
      %v2955 = vpop.f32.mrf.mxu0
      %2956 = vmatprep.mubr.bf16.mxu0 0
      %2957 = vmatmul.mubr.bf16.gmra.mxu0 %v2377
      %v2958 = vpop.f32.mrf.mxu0
      %v2959 = vadd.f32 0.0, %v2958
      %v2960 = vpop.f32.mrf.mxu0
      %v2961 = vpop.f32.mrf.mxu0
      %v2962 = vadd.f32 0.0, %v2961
      %v2963 = vpop.f32.mrf.mxu0
      %2964 = vmatprep.mubr.bf16.mxu0 0
      %2965 = vmatmul.mubr.bf16.gmra.mxu0 %v2378
      %v2966 = vpop.f32.mrf.mxu0
      %v2967 = vadd.f32 0.0, %v2966
      %v2968 = vpop.f32.mrf.mxu0
      %v2969 = vpop.f32.mrf.mxu0
      %v2970 = vadd.f32 0.0, %v2969
      %v2971 = vpop.f32.mrf.mxu0
      %2972 = vmatprep.mubr.bf16.mxu0 0
      %2973 = vmatmul.mubr.bf16.gmra.mxu0 %v2379
      %v2974 = vpop.f32.mrf.mxu0
      %v2975 = vadd.f32 0.0, %v2974
      %v2976 = vpop.f32.mrf.mxu0
      %v2977 = vpop.f32.mrf.mxu0
      %v2978 = vadd.f32 0.0, %v2977
      %v2979 = vpop.f32.mrf.mxu0
      %2980 = vmatprep.mubr.bf16.mxu0 0
      %2981 = vmatmul.mubr.bf16.gmra.mxu0 %v2380
      %v2982 = vpop.f32.mrf.mxu0
      %v2983 = vadd.f32 0.0, %v2982
      %v2984 = vpop.f32.mrf.mxu0
      %v2985 = vpop.f32.mrf.mxu0
      %v2986 = vadd.f32 0.0, %v2985
      %v2987 = vpop.f32.mrf.mxu0
      %2988 = vmatprep.mubr.bf16.mxu0 0
      %2989 = vmatmul.mubr.bf16.gmra.mxu0 %v2381
      %v2990 = vpop.f32.mrf.mxu0
      %v2991 = vadd.f32 0.0, %v2990
      %v2992 = vpop.f32.mrf.mxu0
      %v2993 = vpop.f32.mrf.mxu0
      %v2994 = vadd.f32 0.0, %v2993
      %v2995 = vpop.f32.mrf.mxu0
      %2996 = vmatprep.mubr.bf16.mxu0 0
      %2997 = vmatmul.mubr.bf16.gmra.mxu0 %v2382
      %v2998 = vpop.f32.mrf.mxu0
      %v2999 = vadd.f32 0.0, %v2998
      %v3000 = vpop.f32.mrf.mxu0
      %v3001 = vpop.f32.mrf.mxu0
      %v3002 = vadd.f32 0.0, %v3001
      %v3003 = vpop.f32.mrf.mxu0
      %3004 = vmatprep.mubr.bf16.mxu0 0
      %3005 = vmatmul.mubr.bf16.gmra.mxu0 %v2383
      %v3006 = vpop.f32.mrf.mxu0
      %v3007 = vadd.f32 0.0, %v3006
      %v3008 = vpop.f32.mrf.mxu0
      %v3009 = vpop.f32.mrf.mxu0
      %v3010 = vadd.f32 0.0, %v3009
      %v3011 = vpop.f32.mrf.mxu0
      %3012 = vmatprep.mubr.bf16.mxu0 0
      %3013 = vmatmul.mubr.bf16.gmra.mxu0 %v2384
      %v3014 = vpop.f32.mrf.mxu0
      %v3015 = vadd.f32 0.0, %v3014
      %v3016 = vpop.f32.mrf.mxu0
      %v3017 = vpop.f32.mrf.mxu0
      %v3018 = vadd.f32 0.0, %v3017
      %v3019 = vpop.f32.mrf.mxu0
      %3020 = vmatprep.mubr.bf16.mxu0 0
      %3021 = vmatmul.mubr.bf16.gmra.mxu0 %v2385
      %v3022 = vpop.f32.mrf.mxu0
      %v3023 = vadd.f32 0.0, %v3022
      %v3024 = vpop.f32.mrf.mxu0
      %v3025 = vpop.f32.mrf.mxu0
      %v3026 = vadd.f32 0.0, %v3025
      %v3027 = vpop.f32.mrf.mxu0
      %3028 = vmatprep.mubr.bf16.mxu0 0
      %3029 = vmatmul.mubr.bf16.gmra.mxu0 %v2386
      %v3030 = vpop.f32.mrf.mxu0
      %v3031 = vadd.f32 0.0, %v3030
      %v3032 = vpop.f32.mrf.mxu0
      %v3033 = vpop.f32.mrf.mxu0
      %v3034 = vadd.f32 0.0, %v3033
      %v3035 = vpop.f32.mrf.mxu0
      %3036 = vmatprep.mubr.bf16.mxu0 0
      %3037 = vmatmul.mubr.bf16.gmra.mxu0 %v2387
      %v3038 = vpop.f32.mrf.mxu0
      %v3039 = vadd.f32 0.0, %v3038
      %v3040 = vpop.f32.mrf.mxu0
      %v3041 = vpop.f32.mrf.mxu0
      %v3042 = vadd.f32 0.0, %v3041
      %v3043 = vpop.f32.mrf.mxu0
      %3044 = vmatprep.mubr.bf16.mxu0 0
      %3045 = vmatmul.mubr.bf16.gmra.mxu0 %v2388
      %v3046 = vpop.f32.mrf.mxu0
      %v3047 = vadd.f32 0.0, %v3046
      %v3048 = vpop.f32.mrf.mxu0
      %v3049 = vpop.f32.mrf.mxu0
      %v3050 = vadd.f32 0.0, %v3049
      %v3051 = vpop.f32.mrf.mxu0
      %3052 = vmatprep.mubr.bf16.mxu0 0
      %3053 = vmatmul.mubr.bf16.gmra.mxu0 %v2389
      %v3054 = vpop.f32.mrf.mxu0
      %v3055 = vadd.f32 0.0, %v3054
      %v3056 = vpop.f32.mrf.mxu0
      %v3057 = vpop.f32.mrf.mxu0
      %v3058 = vadd.f32 0.0, %v3057
      %v3059 = vpop.f32.mrf.mxu0
      %3060 = vmatprep.mubr.bf16.mxu0 0
      %3061 = vmatmul.mubr.bf16.gmra.mxu0 %v2390
      %v3062 = vpop.f32.mrf.mxu0
      %v3063 = vadd.f32 0.0, %v3062
      %v3064 = vpop.f32.mrf.mxu0
      %v3065 = vpop.f32.mrf.mxu0
      %v3066 = vadd.f32 0.0, %v3065
      %v3067 = vpop.f32.mrf.mxu0
      %3068 = vmatprep.mubr.bf16.mxu0 0
      %3069 = vmatmul.mubr.bf16.gmra.mxu0 %v2391
      %v3070 = vpop.f32.mrf.mxu0
      %v3071 = vadd.f32 0.0, %v3070
      %v3072 = vpop.f32.mrf.mxu0
      %v3073 = vpop.f32.mrf.mxu0
      %v3074 = vadd.f32 0.0, %v3073
      %v3075 = vpop.f32.mrf.mxu0
      %3076 = vmatprep.mubr.bf16.mxu0 0
      %3077 = vmatmul.mubr.bf16.gmra.mxu0 %v2392
      %v3078 = vpop.f32.mrf.mxu0
      %v3079 = vadd.f32 0.0, %v3078
      %v3080 = vpop.f32.mrf.mxu0
      %v3081 = vpop.f32.mrf.mxu0
      %v3082 = vadd.f32 0.0, %v3081
      %v3083 = vpop.f32.mrf.mxu0
      %3084 = vmatprep.mubr.bf16.mxu0 0
      %3085 = vmatmul.mubr.bf16.gmra.mxu0 %v2393
      %v3086 = vpop.f32.mrf.mxu0
      %v3087 = vadd.f32 0.0, %v3086
      %v3088 = vpop.f32.mrf.mxu0
      %v3089 = vpop.f32.mrf.mxu0
      %v3090 = vadd.f32 0.0, %v3089
      %v3091 = vpop.f32.mrf.mxu0
      %3092 = vmatprep.mubr.bf16.mxu0 0
      %3093 = vmatmul.mubr.bf16.gmra.mxu0 %v2394
      %v3094 = vpop.f32.mrf.mxu0
      %v3095 = vadd.f32 0.0, %v3094
      %v3096 = vpop.f32.mrf.mxu0
      %v3097 = vpop.f32.mrf.mxu0
      %v3098 = vadd.f32 0.0, %v3097
      %v3099 = vpop.f32.mrf.mxu0
      %3100 = vmatprep.mubr.bf16.mxu0 0
      %3101 = vmatmul.mubr.bf16.gmra.mxu0 %v2395
      %v3102 = vpop.f32.mrf.mxu0
      %v3103 = vadd.f32 0.0, %v3102
      %v3104 = vpop.f32.mrf.mxu0
      %v3105 = vpop.f32.mrf.mxu0
      %v3106 = vadd.f32 0.0, %v3105
      %v3107 = vpop.f32.mrf.mxu0
      %3108 = vmatprep.mubr.bf16.mxu0 0
      %3109 = vmatmul.mubr.bf16.gmra.mxu0 %v2396
      %v3110 = vpop.f32.mrf.mxu0
      %v3111 = vadd.f32 0.0, %v3110
      %v3112 = vpop.f32.mrf.mxu0
      %v3113 = vpop.f32.mrf.mxu0
      %v3114 = vadd.f32 0.0, %v3113
      %v3115 = vpop.f32.mrf.mxu0
      %3116 = vmatprep.mubr.bf16.mxu0 0
      %3117 = vmatmul.mubr.bf16.gmra.mxu0 %v2397
      %v3118 = vpop.f32.mrf.mxu0
      %v3119 = vadd.f32 0.0, %v3118
      %v3120 = vpop.f32.mrf.mxu0
      %v3121 = vpop.f32.mrf.mxu0
      %v3122 = vadd.f32 0.0, %v3121
      %v3123 = vpop.f32.mrf.mxu0
      %3124 = vmatprep.mubr.bf16.mxu0 0
      %3125 = vmatmul.mubr.bf16.gmra.mxu0 %v2398
      %v3126 = vpop.f32.mrf.mxu0
      %v3127 = vadd.f32 0.0, %v3126
      %v3128 = vpop.f32.mrf.mxu0
      %v3129 = vpop.f32.mrf.mxu0
      %v3130 = vadd.f32 0.0, %v3129
      %v3131 = vpop.f32.mrf.mxu0
      %3132 = vmatprep.mubr.bf16.mxu0 0
      %3133 = vmatmul.mubr.bf16.gmra.mxu0 %v2399
      %v3134 = vpop.f32.mrf.mxu0
      %v3135 = vadd.f32 0.0, %v3134
      %v3136 = vpop.f32.mrf.mxu0
      %v3137 = vpop.f32.mrf.mxu0
      %v3138 = vadd.f32 0.0, %v3137
      %v3139 = vpop.f32.mrf.mxu0
      %3140 = vmatprep.mubr.bf16.mxu0 0
      %3141 = vmatmul.mubr.bf16.gmra.mxu0 %v2400
      %v3142 = vpop.f32.mrf.mxu0
      %v3143 = vadd.f32 0.0, %v3142
      %v3144 = vpop.f32.mrf.mxu0
      %v3145 = vpop.f32.mrf.mxu0
      %v3146 = vpop.f32.mrf.mxu0
      %3147 = vdwg.mxu0
      %v3148 = vld [vmem:[#allocation2] sm:$0xff]
      %v3149 = vld [vmem:[#allocation2 + $0x8] sm:$0xff]
      %v3150 = vld [vmem:[#allocation2 + $0x10] sm:$0xff]
      %v3151 = vld [vmem:[#allocation2 + $0x18] sm:$0xff]
      %v3152 = vld [vmem:[#allocation2 + $0x20] sm:$0xff]
      %v3153 = vld [vmem:[#allocation2 + $0x28] sm:$0xff]
      %v3154 = vld [vmem:[#allocation2 + $0x30] sm:$0xff]
      %v3155 = vld [vmem:[#allocation2 + $0x38] sm:$0xff]
      %v3156 = vld [vmem:[#allocation2 + $0x40] sm:$0xff]
      %v3157 = vld [vmem:[#allocation2 + $0x48] sm:$0xff]
      %v3158 = vld [vmem:[#allocation2 + $0x50] sm:$0xff]
      %v3159 = vld [vmem:[#allocation2 + $0x58] sm:$0xff]
      %v3160 = vld [vmem:[#allocation2 + $0x60] sm:$0xff]
      %v3161 = vld [vmem:[#allocation2 + $0x68] sm:$0xff]
      %v3162 = vld [vmem:[#allocation2 + $0x70] sm:$0xff]
      %v3163 = vld [vmem:[#allocation2 + $0x78] sm:$0xff]
      %v3164 = vld [vmem:[#allocation2 + $0x80] sm:$0xff]
      %v3165 = vld [vmem:[#allocation2 + $0x88] sm:$0xff]
      %v3166 = vld [vmem:[#allocation2 + $0x90] sm:$0xff]
      %v3167 = vld [vmem:[#allocation2 + $0x98] sm:$0xff]
      %v3168 = vld [vmem:[#allocation2 + $0xa0] sm:$0xff]
      %v3169 = vld [vmem:[#allocation2 + $0xa8] sm:$0xff]
      %v3170 = vld [vmem:[#allocation2 + $0xb0] sm:$0xff]
      %v3171 = vld [vmem:[#allocation2 + $0xb8] sm:$0xff]
      %v3172 = vld [vmem:[#allocation2 + $0xc0] sm:$0xff]
      %v3173 = vld [vmem:[#allocation2 + $0xc8] sm:$0xff]
      %v3174 = vld [vmem:[#allocation2 + $0xd0] sm:$0xff]
      %v3175 = vld [vmem:[#allocation2 + $0xd8] sm:$0xff]
      %v3176 = vld [vmem:[#allocation2 + $0xe0] sm:$0xff]
      %v3177 = vld [vmem:[#allocation2 + $0xe8] sm:$0xff]
      %v3178 = vld [vmem:[#allocation2 + $0xf0] sm:$0xff]
      %v3179 = vld [vmem:[#allocation2 + $0xf8] sm:$0xff]
      %v3180 = vld [vmem:[#allocation2 + $0x100] sm:$0xff]
      %v3181 = vld [vmem:[#allocation2 + $0x108] sm:$0xff]
      %v3182 = vld [vmem:[#allocation2 + $0x110] sm:$0xff]
      %v3183 = vld [vmem:[#allocation2 + $0x118] sm:$0xff]
      %v3184 = vld [vmem:[#allocation2 + $0x120] sm:$0xff]
      %v3185 = vld [vmem:[#allocation2 + $0x128] sm:$0xff]
      %v3186 = vld [vmem:[#allocation2 + $0x130] sm:$0xff]
      %v3187 = vld [vmem:[#allocation2 + $0x138] sm:$0xff]
      %v3188 = vld [vmem:[#allocation2 + $0x140] sm:$0xff]
      %v3189 = vld [vmem:[#allocation2 + $0x148] sm:$0xff]
      %v3190 = vld [vmem:[#allocation2 + $0x150] sm:$0xff]
      %v3191 = vld [vmem:[#allocation2 + $0x158] sm:$0xff]
      %v3192 = vld [vmem:[#allocation2 + $0x160] sm:$0xff]
      %v3193 = vld [vmem:[#allocation2 + $0x168] sm:$0xff]
      %v3194 = vld [vmem:[#allocation2 + $0x170] sm:$0xff]
      %v3195 = vld [vmem:[#allocation2 + $0x178] sm:$0xff]
      %v3245 = vrot.slane %v2951, 2
      %v3246 = vrot.slane %v2954, 2
      %v3247 = vsel %vm1330, %v3245, %v3246
      %v3248 = vrot.slane %v2959, 2
      %v3249 = vsel %vm1330, %v3246, %v3248
      %v3250 = vrot.slane %v2962, 2
      %v3251 = vsel %vm1330, %v3248, %v3250
      %v3252 = vrot.slane %v2967, 2
      %v3253 = vsel %vm1330, %v3250, %v3252
      %v3254 = vrot.slane %v2970, 2
      %v3255 = vsel %vm1330, %v3252, %v3254
      %v3256 = vrot.slane %v2975, 2
      %v3257 = vsel %vm1330, %v3254, %v3256
      %v3258 = vrot.slane %v2978, 2
      %v3259 = vsel %vm1330, %v3256, %v3258
      %v3260 = vrot.slane %v2983, 2
      %v3261 = vsel %vm1330, %v3258, %v3260
      %v3262 = vrot.slane %v2986, 2
      %v3263 = vsel %vm1330, %v3260, %v3262
      %v3264 = vrot.slane %v2991, 2
      %v3265 = vsel %vm1330, %v3262, %v3264
      %v3266 = vrot.slane %v2994, 2
      %v3267 = vsel %vm1330, %v3264, %v3266
      %v3268 = vrot.slane %v2999, 2
      %v3269 = vsel %vm1330, %v3266, %v3268
      %v3270 = vrot.slane %v3002, 2
      %v3271 = vsel %vm1330, %v3268, %v3270
      %v3272 = vrot.slane %v3007, 2
      %v3273 = vsel %vm1330, %v3270, %v3272
      %v3274 = vrot.slane %v3010, 2
      %v3275 = vsel %vm1330, %v3272, %v3274
      %v3276 = vrot.slane %v3015, 2
      %v3277 = vsel %vm1330, %v3274, %v3276
      %v3278 = vrot.slane %v3018, 2
      %v3279 = vsel %vm1330, %v3276, %v3278
      %v3280 = vrot.slane %v3023, 2
      %v3281 = vsel %vm1330, %v3278, %v3280
      %v3282 = vrot.slane %v3026, 2
      %v3283 = vsel %vm1330, %v3280, %v3282
      %v3284 = vrot.slane %v3031, 2
      %v3285 = vsel %vm1330, %v3282, %v3284
      %v3286 = vrot.slane %v3034, 2
      %v3287 = vsel %vm1330, %v3284, %v3286
      %v3288 = vrot.slane %v3039, 2
      %v3289 = vsel %vm1330, %v3286, %v3288
      %v3290 = vrot.slane %v3042, 2
      %v3291 = vsel %vm1330, %v3288, %v3290
      %v3292 = vrot.slane %v3047, 2
      %v3293 = vsel %vm1330, %v3290, %v3292
      %v3294 = vrot.slane %v3050, 2
      %v3295 = vsel %vm1330, %v3292, %v3294
      %v3296 = vrot.slane %v3055, 2
      %v3297 = vsel %vm1330, %v3294, %v3296
      %v3298 = vrot.slane %v3058, 2
      %v3299 = vsel %vm1330, %v3296, %v3298
      %v3300 = vrot.slane %v3063, 2
      %v3301 = vsel %vm1330, %v3298, %v3300
      %v3302 = vrot.slane %v3066, 2
      %v3303 = vsel %vm1330, %v3300, %v3302
      %v3304 = vrot.slane %v3071, 2
      %v3305 = vsel %vm1330, %v3302, %v3304
      %v3306 = vrot.slane %v3074, 2
      %v3307 = vsel %vm1330, %v3304, %v3306
      %v3308 = vrot.slane %v3079, 2
      %v3309 = vsel %vm1330, %v3306, %v3308
      %v3310 = vrot.slane %v3082, 2
      %v3311 = vsel %vm1330, %v3308, %v3310
      %v3312 = vrot.slane %v3087, 2
      %v3313 = vsel %vm1330, %v3310, %v3312
      %v3314 = vrot.slane %v3090, 2
      %v3315 = vsel %vm1330, %v3312, %v3314
      %v3316 = vrot.slane %v3095, 2
      %v3317 = vsel %vm1330, %v3314, %v3316
      %v3318 = vrot.slane %v3098, 2
      %v3319 = vsel %vm1330, %v3316, %v3318
      %v3320 = vrot.slane %v3103, 2
      %v3321 = vsel %vm1330, %v3318, %v3320
      %v3322 = vrot.slane %v3106, 2
      %v3323 = vsel %vm1330, %v3320, %v3322
      %v3324 = vrot.slane %v3111, 2
      %v3325 = vsel %vm1330, %v3322, %v3324
      %v3326 = vrot.slane %v3114, 2
      %v3327 = vsel %vm1330, %v3324, %v3326
      %v3328 = vrot.slane %v3119, 2
      %v3329 = vsel %vm1330, %v3326, %v3328
      %v3330 = vrot.slane %v3122, 2
      %v3331 = vsel %vm1330, %v3328, %v3330
      %v3332 = vrot.slane %v3127, 2
      %v3333 = vsel %vm1330, %v3330, %v3332
      %v3334 = vrot.slane %v3130, 2
      %v3335 = vsel %vm1330, %v3332, %v3334
      %v3336 = vrot.slane %v3135, 2
      %v3337 = vsel %vm1330, %v3334, %v3336
      %v3338 = vrot.slane %v3138, 2
      %v3339 = vsel %vm1330, %v3336, %v3338
      %v3340 = vrot.slane %v3143, 2
      %v3341 = vsel %vm1330, %v3338, %v3340
      %v3390 = vadd.f32 %v3148, %v3247
      %v3391 = vadd.f32 %v3149, %v3249
      %v3392 = vadd.f32 %v3150, %v3251
      %v3393 = vadd.f32 %v3151, %v3253
      %v3394 = vadd.f32 %v3152, %v3255
      %v3395 = vadd.f32 %v3153, %v3257
      %v3396 = vadd.f32 %v3154, %v3259
      %v3397 = vadd.f32 %v3155, %v3261
      %v3398 = vadd.f32 %v3156, %v3263
      %v3399 = vadd.f32 %v3157, %v3265
      %v3400 = vadd.f32 %v3158, %v3267
      %v3401 = vadd.f32 %v3159, %v3269
      %v3402 = vadd.f32 %v3160, %v3271
      %v3403 = vadd.f32 %v3161, %v3273
      %v3404 = vadd.f32 %v3162, %v3275
      %v3405 = vadd.f32 %v3163, %v3277
      %v3406 = vadd.f32 %v3164, %v3279
      %v3407 = vadd.f32 %v3165, %v3281
      %v3408 = vadd.f32 %v3166, %v3283
      %v3409 = vadd.f32 %v3167, %v3285
      %v3410 = vadd.f32 %v3168, %v3287
      %v3411 = vadd.f32 %v3169, %v3289
      %v3412 = vadd.f32 %v3170, %v3291
      %v3413 = vadd.f32 %v3171, %v3293
      %v3414 = vadd.f32 %v3172, %v3295
      %v3415 = vadd.f32 %v3173, %v3297
      %v3416 = vadd.f32 %v3174, %v3299
      %v3417 = vadd.f32 %v3175, %v3301
      %v3418 = vadd.f32 %v3176, %v3303
      %v3419 = vadd.f32 %v3177, %v3305
      %v3420 = vadd.f32 %v3178, %v3307
      %v3421 = vadd.f32 %v3179, %v3309
      %v3422 = vadd.f32 %v3180, %v3311
      %v3423 = vadd.f32 %v3181, %v3313
      %v3424 = vadd.f32 %v3182, %v3315
      %v3425 = vadd.f32 %v3183, %v3317
      %v3426 = vadd.f32 %v3184, %v3319
      %v3427 = vadd.f32 %v3185, %v3321
      %v3428 = vadd.f32 %v3186, %v3323
      %v3429 = vadd.f32 %v3187, %v3325
      %v3430 = vadd.f32 %v3188, %v3327
      %v3431 = vadd.f32 %v3189, %v3329
      %v3432 = vadd.f32 %v3190, %v3331
      %v3433 = vadd.f32 %v3191, %v3333
      %v3434 = vadd.f32 %v3192, %v3335
      %v3435 = vadd.f32 %v3193, %v3337
      %v3436 = vadd.f32 %v3194, %v3339
      %v3437 = vadd.f32 %v3195, %v3341
      %3438 = vst [vmem:[#allocation2] sm:$0xff] %v3390
      %3439 = vst [vmem:[#allocation2 + $0x8] sm:$0xff] %v3391
      %3440 = vst [vmem:[#allocation2 + $0x10] sm:$0xff] %v3392
      %3441 = vst [vmem:[#allocation2 + $0x18] sm:$0xff] %v3393
      %3442 = vst [vmem:[#allocation2 + $0x20] sm:$0xff] %v3394
      %3443 = vst [vmem:[#allocation2 + $0x28] sm:$0xff] %v3395
      %3444 = vst [vmem:[#allocation2 + $0x30] sm:$0xff] %v3396
      %3445 = vst [vmem:[#allocation2 + $0x38] sm:$0xff] %v3397
      %3446 = vst [vmem:[#allocation2 + $0x40] sm:$0xff] %v3398
      %3447 = vst [vmem:[#allocation2 + $0x48] sm:$0xff] %v3399
      %3448 = vst [vmem:[#allocation2 + $0x50] sm:$0xff] %v3400
      %3449 = vst [vmem:[#allocation2 + $0x58] sm:$0xff] %v3401
      %3450 = vst [vmem:[#allocation2 + $0x60] sm:$0xff] %v3402
      %3451 = vst [vmem:[#allocation2 + $0x68] sm:$0xff] %v3403
      %3452 = vst [vmem:[#allocation2 + $0x70] sm:$0xff] %v3404
      %3453 = vst [vmem:[#allocation2 + $0x78] sm:$0xff] %v3405
      %3454 = vst [vmem:[#allocation2 + $0x80] sm:$0xff] %v3406
      %3455 = vst [vmem:[#allocation2 + $0x88] sm:$0xff] %v3407
      %3456 = vst [vmem:[#allocation2 + $0x90] sm:$0xff] %v3408
      %3457 = vst [vmem:[#allocation2 + $0x98] sm:$0xff] %v3409
      %3458 = vst [vmem:[#allocation2 + $0xa0] sm:$0xff] %v3410
      %3459 = vst [vmem:[#allocation2 + $0xa8] sm:$0xff] %v3411
      %3460 = vst [vmem:[#allocation2 + $0xb0] sm:$0xff] %v3412
      %3461 = vst [vmem:[#allocation2 + $0xb8] sm:$0xff] %v3413
      %3462 = vst [vmem:[#allocation2 + $0xc0] sm:$0xff] %v3414
      %3463 = vst [vmem:[#allocation2 + $0xc8] sm:$0xff] %v3415
      %3464 = vst [vmem:[#allocation2 + $0xd0] sm:$0xff] %v3416
      %3465 = vst [vmem:[#allocation2 + $0xd8] sm:$0xff] %v3417
      %3466 = vst [vmem:[#allocation2 + $0xe0] sm:$0xff] %v3418
      %3467 = vst [vmem:[#allocation2 + $0xe8] sm:$0xff] %v3419
      %3468 = vst [vmem:[#allocation2 + $0xf0] sm:$0xff] %v3420
      %3469 = vst [vmem:[#allocation2 + $0xf8] sm:$0xff] %v3421
      %3470 = vst [vmem:[#allocation2 + $0x100] sm:$0xff] %v3422
      %3471 = vst [vmem:[#allocation2 + $0x108] sm:$0xff] %v3423
      %3472 = vst [vmem:[#allocation2 + $0x110] sm:$0xff] %v3424
      %3473 = vst [vmem:[#allocation2 + $0x118] sm:$0xff] %v3425
      %3474 = vst [vmem:[#allocation2 + $0x120] sm:$0xff] %v3426
      %3475 = vst [vmem:[#allocation2 + $0x128] sm:$0xff] %v3427
      %3476 = vst [vmem:[#allocation2 + $0x130] sm:$0xff] %v3428
      %3477 = vst [vmem:[#allocation2 + $0x138] sm:$0xff] %v3429
      %3478 = vst [vmem:[#allocation2 + $0x140] sm:$0xff] %v3430
      %3479 = vst [vmem:[#allocation2 + $0x148] sm:$0xff] %v3431
      %3480 = vst [vmem:[#allocation2 + $0x150] sm:$0xff] %v3432
      %3481 = vst [vmem:[#allocation2 + $0x158] sm:$0xff] %v3433
      %3482 = vst [vmem:[#allocation2 + $0x160] sm:$0xff] %v3434
      %3483 = vst [vmem:[#allocation2 + $0x168] sm:$0xff] %v3435
      %3484 = vst [vmem:[#allocation2 + $0x170] sm:$0xff] %v3436
      %3485 = vst [vmem:[#allocation2 + $0x178] sm:$0xff] %v3437
      %s3486 = sadd.s32 %s343, 80
      %s3487 = smul.addr %s3486, 4
      %s3488 = scalar_lea.vmem %s228, %s3487
      %v3489 = vld [vmem:[%s3488] sm:$0xf]
      %v3490 = vld [vmem:[%s3488 + $0x4] sm:$0xf]
      %v3491 = vld [vmem:[%s3488 + $0x8] sm:$0xf]
      %v3492 = vld [vmem:[%s3488 + $0xc] sm:$0xf]
      %v3493 = vld [vmem:[%s3488 + $0x10] sm:$0xf]
      %v3494 = vld [vmem:[%s3488 + $0x14] sm:$0xf]
      %v3495 = vld [vmem:[%s3488 + $0x18] sm:$0xf]
      %v3496 = vld [vmem:[%s3488 + $0x1c] sm:$0xf]
      %v3497 = vld [vmem:[%s3488 + $0x20] sm:$0xf]
      %v3498 = vld [vmem:[%s3488 + $0x24] sm:$0xf]
      %v3499 = vld [vmem:[%s3488 + $0x28] sm:$0xf]
      %v3500 = vld [vmem:[%s3488 + $0x2c] sm:$0xf]
      %v3501 = vld [vmem:[%s3488 + $0x30] sm:$0xf]
      %v3502 = vld [vmem:[%s3488 + $0x34] sm:$0xf]
      %v3503 = vld [vmem:[%s3488 + $0x38] sm:$0xf]
      %v3504 = vld [vmem:[%s3488 + $0x3c] sm:$0xf]
      %v3521 = vunpack.c.l.b16 %v3489
      %v3522 = vunpack.c.l.b16 %v3490
      %v3523 = vunpack.c.l.b16 %v3491
      %v3524 = vunpack.c.l.b16 %v3492
      %v3525 = vunpack.c.l.b16 %v3493
      %v3526 = vunpack.c.l.b16 %v3494
      %v3527 = vunpack.c.l.b16 %v3495
      %v3528 = vunpack.c.l.b16 %v3496
      %v3529 = vunpack.c.l.b16 %v3497
      %v3530 = vunpack.c.l.b16 %v3498
      %v3531 = vunpack.c.l.b16 %v3499
      %v3532 = vunpack.c.l.b16 %v3500
      %v3533 = vunpack.c.l.b16 %v3501
      %v3534 = vunpack.c.l.b16 %v3502
      %v3535 = vunpack.c.l.b16 %v3503
      %v3536 = vunpack.c.l.b16 %v3504
      %v3537 = vpack.c.b16 %v3522, %v3521
      %v3538 = vpack.c.b16 %v3524, %v3523
      %v3539 = vpack.c.b16 %v3526, %v3525
      %v3540 = vpack.c.b16 %v3528, %v3527
      %v3541 = vpack.c.b16 %v3530, %v3529
      %v3542 = vpack.c.b16 %v3532, %v3531
      %v3543 = vpack.c.b16 %v3534, %v3533
      %v3544 = vpack.c.b16 %v3536, %v3535
      %3553 = vmatprep.subr.bf16.mxu0 0
      %3554 = vmatpush1.bf16.msra.mxu0 %v3544
      %3555 = vmatprep.subr.bf16.mxu0 0
      %3556 = vmatpush1.bf16.msra.mxu0 %v3543
      %3557 = vmatprep.subr.bf16.mxu0 0
      %3558 = vmatpush1.bf16.msra.mxu0 %v3542
      %3559 = vmatprep.subr.bf16.mxu0 0
      %3560 = vmatpush1.bf16.msra.mxu0 %v3541
      %3561 = vmatprep.subr.bf16.mxu0 0
      %3562 = vmatpush1.bf16.msra.mxu0 %v3540
      %3563 = vmatprep.subr.bf16.mxu0 0
      %3564 = vmatpush1.bf16.msra.mxu0 %v3539
      %3565 = vmatprep.subr.bf16.mxu0 0
      %3566 = vmatpush1.bf16.msra.mxu0 %v3538
      %3567 = vmatprep.subr.bf16.mxu0 0
      %3568 = vmatpush1.bf16.msra.mxu0 %v3537
      %3569 = vmatprep.subr.bf16.mxu0 0
      %3570 = vmatpush2.bf16.msra.mxu0 0
      %3571 = vmatprep.subr.bf16.mxu0 0
      %3572 = vmatpush2.bf16.msra.mxu0 0
      %3573 = vmatprep.subr.bf16.mxu0 0
      %3574 = vmatpush2.bf16.msra.mxu0 0
      %3575 = vmatprep.subr.bf16.mxu0 0
      %3576 = vmatpush2.bf16.msra.mxu0 0
      %3577 = vmatprep.subr.bf16.mxu0 0
      %3578 = vmatpush2.bf16.msra.mxu0 0
      %3579 = vmatprep.subr.bf16.mxu0 0
      %3580 = vmatpush2.bf16.msra.mxu0 0
      %3581 = vmatprep.subr.bf16.mxu0 0
      %3582 = vmatpush2.bf16.msra.mxu0 0
      %3583 = vmatprep.subr.bf16.mxu0 0
      %3584 = vmatpush2.bf16.msra.mxu0 0
      %3585 = vmatprep.mubr.bf16.mxu0 0
      %3586 = vmatmul.mubr.bf16.gmra.mxu0 %v2376
      %v3587 = vpop.f32.mrf.mxu0
      %v3588 = vadd.f32 0.0, %v3587
      %v3589 = vpop.f32.mrf.mxu0
      %v3590 = vpop.f32.mrf.mxu0
      %v3591 = vadd.f32 0.0, %v3590
      %v3592 = vpop.f32.mrf.mxu0
      %3593 = vmatprep.mubr.bf16.mxu0 0
      %3594 = vmatmul.mubr.bf16.gmra.mxu0 %v2377
      %v3595 = vpop.f32.mrf.mxu0
      %v3596 = vadd.f32 0.0, %v3595
      %v3597 = vpop.f32.mrf.mxu0
      %v3598 = vpop.f32.mrf.mxu0
      %v3599 = vadd.f32 0.0, %v3598
      %v3600 = vpop.f32.mrf.mxu0
      %3601 = vmatprep.mubr.bf16.mxu0 0
      %3602 = vmatmul.mubr.bf16.gmra.mxu0 %v2378
      %v3603 = vpop.f32.mrf.mxu0
      %v3604 = vadd.f32 0.0, %v3603
      %v3605 = vpop.f32.mrf.mxu0
      %v3606 = vpop.f32.mrf.mxu0
      %v3607 = vadd.f32 0.0, %v3606
      %v3608 = vpop.f32.mrf.mxu0
      %3609 = vmatprep.mubr.bf16.mxu0 0
      %3610 = vmatmul.mubr.bf16.gmra.mxu0 %v2379
      %v3611 = vpop.f32.mrf.mxu0
      %v3612 = vadd.f32 0.0, %v3611
      %v3613 = vpop.f32.mrf.mxu0
      %v3614 = vpop.f32.mrf.mxu0
      %v3615 = vadd.f32 0.0, %v3614
      %v3616 = vpop.f32.mrf.mxu0
      %3617 = vmatprep.mubr.bf16.mxu0 0
      %3618 = vmatmul.mubr.bf16.gmra.mxu0 %v2380
      %v3619 = vpop.f32.mrf.mxu0
      %v3620 = vadd.f32 0.0, %v3619
      %v3621 = vpop.f32.mrf.mxu0
      %v3622 = vpop.f32.mrf.mxu0
      %v3623 = vadd.f32 0.0, %v3622
      %v3624 = vpop.f32.mrf.mxu0
      %3625 = vmatprep.mubr.bf16.mxu0 0
      %3626 = vmatmul.mubr.bf16.gmra.mxu0 %v2381
      %v3627 = vpop.f32.mrf.mxu0
      %v3628 = vadd.f32 0.0, %v3627
      %v3629 = vpop.f32.mrf.mxu0
      %v3630 = vpop.f32.mrf.mxu0
      %v3631 = vadd.f32 0.0, %v3630
      %v3632 = vpop.f32.mrf.mxu0
      %3633 = vmatprep.mubr.bf16.mxu0 0
      %3634 = vmatmul.mubr.bf16.gmra.mxu0 %v2382
      %v3635 = vpop.f32.mrf.mxu0
      %v3636 = vadd.f32 0.0, %v3635
      %v3637 = vpop.f32.mrf.mxu0
      %v3638 = vpop.f32.mrf.mxu0
      %v3639 = vadd.f32 0.0, %v3638
      %v3640 = vpop.f32.mrf.mxu0
      %3641 = vmatprep.mubr.bf16.mxu0 0
      %3642 = vmatmul.mubr.bf16.gmra.mxu0 %v2383
      %v3643 = vpop.f32.mrf.mxu0
      %v3644 = vadd.f32 0.0, %v3643
      %v3645 = vpop.f32.mrf.mxu0
      %v3646 = vpop.f32.mrf.mxu0
      %v3647 = vadd.f32 0.0, %v3646
      %v3648 = vpop.f32.mrf.mxu0
      %3649 = vmatprep.mubr.bf16.mxu0 0
      %3650 = vmatmul.mubr.bf16.gmra.mxu0 %v2384
      %v3651 = vpop.f32.mrf.mxu0
      %v3652 = vadd.f32 0.0, %v3651
      %v3653 = vpop.f32.mrf.mxu0
      %v3654 = vpop.f32.mrf.mxu0
      %v3655 = vadd.f32 0.0, %v3654
      %v3656 = vpop.f32.mrf.mxu0
      %3657 = vmatprep.mubr.bf16.mxu0 0
      %3658 = vmatmul.mubr.bf16.gmra.mxu0 %v2385
      %v3659 = vpop.f32.mrf.mxu0
      %v3660 = vadd.f32 0.0, %v3659
      %v3661 = vpop.f32.mrf.mxu0
      %v3662 = vpop.f32.mrf.mxu0
      %v3663 = vadd.f32 0.0, %v3662
      %v3664 = vpop.f32.mrf.mxu0
      %3665 = vmatprep.mubr.bf16.mxu0 0
      %3666 = vmatmul.mubr.bf16.gmra.mxu0 %v2386
      %v3667 = vpop.f32.mrf.mxu0
      %v3668 = vadd.f32 0.0, %v3667
      %v3669 = vpop.f32.mrf.mxu0
      %v3670 = vpop.f32.mrf.mxu0
      %v3671 = vadd.f32 0.0, %v3670
      %v3672 = vpop.f32.mrf.mxu0
      %3673 = vmatprep.mubr.bf16.mxu0 0
      %3674 = vmatmul.mubr.bf16.gmra.mxu0 %v2387
      %v3675 = vpop.f32.mrf.mxu0
      %v3676 = vadd.f32 0.0, %v3675
      %v3677 = vpop.f32.mrf.mxu0
      %v3678 = vpop.f32.mrf.mxu0
      %v3679 = vadd.f32 0.0, %v3678
      %v3680 = vpop.f32.mrf.mxu0
      %3681 = vmatprep.mubr.bf16.mxu0 0
      %3682 = vmatmul.mubr.bf16.gmra.mxu0 %v2388
      %v3683 = vpop.f32.mrf.mxu0
      %v3684 = vadd.f32 0.0, %v3683
      %v3685 = vpop.f32.mrf.mxu0
      %v3686 = vpop.f32.mrf.mxu0
      %v3687 = vadd.f32 0.0, %v3686
      %v3688 = vpop.f32.mrf.mxu0
      %3689 = vmatprep.mubr.bf16.mxu0 0
      %3690 = vmatmul.mubr.bf16.gmra.mxu0 %v2389
      %v3691 = vpop.f32.mrf.mxu0
      %v3692 = vadd.f32 0.0, %v3691
      %v3693 = vpop.f32.mrf.mxu0
      %v3694 = vpop.f32.mrf.mxu0
      %v3695 = vadd.f32 0.0, %v3694
      %v3696 = vpop.f32.mrf.mxu0
      %3697 = vmatprep.mubr.bf16.mxu0 0
      %3698 = vmatmul.mubr.bf16.gmra.mxu0 %v2390
      %v3699 = vpop.f32.mrf.mxu0
      %v3700 = vadd.f32 0.0, %v3699
      %v3701 = vpop.f32.mrf.mxu0
      %v3702 = vpop.f32.mrf.mxu0
      %v3703 = vadd.f32 0.0, %v3702
      %v3704 = vpop.f32.mrf.mxu0
      %3705 = vmatprep.mubr.bf16.mxu0 0
      %3706 = vmatmul.mubr.bf16.gmra.mxu0 %v2391
      %v3707 = vpop.f32.mrf.mxu0
      %v3708 = vadd.f32 0.0, %v3707
      %v3709 = vpop.f32.mrf.mxu0
      %v3710 = vpop.f32.mrf.mxu0
      %v3711 = vadd.f32 0.0, %v3710
      %v3712 = vpop.f32.mrf.mxu0
      %3713 = vmatprep.mubr.bf16.mxu0 0
      %3714 = vmatmul.mubr.bf16.gmra.mxu0 %v2392
      %v3715 = vpop.f32.mrf.mxu0
      %v3716 = vadd.f32 0.0, %v3715
      %v3717 = vpop.f32.mrf.mxu0
      %v3718 = vpop.f32.mrf.mxu0
      %v3719 = vadd.f32 0.0, %v3718
      %v3720 = vpop.f32.mrf.mxu0
      %3721 = vmatprep.mubr.bf16.mxu0 0
      %3722 = vmatmul.mubr.bf16.gmra.mxu0 %v2393
      %v3723 = vpop.f32.mrf.mxu0
      %v3724 = vadd.f32 0.0, %v3723
      %v3725 = vpop.f32.mrf.mxu0
      %v3726 = vpop.f32.mrf.mxu0
      %v3727 = vadd.f32 0.0, %v3726
      %v3728 = vpop.f32.mrf.mxu0
      %3729 = vmatprep.mubr.bf16.mxu0 0
      %3730 = vmatmul.mubr.bf16.gmra.mxu0 %v2394
      %v3731 = vpop.f32.mrf.mxu0
      %v3732 = vadd.f32 0.0, %v3731
      %v3733 = vpop.f32.mrf.mxu0
      %v3734 = vpop.f32.mrf.mxu0
      %v3735 = vadd.f32 0.0, %v3734
      %v3736 = vpop.f32.mrf.mxu0
      %3737 = vmatprep.mubr.bf16.mxu0 0
      %3738 = vmatmul.mubr.bf16.gmra.mxu0 %v2395
      %v3739 = vpop.f32.mrf.mxu0
      %v3740 = vadd.f32 0.0, %v3739
      %v3741 = vpop.f32.mrf.mxu0
      %v3742 = vpop.f32.mrf.mxu0
      %v3743 = vadd.f32 0.0, %v3742
      %v3744 = vpop.f32.mrf.mxu0
      %3745 = vmatprep.mubr.bf16.mxu0 0
      %3746 = vmatmul.mubr.bf16.gmra.mxu0 %v2396
      %v3747 = vpop.f32.mrf.mxu0
      %v3748 = vadd.f32 0.0, %v3747
      %v3749 = vpop.f32.mrf.mxu0
      %v3750 = vpop.f32.mrf.mxu0
      %v3751 = vadd.f32 0.0, %v3750
      %v3752 = vpop.f32.mrf.mxu0
      %3753 = vmatprep.mubr.bf16.mxu0 0
      %3754 = vmatmul.mubr.bf16.gmra.mxu0 %v2397
      %v3755 = vpop.f32.mrf.mxu0
      %v3756 = vadd.f32 0.0, %v3755
      %v3757 = vpop.f32.mrf.mxu0
      %v3758 = vpop.f32.mrf.mxu0
      %v3759 = vadd.f32 0.0, %v3758
      %v3760 = vpop.f32.mrf.mxu0
      %3761 = vmatprep.mubr.bf16.mxu0 0
      %3762 = vmatmul.mubr.bf16.gmra.mxu0 %v2398
      %v3763 = vpop.f32.mrf.mxu0
      %v3764 = vadd.f32 0.0, %v3763
      %v3765 = vpop.f32.mrf.mxu0
      %v3766 = vpop.f32.mrf.mxu0
      %v3767 = vadd.f32 0.0, %v3766
      %v3768 = vpop.f32.mrf.mxu0
      %3769 = vmatprep.mubr.bf16.mxu0 0
      %3770 = vmatmul.mubr.bf16.gmra.mxu0 %v2399
      %v3771 = vpop.f32.mrf.mxu0
      %v3772 = vadd.f32 0.0, %v3771
      %v3773 = vpop.f32.mrf.mxu0
      %v3774 = vpop.f32.mrf.mxu0
      %v3775 = vadd.f32 0.0, %v3774
      %v3776 = vpop.f32.mrf.mxu0
      %3777 = vmatprep.mubr.bf16.mxu0 0
      %3778 = vmatmul.mubr.bf16.gmra.mxu0 %v2400
      %v3779 = vpop.f32.mrf.mxu0
      %v3780 = vadd.f32 0.0, %v3779
      %v3781 = vpop.f32.mrf.mxu0
      %v3782 = vpop.f32.mrf.mxu0
      %v3783 = vpop.f32.mrf.mxu0
      %3784 = vdwg.mxu0
      %v3785 = vld [vmem:[#allocation2] sm:$0xff]
      %v3786 = vld [vmem:[#allocation2 + $0x8] sm:$0xff]
      %v3787 = vld [vmem:[#allocation2 + $0x10] sm:$0xff]
      %v3788 = vld [vmem:[#allocation2 + $0x18] sm:$0xff]
      %v3789 = vld [vmem:[#allocation2 + $0x20] sm:$0xff]
      %v3790 = vld [vmem:[#allocation2 + $0x28] sm:$0xff]
      %v3791 = vld [vmem:[#allocation2 + $0x30] sm:$0xff]
      %v3792 = vld [vmem:[#allocation2 + $0x38] sm:$0xff]
      %v3793 = vld [vmem:[#allocation2 + $0x40] sm:$0xff]
      %v3794 = vld [vmem:[#allocation2 + $0x48] sm:$0xff]
      %v3795 = vld [vmem:[#allocation2 + $0x50] sm:$0xff]
      %v3796 = vld [vmem:[#allocation2 + $0x58] sm:$0xff]
      %v3797 = vld [vmem:[#allocation2 + $0x60] sm:$0xff]
      %v3798 = vld [vmem:[#allocation2 + $0x68] sm:$0xff]
      %v3799 = vld [vmem:[#allocation2 + $0x70] sm:$0xff]
      %v3800 = vld [vmem:[#allocation2 + $0x78] sm:$0xff]
      %v3801 = vld [vmem:[#allocation2 + $0x80] sm:$0xff]
      %v3802 = vld [vmem:[#allocation2 + $0x88] sm:$0xff]
      %v3803 = vld [vmem:[#allocation2 + $0x90] sm:$0xff]
      %v3804 = vld [vmem:[#allocation2 + $0x98] sm:$0xff]
      %v3805 = vld [vmem:[#allocation2 + $0xa0] sm:$0xff]
      %v3806 = vld [vmem:[#allocation2 + $0xa8] sm:$0xff]
      %v3807 = vld [vmem:[#allocation2 + $0xb0] sm:$0xff]
      %v3808 = vld [vmem:[#allocation2 + $0xb8] sm:$0xff]
      %v3809 = vld [vmem:[#allocation2 + $0xc0] sm:$0xff]
      %v3810 = vld [vmem:[#allocation2 + $0xc8] sm:$0xff]
      %v3811 = vld [vmem:[#allocation2 + $0xd0] sm:$0xff]
      %v3812 = vld [vmem:[#allocation2 + $0xd8] sm:$0xff]
      %v3813 = vld [vmem:[#allocation2 + $0xe0] sm:$0xff]
      %v3814 = vld [vmem:[#allocation2 + $0xe8] sm:$0xff]
      %v3815 = vld [vmem:[#allocation2 + $0xf0] sm:$0xff]
      %v3816 = vld [vmem:[#allocation2 + $0xf8] sm:$0xff]
      %v3817 = vld [vmem:[#allocation2 + $0x100] sm:$0xff]
      %v3818 = vld [vmem:[#allocation2 + $0x108] sm:$0xff]
      %v3819 = vld [vmem:[#allocation2 + $0x110] sm:$0xff]
      %v3820 = vld [vmem:[#allocation2 + $0x118] sm:$0xff]
      %v3821 = vld [vmem:[#allocation2 + $0x120] sm:$0xff]
      %v3822 = vld [vmem:[#allocation2 + $0x128] sm:$0xff]
      %v3823 = vld [vmem:[#allocation2 + $0x130] sm:$0xff]
      %v3824 = vld [vmem:[#allocation2 + $0x138] sm:$0xff]
      %v3825 = vld [vmem:[#allocation2 + $0x140] sm:$0xff]
      %v3826 = vld [vmem:[#allocation2 + $0x148] sm:$0xff]
      %v3827 = vld [vmem:[#allocation2 + $0x150] sm:$0xff]
      %v3828 = vld [vmem:[#allocation2 + $0x158] sm:$0xff]
      %v3829 = vld [vmem:[#allocation2 + $0x160] sm:$0xff]
      %v3830 = vld [vmem:[#allocation2 + $0x168] sm:$0xff]
      %v3831 = vld [vmem:[#allocation2 + $0x170] sm:$0xff]
      %v3832 = vld [vmem:[#allocation2 + $0x178] sm:$0xff]
      %v3882 = vrot.slane %v3588, 4
      %v3883 = vrot.slane %v3591, 4
      %v3884 = vsel %vm1968, %v3882, %v3883
      %v3885 = vrot.slane %v3596, 4
      %v3886 = vsel %vm1968, %v3883, %v3885
      %v3887 = vrot.slane %v3599, 4
      %v3888 = vsel %vm1968, %v3885, %v3887
      %v3889 = vrot.slane %v3604, 4
      %v3890 = vsel %vm1968, %v3887, %v3889
      %v3891 = vrot.slane %v3607, 4
      %v3892 = vsel %vm1968, %v3889, %v3891
      %v3893 = vrot.slane %v3612, 4
      %v3894 = vsel %vm1968, %v3891, %v3893
      %v3895 = vrot.slane %v3615, 4
      %v3896 = vsel %vm1968, %v3893, %v3895
      %v3897 = vrot.slane %v3620, 4
      %v3898 = vsel %vm1968, %v3895, %v3897
      %v3899 = vrot.slane %v3623, 4
      %v3900 = vsel %vm1968, %v3897, %v3899
      %v3901 = vrot.slane %v3628, 4
      %v3902 = vsel %vm1968, %v3899, %v3901
      %v3903 = vrot.slane %v3631, 4
      %v3904 = vsel %vm1968, %v3901, %v3903
      %v3905 = vrot.slane %v3636, 4
      %v3906 = vsel %vm1968, %v3903, %v3905
      %v3907 = vrot.slane %v3639, 4
      %v3908 = vsel %vm1968, %v3905, %v3907
      %v3909 = vrot.slane %v3644, 4
      %v3910 = vsel %vm1968, %v3907, %v3909
      %v3911 = vrot.slane %v3647, 4
      %v3912 = vsel %vm1968, %v3909, %v3911
      %v3913 = vrot.slane %v3652, 4
      %v3914 = vsel %vm1968, %v3911, %v3913
      %v3915 = vrot.slane %v3655, 4
      %v3916 = vsel %vm1968, %v3913, %v3915
      %v3917 = vrot.slane %v3660, 4
      %v3918 = vsel %vm1968, %v3915, %v3917
      %v3919 = vrot.slane %v3663, 4
      %v3920 = vsel %vm1968, %v3917, %v3919
      %v3921 = vrot.slane %v3668, 4
      %v3922 = vsel %vm1968, %v3919, %v3921
      %v3923 = vrot.slane %v3671, 4
      %v3924 = vsel %vm1968, %v3921, %v3923
      %v3925 = vrot.slane %v3676, 4
      %v3926 = vsel %vm1968, %v3923, %v3925
      %v3927 = vrot.slane %v3679, 4
      %v3928 = vsel %vm1968, %v3925, %v3927
      %v3929 = vrot.slane %v3684, 4
      %v3930 = vsel %vm1968, %v3927, %v3929
      %v3931 = vrot.slane %v3687, 4
      %v3932 = vsel %vm1968, %v3929, %v3931
      %v3933 = vrot.slane %v3692, 4
      %v3934 = vsel %vm1968, %v3931, %v3933
      %v3935 = vrot.slane %v3695, 4
      %v3936 = vsel %vm1968, %v3933, %v3935
      %v3937 = vrot.slane %v3700, 4
      %v3938 = vsel %vm1968, %v3935, %v3937
      %v3939 = vrot.slane %v3703, 4
      %v3940 = vsel %vm1968, %v3937, %v3939
      %v3941 = vrot.slane %v3708, 4
      %v3942 = vsel %vm1968, %v3939, %v3941
      %v3943 = vrot.slane %v3711, 4
      %v3944 = vsel %vm1968, %v3941, %v3943
      %v3945 = vrot.slane %v3716, 4
      %v3946 = vsel %vm1968, %v3943, %v3945
      %v3947 = vrot.slane %v3719, 4
      %v3948 = vsel %vm1968, %v3945, %v3947
      %v3949 = vrot.slane %v3724, 4
      %v3950 = vsel %vm1968, %v3947, %v3949
      %v3951 = vrot.slane %v3727, 4
      %v3952 = vsel %vm1968, %v3949, %v3951
      %v3953 = vrot.slane %v3732, 4
      %v3954 = vsel %vm1968, %v3951, %v3953
      %v3955 = vrot.slane %v3735, 4
      %v3956 = vsel %vm1968, %v3953, %v3955
      %v3957 = vrot.slane %v3740, 4
      %v3958 = vsel %vm1968, %v3955, %v3957
      %v3959 = vrot.slane %v3743, 4
      %v3960 = vsel %vm1968, %v3957, %v3959
      %v3961 = vrot.slane %v3748, 4
      %v3962 = vsel %vm1968, %v3959, %v3961
      %v3963 = vrot.slane %v3751, 4
      %v3964 = vsel %vm1968, %v3961, %v3963
      %v3965 = vrot.slane %v3756, 4
      %v3966 = vsel %vm1968, %v3963, %v3965
      %v3967 = vrot.slane %v3759, 4
      %v3968 = vsel %vm1968, %v3965, %v3967
      %v3969 = vrot.slane %v3764, 4
      %v3970 = vsel %vm1968, %v3967, %v3969
      %v3971 = vrot.slane %v3767, 4
      %v3972 = vsel %vm1968, %v3969, %v3971
      %v3973 = vrot.slane %v3772, 4
      %v3974 = vsel %vm1968, %v3971, %v3973
      %v3975 = vrot.slane %v3775, 4
      %v3976 = vsel %vm1968, %v3973, %v3975
      %v3977 = vrot.slane %v3780, 4
      %v3978 = vsel %vm1968, %v3975, %v3977
      %v4027 = vadd.f32 %v3785, %v3884
      %v4028 = vadd.f32 %v3786, %v3886
      %v4029 = vadd.f32 %v3787, %v3888
      %v4030 = vadd.f32 %v3788, %v3890
      %v4031 = vadd.f32 %v3789, %v3892
      %v4032 = vadd.f32 %v3790, %v3894
      %v4033 = vadd.f32 %v3791, %v3896
      %v4034 = vadd.f32 %v3792, %v3898
      %v4035 = vadd.f32 %v3793, %v3900
      %v4036 = vadd.f32 %v3794, %v3902
      %v4037 = vadd.f32 %v3795, %v3904
      %v4038 = vadd.f32 %v3796, %v3906
      %v4039 = vadd.f32 %v3797, %v3908
      %v4040 = vadd.f32 %v3798, %v3910
      %v4041 = vadd.f32 %v3799, %v3912
      %v4042 = vadd.f32 %v3800, %v3914
      %v4043 = vadd.f32 %v3801, %v3916
      %v4044 = vadd.f32 %v3802, %v3918
      %v4045 = vadd.f32 %v3803, %v3920
      %v4046 = vadd.f32 %v3804, %v3922
      %v4047 = vadd.f32 %v3805, %v3924
      %v4048 = vadd.f32 %v3806, %v3926
      %v4049 = vadd.f32 %v3807, %v3928
      %v4050 = vadd.f32 %v3808, %v3930
      %v4051 = vadd.f32 %v3809, %v3932
      %v4052 = vadd.f32 %v3810, %v3934
      %v4053 = vadd.f32 %v3811, %v3936
      %v4054 = vadd.f32 %v3812, %v3938
      %v4055 = vadd.f32 %v3813, %v3940
      %v4056 = vadd.f32 %v3814, %v3942
      %v4057 = vadd.f32 %v3815, %v3944
      %v4058 = vadd.f32 %v3816, %v3946
      %v4059 = vadd.f32 %v3817, %v3948
      %v4060 = vadd.f32 %v3818, %v3950
      %v4061 = vadd.f32 %v3819, %v3952
      %v4062 = vadd.f32 %v3820, %v3954
      %v4063 = vadd.f32 %v3821, %v3956
      %v4064 = vadd.f32 %v3822, %v3958
      %v4065 = vadd.f32 %v3823, %v3960
      %v4066 = vadd.f32 %v3824, %v3962
      %v4067 = vadd.f32 %v3825, %v3964
      %v4068 = vadd.f32 %v3826, %v3966
      %v4069 = vadd.f32 %v3827, %v3968
      %v4070 = vadd.f32 %v3828, %v3970
      %v4071 = vadd.f32 %v3829, %v3972
      %v4072 = vadd.f32 %v3830, %v3974
      %v4073 = vadd.f32 %v3831, %v3976
      %v4074 = vadd.f32 %v3832, %v3978
      %4075 = vst [vmem:[#allocation2] sm:$0xff] %v4027
      %4076 = vst [vmem:[#allocation2 + $0x8] sm:$0xff] %v4028
      %4077 = vst [vmem:[#allocation2 + $0x10] sm:$0xff] %v4029
      %4078 = vst [vmem:[#allocation2 + $0x18] sm:$0xff] %v4030
      %4079 = vst [vmem:[#allocation2 + $0x20] sm:$0xff] %v4031
      %4080 = vst [vmem:[#allocation2 + $0x28] sm:$0xff] %v4032
      %4081 = vst [vmem:[#allocation2 + $0x30] sm:$0xff] %v4033
      %4082 = vst [vmem:[#allocation2 + $0x38] sm:$0xff] %v4034
      %4083 = vst [vmem:[#allocation2 + $0x40] sm:$0xff] %v4035
      %4084 = vst [vmem:[#allocation2 + $0x48] sm:$0xff] %v4036
      %4085 = vst [vmem:[#allocation2 + $0x50] sm:$0xff] %v4037
      %4086 = vst [vmem:[#allocation2 + $0x58] sm:$0xff] %v4038
      %4087 = vst [vmem:[#allocation2 + $0x60] sm:$0xff] %v4039
      %4088 = vst [vmem:[#allocation2 + $0x68] sm:$0xff] %v4040
      %4089 = vst [vmem:[#allocation2 + $0x70] sm:$0xff] %v4041
      %4090 = vst [vmem:[#allocation2 + $0x78] sm:$0xff] %v4042
      %4091 = vst [vmem:[#allocation2 + $0x80] sm:$0xff] %v4043
      %4092 = vst [vmem:[#allocation2 + $0x88] sm:$0xff] %v4044
      %4093 = vst [vmem:[#allocation2 + $0x90] sm:$0xff] %v4045
      %4094 = vst [vmem:[#allocation2 + $0x98] sm:$0xff] %v4046
      %4095 = vst [vmem:[#allocation2 + $0xa0] sm:$0xff] %v4047
      %4096 = vst [vmem:[#allocation2 + $0xa8] sm:$0xff] %v4048
      %4097 = vst [vmem:[#allocation2 + $0xb0] sm:$0xff] %v4049
      %4098 = vst [vmem:[#allocation2 + $0xb8] sm:$0xff] %v4050
      %4099 = vst [vmem:[#allocation2 + $0xc0] sm:$0xff] %v4051
      %4100 = vst [vmem:[#allocation2 + $0xc8] sm:$0xff] %v4052
      %4101 = vst [vmem:[#allocation2 + $0xd0] sm:$0xff] %v4053
      %4102 = vst [vmem:[#allocation2 + $0xd8] sm:$0xff] %v4054
      %4103 = vst [vmem:[#allocation2 + $0xe0] sm:$0xff] %v4055
      %4104 = vst [vmem:[#allocation2 + $0xe8] sm:$0xff] %v4056
      %4105 = vst [vmem:[#allocation2 + $0xf0] sm:$0xff] %v4057
      %4106 = vst [vmem:[#allocation2 + $0xf8] sm:$0xff] %v4058
      %4107 = vst [vmem:[#allocation2 + $0x100] sm:$0xff] %v4059
      %4108 = vst [vmem:[#allocation2 + $0x108] sm:$0xff] %v4060
      %4109 = vst [vmem:[#allocation2 + $0x110] sm:$0xff] %v4061
      %4110 = vst [vmem:[#allocation2 + $0x118] sm:$0xff] %v4062
      %4111 = vst [vmem:[#allocation2 + $0x120] sm:$0xff] %v4063
      %4112 = vst [vmem:[#allocation2 + $0x128] sm:$0xff] %v4064
      %4113 = vst [vmem:[#allocation2 + $0x130] sm:$0xff] %v4065
      %4114 = vst [vmem:[#allocation2 + $0x138] sm:$0xff] %v4066
      %4115 = vst [vmem:[#allocation2 + $0x140] sm:$0xff] %v4067
      %4116 = vst [vmem:[#allocation2 + $0x148] sm:$0xff] %v4068
      %4117 = vst [vmem:[#allocation2 + $0x150] sm:$0xff] %v4069
      %4118 = vst [vmem:[#allocation2 + $0x158] sm:$0xff] %v4070
      %4119 = vst [vmem:[#allocation2 + $0x160] sm:$0xff] %v4071
      %4120 = vst [vmem:[#allocation2 + $0x168] sm:$0xff] %v4072
      %4121 = vst [vmem:[#allocation2 + $0x170] sm:$0xff] %v4073
      %4122 = vst [vmem:[#allocation2 + $0x178] sm:$0xff] %v4074
      %v4123 = vld [vmem:[%s224 + $0x30] sm:$0xf]
      %v4124 = vld [vmem:[%s224 + $0x34] sm:$0xf]
      %v4125 = vld [vmem:[%s224 + $0x38] sm:$0xf]
      %v4126 = vld [vmem:[%s224 + $0x3c] sm:$0xf]
      %v4127 = vld [vmem:[%s224 + $0x40] sm:$0xf]
      %v4128 = vld [vmem:[%s224 + $0x44] sm:$0xf]
      %v4129 = vld [vmem:[%s224 + $0x48] sm:$0xf]
      %v4130 = vld [vmem:[%s224 + $0x4c] sm:$0xf]
      %v4131 = vld [vmem:[%s224 + $0x50] sm:$0xf]
      %v4132 = vld [vmem:[%s224 + $0x54] sm:$0xf]
      %v4133 = vld [vmem:[%s224 + $0x58] sm:$0xf]
      %v4134 = vld [vmem:[%s224 + $0x5c] sm:$0xf]
      %v4135 = vld [vmem:[%s224 + $0x60] sm:$0xf]
      %v4136 = vld [vmem:[%s224 + $0x64] sm:$0xf]
      %v4137 = vld [vmem:[%s224 + $0x68] sm:$0xf]
      %v4138 = vld [vmem:[%s224 + $0x6c] sm:$0xf]
      %v4139 = vld [vmem:[%s224 + $0x70] sm:$0xf]
      %v4140 = vld [vmem:[%s224 + $0x74] sm:$0xf]
      %v4141 = vld [vmem:[%s224 + $0x78] sm:$0xf]
      %v4142 = vld [vmem:[%s224 + $0x7c] sm:$0xf]
      %v4143 = vld [vmem:[%s224 + $0x80] sm:$0xf]
      %v4144 = vld [vmem:[%s224 + $0x84] sm:$0xf]
      %v4145 = vld [vmem:[%s224 + $0x88] sm:$0xf]
      %v4146 = vld [vmem:[%s224 + $0x8c] sm:$0xf]
      %v4147 = vld [vmem:[%s224 + $0x90] sm:$0xf]
      %v4148 = vld [vmem:[%s224 + $0x94] sm:$0xf]
      %v4149 = vld [vmem:[%s224 + $0x98] sm:$0xf]
      %v4150 = vld [vmem:[%s224 + $0x9c] sm:$0xf]
      %v4151 = vld [vmem:[%s224 + $0xa0] sm:$0xf]
      %v4152 = vld [vmem:[%s224 + $0xa4] sm:$0xf]
      %v4153 = vld [vmem:[%s224 + $0xa8] sm:$0xf]
      %v4154 = vld [vmem:[%s224 + $0xac] sm:$0xf]
      %v4155 = vld [vmem:[%s224 + $0xb0] sm:$0xf]
      %v4156 = vld [vmem:[%s224 + $0xb4] sm:$0xf]
      %v4157 = vld [vmem:[%s224 + $0xb8] sm:$0xf]
      %v4158 = vld [vmem:[%s224 + $0xbc] sm:$0xf]
      %v4159 = vld [vmem:[%s224 + $0xc0] sm:$0xf]
      %v4160 = vld [vmem:[%s224 + $0xc4] sm:$0xf]
      %v4161 = vld [vmem:[%s224 + $0xc8] sm:$0xf]
      %v4162 = vld [vmem:[%s224 + $0xcc] sm:$0xf]
      %v4163 = vld [vmem:[%s224 + $0xd0] sm:$0xf]
      %v4164 = vld [vmem:[%s224 + $0xd4] sm:$0xf]
      %v4165 = vld [vmem:[%s224 + $0xd8] sm:$0xf]
      %v4166 = vld [vmem:[%s224 + $0xdc] sm:$0xf]
      %v4167 = vld [vmem:[%s224 + $0xe0] sm:$0xf]
      %v4168 = vld [vmem:[%s224 + $0xe4] sm:$0xf]
      %v4169 = vld [vmem:[%s224 + $0xe8] sm:$0xf]
      %v4170 = vld [vmem:[%s224 + $0xec] sm:$0xf]
      %v4171 = vld [vmem:[%s224 + $0xf0] sm:$0xf]
      %s4172 = sadd.s32 %s343, 96
      %s4173 = smul.addr %s4172, 4
      %s4174 = scalar_lea.vmem %s228, %s4173
      %v4175 = vld [vmem:[%s4174] sm:$0xf]
      %v4176 = vld [vmem:[%s4174 + $0x4] sm:$0xf]
      %v4177 = vld [vmem:[%s4174 + $0x8] sm:$0xf]
      %v4178 = vld [vmem:[%s4174 + $0xc] sm:$0xf]
      %v4179 = vld [vmem:[%s4174 + $0x10] sm:$0xf]
      %v4180 = vld [vmem:[%s4174 + $0x14] sm:$0xf]
      %v4181 = vld [vmem:[%s4174 + $0x18] sm:$0xf]
      %v4182 = vld [vmem:[%s4174 + $0x1c] sm:$0xf]
      %v4183 = vld [vmem:[%s4174 + $0x20] sm:$0xf]
      %v4184 = vld [vmem:[%s4174 + $0x24] sm:$0xf]
      %v4185 = vld [vmem:[%s4174 + $0x28] sm:$0xf]
      %v4186 = vld [vmem:[%s4174 + $0x2c] sm:$0xf]
      %v4187 = vld [vmem:[%s4174 + $0x30] sm:$0xf]
      %v4188 = vld [vmem:[%s4174 + $0x34] sm:$0xf]
      %v4189 = vld [vmem:[%s4174 + $0x38] sm:$0xf]
      %v4190 = vld [vmem:[%s4174 + $0x3c] sm:$0xf]
      %v4240 = vunpack.c.l.b16 %v4123
      %v4241 = vunpack.c.l.b16 %v4124
      %v4242 = vunpack.c.l.b16 %v4125
      %v4243 = vunpack.c.l.b16 %v4126
      %v4244 = vunpack.c.l.b16 %v4127
      %v4245 = vunpack.c.l.b16 %v4128
      %v4246 = vunpack.c.l.b16 %v4129
      %v4247 = vunpack.c.l.b16 %v4130
      %v4248 = vunpack.c.l.b16 %v4131
      %v4249 = vunpack.c.l.b16 %v4132
      %v4250 = vunpack.c.l.b16 %v4133
      %v4251 = vunpack.c.l.b16 %v4134
      %v4252 = vunpack.c.l.b16 %v4135
      %v4253 = vunpack.c.l.b16 %v4136
      %v4254 = vunpack.c.l.b16 %v4137
      %v4255 = vunpack.c.l.b16 %v4138
      %v4256 = vunpack.c.l.b16 %v4139
      %v4257 = vunpack.c.l.b16 %v4140
      %v4258 = vunpack.c.l.b16 %v4141
      %v4259 = vunpack.c.l.b16 %v4142
      %v4260 = vunpack.c.l.b16 %v4143
      %v4261 = vunpack.c.l.b16 %v4144
      %v4262 = vunpack.c.l.b16 %v4145
      %v4263 = vunpack.c.l.b16 %v4146
      %v4264 = vunpack.c.l.b16 %v4147
      %v4265 = vunpack.c.l.b16 %v4148
      %v4266 = vunpack.c.l.b16 %v4149
      %v4267 = vunpack.c.l.b16 %v4150
      %v4268 = vunpack.c.l.b16 %v4151
      %v4269 = vunpack.c.l.b16 %v4152
      %v4270 = vunpack.c.l.b16 %v4153
      %v4271 = vunpack.c.l.b16 %v4154
      %v4272 = vunpack.c.l.b16 %v4155
      %v4273 = vunpack.c.l.b16 %v4156
      %v4274 = vunpack.c.l.b16 %v4157
      %v4275 = vunpack.c.l.b16 %v4158
      %v4276 = vunpack.c.l.b16 %v4159
      %v4277 = vunpack.c.l.b16 %v4160
      %v4278 = vunpack.c.l.b16 %v4161
      %v4279 = vunpack.c.l.b16 %v4162
      %v4280 = vunpack.c.l.b16 %v4163
      %v4281 = vunpack.c.l.b16 %v4164
      %v4282 = vunpack.c.l.b16 %v4165
      %v4283 = vunpack.c.l.b16 %v4166
      %v4284 = vunpack.c.l.b16 %v4167
      %v4285 = vunpack.c.l.b16 %v4168
      %v4286 = vunpack.c.l.b16 %v4169
      %v4287 = vunpack.c.l.b16 %v4170
      %v4288 = vunpack.c.l.b16 %v4171
      %v4289 = vpack.c.b16 %v4241, %v4240
      %v4290 = vpack.c.b16 %v4243, %v4242
      %v4291 = vpack.c.b16 %v4245, %v4244
      %v4292 = vpack.c.b16 %v4247, %v4246
      %v4293 = vpack.c.b16 %v4249, %v4248
      %v4294 = vpack.c.b16 %v4251, %v4250
      %v4295 = vpack.c.b16 %v4253, %v4252
      %v4296 = vpack.c.b16 %v4255, %v4254
      %v4297 = vpack.c.b16 %v4257, %v4256
      %v4298 = vpack.c.b16 %v4259, %v4258
      %v4299 = vpack.c.b16 %v4261, %v4260
      %v4300 = vpack.c.b16 %v4263, %v4262
      %v4301 = vpack.c.b16 %v4265, %v4264
      %v4302 = vpack.c.b16 %v4267, %v4266
      %v4303 = vpack.c.b16 %v4269, %v4268
      %v4304 = vpack.c.b16 %v4271, %v4270
      %v4305 = vpack.c.b16 %v4273, %v4272
      %v4306 = vpack.c.b16 %v4275, %v4274
      %v4307 = vpack.c.b16 %v4277, %v4276
      %v4308 = vpack.c.b16 %v4279, %v4278
      %v4309 = vpack.c.b16 %v4281, %v4280
      %v4310 = vpack.c.b16 %v4283, %v4282
      %v4311 = vpack.c.b16 %v4285, %v4284
      %v4312 = vpack.c.b16 %v4287, %v4286
      %v4313 = vpack.c.b16 %v4288, %v4288
      %v4355 = vunpack.c.l.b16 %v4175
      %v4356 = vunpack.c.l.b16 %v4176
      %v4357 = vunpack.c.l.b16 %v4177
      %v4358 = vunpack.c.l.b16 %v4178
      %v4359 = vunpack.c.l.b16 %v4179
      %v4360 = vunpack.c.l.b16 %v4180
      %v4361 = vunpack.c.l.b16 %v4181
      %v4362 = vunpack.c.l.b16 %v4182
      %v4363 = vunpack.c.l.b16 %v4183
      %v4364 = vunpack.c.l.b16 %v4184
      %v4365 = vunpack.c.l.b16 %v4185
      %v4366 = vunpack.c.l.b16 %v4186
      %v4367 = vunpack.c.l.b16 %v4187
      %v4368 = vunpack.c.l.b16 %v4188
      %v4369 = vunpack.c.l.b16 %v4189
      %v4370 = vunpack.c.l.b16 %v4190
      %v4371 = vpack.c.b16 %v4356, %v4355
      %v4372 = vpack.c.b16 %v4358, %v4357
      %v4373 = vpack.c.b16 %v4360, %v4359
      %v4374 = vpack.c.b16 %v4362, %v4361
      %v4375 = vpack.c.b16 %v4364, %v4363
      %v4376 = vpack.c.b16 %v4366, %v4365
      %v4377 = vpack.c.b16 %v4368, %v4367
      %v4378 = vpack.c.b16 %v4370, %v4369
      %4387 = vmatprep.subr.bf16.mxu0 0
      %4388 = vmatpush1.bf16.msra.mxu0 %v4378
      %4389 = vmatprep.subr.bf16.mxu0 0
      %4390 = vmatpush1.bf16.msra.mxu0 %v4377
      %4391 = vmatprep.subr.bf16.mxu0 0
      %4392 = vmatpush1.bf16.msra.mxu0 %v4376
      %4393 = vmatprep.subr.bf16.mxu0 0
      %4394 = vmatpush1.bf16.msra.mxu0 %v4375
      %4395 = vmatprep.subr.bf16.mxu0 0
      %4396 = vmatpush1.bf16.msra.mxu0 %v4374
      %4397 = vmatprep.subr.bf16.mxu0 0
      %4398 = vmatpush1.bf16.msra.mxu0 %v4373
      %4399 = vmatprep.subr.bf16.mxu0 0
      %4400 = vmatpush1.bf16.msra.mxu0 %v4372
      %4401 = vmatprep.subr.bf16.mxu0 0
      %4402 = vmatpush1.bf16.msra.mxu0 %v4371
      %4403 = vmatprep.subr.bf16.mxu0 0
      %4404 = vmatpush2.bf16.msra.mxu0 0
      %4405 = vmatprep.subr.bf16.mxu0 0
      %4406 = vmatpush2.bf16.msra.mxu0 0
      %4407 = vmatprep.subr.bf16.mxu0 0
      %4408 = vmatpush2.bf16.msra.mxu0 0
      %4409 = vmatprep.subr.bf16.mxu0 0
      %4410 = vmatpush2.bf16.msra.mxu0 0
      %4411 = vmatprep.subr.bf16.mxu0 0
      %4412 = vmatpush2.bf16.msra.mxu0 0
      %4413 = vmatprep.subr.bf16.mxu0 0
      %4414 = vmatpush2.bf16.msra.mxu0 0
      %4415 = vmatprep.subr.bf16.mxu0 0
      %4416 = vmatpush2.bf16.msra.mxu0 0
      %4417 = vmatprep.subr.bf16.mxu0 0
      %4418 = vmatpush2.bf16.msra.mxu0 0
      %4419 = vmatprep.mubr.bf16.mxu0 0
      %4420 = vmatmul.mubr.bf16.gmra.mxu0 %v4289
      %v4421 = vpop.f32.mrf.mxu0
      %v4422 = vadd.f32 0.0, %v4421
      %v4423 = vpop.f32.mrf.mxu0
      %v4424 = vpop.f32.mrf.mxu0
      %v4425 = vadd.f32 0.0, %v4424
      %v4426 = vpop.f32.mrf.mxu0
      %4427 = vmatprep.mubr.bf16.mxu0 0
      %4428 = vmatmul.mubr.bf16.gmra.mxu0 %v4290
      %v4429 = vpop.f32.mrf.mxu0
      %v4430 = vadd.f32 0.0, %v4429
      %v4431 = vpop.f32.mrf.mxu0
      %v4432 = vpop.f32.mrf.mxu0
      %v4433 = vadd.f32 0.0, %v4432
      %v4434 = vpop.f32.mrf.mxu0
      %4435 = vmatprep.mubr.bf16.mxu0 0
      %4436 = vmatmul.mubr.bf16.gmra.mxu0 %v4291
      %v4437 = vpop.f32.mrf.mxu0
      %v4438 = vadd.f32 0.0, %v4437
      %v4439 = vpop.f32.mrf.mxu0
      %v4440 = vpop.f32.mrf.mxu0
      %v4441 = vadd.f32 0.0, %v4440
      %v4442 = vpop.f32.mrf.mxu0
      %4443 = vmatprep.mubr.bf16.mxu0 0
      %4444 = vmatmul.mubr.bf16.gmra.mxu0 %v4292
      %v4445 = vpop.f32.mrf.mxu0
      %v4446 = vadd.f32 0.0, %v4445
      %v4447 = vpop.f32.mrf.mxu0
      %v4448 = vpop.f32.mrf.mxu0
      %v4449 = vadd.f32 0.0, %v4448
      %v4450 = vpop.f32.mrf.mxu0
      %4451 = vmatprep.mubr.bf16.mxu0 0
      %4452 = vmatmul.mubr.bf16.gmra.mxu0 %v4293
      %v4453 = vpop.f32.mrf.mxu0
      %v4454 = vadd.f32 0.0, %v4453
      %v4455 = vpop.f32.mrf.mxu0
      %v4456 = vpop.f32.mrf.mxu0
      %v4457 = vadd.f32 0.0, %v4456
      %v4458 = vpop.f32.mrf.mxu0
      %4459 = vmatprep.mubr.bf16.mxu0 0
      %4460 = vmatmul.mubr.bf16.gmra.mxu0 %v4294
      %v4461 = vpop.f32.mrf.mxu0
      %v4462 = vadd.f32 0.0, %v4461
      %v4463 = vpop.f32.mrf.mxu0
      %v4464 = vpop.f32.mrf.mxu0
      %v4465 = vadd.f32 0.0, %v4464
      %v4466 = vpop.f32.mrf.mxu0
      %4467 = vmatprep.mubr.bf16.mxu0 0
      %4468 = vmatmul.mubr.bf16.gmra.mxu0 %v4295
      %v4469 = vpop.f32.mrf.mxu0
      %v4470 = vadd.f32 0.0, %v4469
      %v4471 = vpop.f32.mrf.mxu0
      %v4472 = vpop.f32.mrf.mxu0
      %v4473 = vadd.f32 0.0, %v4472
      %v4474 = vpop.f32.mrf.mxu0
      %4475 = vmatprep.mubr.bf16.mxu0 0
      %4476 = vmatmul.mubr.bf16.gmra.mxu0 %v4296
      %v4477 = vpop.f32.mrf.mxu0
      %v4478 = vadd.f32 0.0, %v4477
      %v4479 = vpop.f32.mrf.mxu0
      %v4480 = vpop.f32.mrf.mxu0
      %v4481 = vadd.f32 0.0, %v4480
      %v4482 = vpop.f32.mrf.mxu0
      %4483 = vmatprep.mubr.bf16.mxu0 0
      %4484 = vmatmul.mubr.bf16.gmra.mxu0 %v4297
      %v4485 = vpop.f32.mrf.mxu0
      %v4486 = vadd.f32 0.0, %v4485
      %v4487 = vpop.f32.mrf.mxu0
      %v4488 = vpop.f32.mrf.mxu0
      %v4489 = vadd.f32 0.0, %v4488
      %v4490 = vpop.f32.mrf.mxu0
      %4491 = vmatprep.mubr.bf16.mxu0 0
      %4492 = vmatmul.mubr.bf16.gmra.mxu0 %v4298
      %v4493 = vpop.f32.mrf.mxu0
      %v4494 = vadd.f32 0.0, %v4493
      %v4495 = vpop.f32.mrf.mxu0
      %v4496 = vpop.f32.mrf.mxu0
      %v4497 = vadd.f32 0.0, %v4496
      %v4498 = vpop.f32.mrf.mxu0
      %4499 = vmatprep.mubr.bf16.mxu0 0
      %4500 = vmatmul.mubr.bf16.gmra.mxu0 %v4299
      %v4501 = vpop.f32.mrf.mxu0
      %v4502 = vadd.f32 0.0, %v4501
      %v4503 = vpop.f32.mrf.mxu0
      %v4504 = vpop.f32.mrf.mxu0
      %v4505 = vadd.f32 0.0, %v4504
      %v4506 = vpop.f32.mrf.mxu0
      %4507 = vmatprep.mubr.bf16.mxu0 0
      %4508 = vmatmul.mubr.bf16.gmra.mxu0 %v4300
      %v4509 = vpop.f32.mrf.mxu0
      %v4510 = vadd.f32 0.0, %v4509
      %v4511 = vpop.f32.mrf.mxu0
      %v4512 = vpop.f32.mrf.mxu0
      %v4513 = vadd.f32 0.0, %v4512
      %v4514 = vpop.f32.mrf.mxu0
      %4515 = vmatprep.mubr.bf16.mxu0 0
      %4516 = vmatmul.mubr.bf16.gmra.mxu0 %v4301
      %v4517 = vpop.f32.mrf.mxu0
      %v4518 = vadd.f32 0.0, %v4517
      %v4519 = vpop.f32.mrf.mxu0
      %v4520 = vpop.f32.mrf.mxu0
      %v4521 = vadd.f32 0.0, %v4520
      %v4522 = vpop.f32.mrf.mxu0
      %4523 = vmatprep.mubr.bf16.mxu0 0
      %4524 = vmatmul.mubr.bf16.gmra.mxu0 %v4302
      %v4525 = vpop.f32.mrf.mxu0
      %v4526 = vadd.f32 0.0, %v4525
      %v4527 = vpop.f32.mrf.mxu0
      %v4528 = vpop.f32.mrf.mxu0
      %v4529 = vadd.f32 0.0, %v4528
      %v4530 = vpop.f32.mrf.mxu0
      %4531 = vmatprep.mubr.bf16.mxu0 0
      %4532 = vmatmul.mubr.bf16.gmra.mxu0 %v4303
      %v4533 = vpop.f32.mrf.mxu0
      %v4534 = vadd.f32 0.0, %v4533
      %v4535 = vpop.f32.mrf.mxu0
      %v4536 = vpop.f32.mrf.mxu0
      %v4537 = vadd.f32 0.0, %v4536
      %v4538 = vpop.f32.mrf.mxu0
      %4539 = vmatprep.mubr.bf16.mxu0 0
      %4540 = vmatmul.mubr.bf16.gmra.mxu0 %v4304
      %v4541 = vpop.f32.mrf.mxu0
      %v4542 = vadd.f32 0.0, %v4541
      %v4543 = vpop.f32.mrf.mxu0
      %v4544 = vpop.f32.mrf.mxu0
      %v4545 = vadd.f32 0.0, %v4544
      %v4546 = vpop.f32.mrf.mxu0
      %4547 = vmatprep.mubr.bf16.mxu0 0
      %4548 = vmatmul.mubr.bf16.gmra.mxu0 %v4305
      %v4549 = vpop.f32.mrf.mxu0
      %v4550 = vadd.f32 0.0, %v4549
      %v4551 = vpop.f32.mrf.mxu0
      %v4552 = vpop.f32.mrf.mxu0
      %v4553 = vadd.f32 0.0, %v4552
      %v4554 = vpop.f32.mrf.mxu0
      %4555 = vmatprep.mubr.bf16.mxu0 0
      %4556 = vmatmul.mubr.bf16.gmra.mxu0 %v4306
      %v4557 = vpop.f32.mrf.mxu0
      %v4558 = vadd.f32 0.0, %v4557
      %v4559 = vpop.f32.mrf.mxu0
      %v4560 = vpop.f32.mrf.mxu0
      %v4561 = vadd.f32 0.0, %v4560
      %v4562 = vpop.f32.mrf.mxu0
      %4563 = vmatprep.mubr.bf16.mxu0 0
      %4564 = vmatmul.mubr.bf16.gmra.mxu0 %v4307
      %v4565 = vpop.f32.mrf.mxu0
      %v4566 = vadd.f32 0.0, %v4565
      %v4567 = vpop.f32.mrf.mxu0
      %v4568 = vpop.f32.mrf.mxu0
      %v4569 = vadd.f32 0.0, %v4568
      %v4570 = vpop.f32.mrf.mxu0
      %4571 = vmatprep.mubr.bf16.mxu0 0
      %4572 = vmatmul.mubr.bf16.gmra.mxu0 %v4308
      %v4573 = vpop.f32.mrf.mxu0
      %v4574 = vadd.f32 0.0, %v4573
      %v4575 = vpop.f32.mrf.mxu0
      %v4576 = vpop.f32.mrf.mxu0
      %v4577 = vadd.f32 0.0, %v4576
      %v4578 = vpop.f32.mrf.mxu0
      %4579 = vmatprep.mubr.bf16.mxu0 0
      %4580 = vmatmul.mubr.bf16.gmra.mxu0 %v4309
      %v4581 = vpop.f32.mrf.mxu0
      %v4582 = vadd.f32 0.0, %v4581
      %v4583 = vpop.f32.mrf.mxu0
      %v4584 = vpop.f32.mrf.mxu0
      %v4585 = vadd.f32 0.0, %v4584
      %v4586 = vpop.f32.mrf.mxu0
      %4587 = vmatprep.mubr.bf16.mxu0 0
      %4588 = vmatmul.mubr.bf16.gmra.mxu0 %v4310
      %v4589 = vpop.f32.mrf.mxu0
      %v4590 = vadd.f32 0.0, %v4589
      %v4591 = vpop.f32.mrf.mxu0
      %v4592 = vpop.f32.mrf.mxu0
      %v4593 = vadd.f32 0.0, %v4592
      %v4594 = vpop.f32.mrf.mxu0
      %4595 = vmatprep.mubr.bf16.mxu0 0
      %4596 = vmatmul.mubr.bf16.gmra.mxu0 %v4311
      %v4597 = vpop.f32.mrf.mxu0
      %v4598 = vadd.f32 0.0, %v4597
      %v4599 = vpop.f32.mrf.mxu0
      %v4600 = vpop.f32.mrf.mxu0
      %v4601 = vadd.f32 0.0, %v4600
      %v4602 = vpop.f32.mrf.mxu0
      %4603 = vmatprep.mubr.bf16.mxu0 0
      %4604 = vmatmul.mubr.bf16.gmra.mxu0 %v4312
      %v4605 = vpop.f32.mrf.mxu0
      %v4606 = vadd.f32 0.0, %v4605
      %v4607 = vpop.f32.mrf.mxu0
      %v4608 = vpop.f32.mrf.mxu0
      %v4609 = vadd.f32 0.0, %v4608
      %v4610 = vpop.f32.mrf.mxu0
      %4611 = vmatprep.mubr.bf16.mxu0 0
      %4612 = vmatmul.mubr.bf16.gmra.mxu0 %v4313
      %v4613 = vpop.f32.mrf.mxu0
      %v4614 = vpop.f32.mrf.mxu0
      %v4615 = vpop.f32.mrf.mxu0
      %v4616 = vpop.f32.mrf.mxu0
      %4617 = vdwg.mxu0
      %v4618 = vld [vmem:[#allocation2] sm:$0xff]
      %v4619 = vld [vmem:[#allocation2 + $0x8] sm:$0xff]
      %v4620 = vld [vmem:[#allocation2 + $0x10] sm:$0xff]
      %v4621 = vld [vmem:[#allocation2 + $0x18] sm:$0xff]
      %v4622 = vld [vmem:[#allocation2 + $0x20] sm:$0xff]
      %v4623 = vld [vmem:[#allocation2 + $0x28] sm:$0xff]
      %v4624 = vld [vmem:[#allocation2 + $0x30] sm:$0xff]
      %v4625 = vld [vmem:[#allocation2 + $0x38] sm:$0xff]
      %v4626 = vld [vmem:[#allocation2 + $0x40] sm:$0xff]
      %v4627 = vld [vmem:[#allocation2 + $0x48] sm:$0xff]
      %v4628 = vld [vmem:[#allocation2 + $0x50] sm:$0xff]
      %v4629 = vld [vmem:[#allocation2 + $0x58] sm:$0xff]
      %v4630 = vld [vmem:[#allocation2 + $0x60] sm:$0xff]
      %v4631 = vld [vmem:[#allocation2 + $0x68] sm:$0xff]
      %v4632 = vld [vmem:[#allocation2 + $0x70] sm:$0xff]
      %v4633 = vld [vmem:[#allocation2 + $0x78] sm:$0xff]
      %v4634 = vld [vmem:[#allocation2 + $0x80] sm:$0xff]
      %v4635 = vld [vmem:[#allocation2 + $0x88] sm:$0xff]
      %v4636 = vld [vmem:[#allocation2 + $0x90] sm:$0xff]
      %v4637 = vld [vmem:[#allocation2 + $0x98] sm:$0xff]
      %v4638 = vld [vmem:[#allocation2 + $0xa0] sm:$0xff]
      %v4639 = vld [vmem:[#allocation2 + $0xa8] sm:$0xff]
      %v4640 = vld [vmem:[#allocation2 + $0xb0] sm:$0xff]
      %v4641 = vld [vmem:[#allocation2 + $0xb8] sm:$0xff]
      %v4642 = vld [vmem:[#allocation2 + $0xc0] sm:$0xff]
      %v4643 = vld [vmem:[#allocation2 + $0xc8] sm:$0xff]
      %v4644 = vld [vmem:[#allocation2 + $0xd0] sm:$0xff]
      %v4645 = vld [vmem:[#allocation2 + $0xd8] sm:$0xff]
      %v4646 = vld [vmem:[#allocation2 + $0xe0] sm:$0xff]
      %v4647 = vld [vmem:[#allocation2 + $0xe8] sm:$0xff]
      %v4648 = vld [vmem:[#allocation2 + $0xf0] sm:$0xff]
      %v4649 = vld [vmem:[#allocation2 + $0xf8] sm:$0xff]
      %v4650 = vld [vmem:[#allocation2 + $0x100] sm:$0xff]
      %v4651 = vld [vmem:[#allocation2 + $0x108] sm:$0xff]
      %v4652 = vld [vmem:[#allocation2 + $0x110] sm:$0xff]
      %v4653 = vld [vmem:[#allocation2 + $0x118] sm:$0xff]
      %v4654 = vld [vmem:[#allocation2 + $0x120] sm:$0xff]
      %v4655 = vld [vmem:[#allocation2 + $0x128] sm:$0xff]
      %v4656 = vld [vmem:[#allocation2 + $0x130] sm:$0xff]
      %v4657 = vld [vmem:[#allocation2 + $0x138] sm:$0xff]
      %v4658 = vld [vmem:[#allocation2 + $0x140] sm:$0xff]
      %v4659 = vld [vmem:[#allocation2 + $0x148] sm:$0xff]
      %v4660 = vld [vmem:[#allocation2 + $0x150] sm:$0xff]
      %v4661 = vld [vmem:[#allocation2 + $0x158] sm:$0xff]
      %v4662 = vld [vmem:[#allocation2 + $0x160] sm:$0xff]
      %v4663 = vld [vmem:[#allocation2 + $0x168] sm:$0xff]
      %v4664 = vld [vmem:[#allocation2 + $0x170] sm:$0xff]
      %v4665 = vld [vmem:[#allocation2 + $0x178] sm:$0xff]
      %v4666 = vadd.f32 %v4618, %v4422
      %v4667 = vadd.f32 %v4619, %v4425
      %v4668 = vadd.f32 %v4620, %v4430
      %v4669 = vadd.f32 %v4621, %v4433
      %v4670 = vadd.f32 %v4622, %v4438
      %v4671 = vadd.f32 %v4623, %v4441
      %v4672 = vadd.f32 %v4624, %v4446
      %v4673 = vadd.f32 %v4625, %v4449
      %v4674 = vadd.f32 %v4626, %v4454
      %v4675 = vadd.f32 %v4627, %v4457
      %v4676 = vadd.f32 %v4628, %v4462
      %v4677 = vadd.f32 %v4629, %v4465
      %v4678 = vadd.f32 %v4630, %v4470
      %v4679 = vadd.f32 %v4631, %v4473
      %v4680 = vadd.f32 %v4632, %v4478
      %v4681 = vadd.f32 %v4633, %v4481
      %v4682 = vadd.f32 %v4634, %v4486
      %v4683 = vadd.f32 %v4635, %v4489
      %v4684 = vadd.f32 %v4636, %v4494
      %v4685 = vadd.f32 %v4637, %v4497
      %v4686 = vadd.f32 %v4638, %v4502
      %v4687 = vadd.f32 %v4639, %v4505
      %v4688 = vadd.f32 %v4640, %v4510
      %v4689 = vadd.f32 %v4641, %v4513
      %v4690 = vadd.f32 %v4642, %v4518
      %v4691 = vadd.f32 %v4643, %v4521
      %v4692 = vadd.f32 %v4644, %v4526
      %v4693 = vadd.f32 %v4645, %v4529
      %v4694 = vadd.f32 %v4646, %v4534
      %v4695 = vadd.f32 %v4647, %v4537
      %v4696 = vadd.f32 %v4648, %v4542
      %v4697 = vadd.f32 %v4649, %v4545
      %v4698 = vadd.f32 %v4650, %v4550
      %v4699 = vadd.f32 %v4651, %v4553
      %v4700 = vadd.f32 %v4652, %v4558
      %v4701 = vadd.f32 %v4653, %v4561
      %v4702 = vadd.f32 %v4654, %v4566
      %v4703 = vadd.f32 %v4655, %v4569
      %v4704 = vadd.f32 %v4656, %v4574
      %v4705 = vadd.f32 %v4657, %v4577
      %v4706 = vadd.f32 %v4658, %v4582
      %v4707 = vadd.f32 %v4659, %v4585
      %v4708 = vadd.f32 %v4660, %v4590
      %v4709 = vadd.f32 %v4661, %v4593
      %v4710 = vadd.f32 %v4662, %v4598
      %v4711 = vadd.f32 %v4663, %v4601
      %v4712 = vadd.f32 %v4664, %v4606
      %v4713 = vadd.f32 %v4665, %v4609
      %4714 = vst [vmem:[#allocation2] sm:$0xff] %v4666
      %4715 = vst [vmem:[#allocation2 + $0x8] sm:$0xff] %v4667
      %4716 = vst [vmem:[#allocation2 + $0x10] sm:$0xff] %v4668
      %4717 = vst [vmem:[#allocation2 + $0x18] sm:$0xff] %v4669
      %4718 = vst [vmem:[#allocation2 + $0x20] sm:$0xff] %v4670
      %4719 = vst [vmem:[#allocation2 + $0x28] sm:$0xff] %v4671
      %4720 = vst [vmem:[#allocation2 + $0x30] sm:$0xff] %v4672
      %4721 = vst [vmem:[#allocation2 + $0x38] sm:$0xff] %v4673
      %4722 = vst [vmem:[#allocation2 + $0x40] sm:$0xff] %v4674
      %4723 = vst [vmem:[#allocation2 + $0x48] sm:$0xff] %v4675
      %4724 = vst [vmem:[#allocation2 + $0x50] sm:$0xff] %v4676
      %4725 = vst [vmem:[#allocation2 + $0x58] sm:$0xff] %v4677
      %4726 = vst [vmem:[#allocation2 + $0x60] sm:$0xff] %v4678
      %4727 = vst [vmem:[#allocation2 + $0x68] sm:$0xff] %v4679
      %4728 = vst [vmem:[#allocation2 + $0x70] sm:$0xff] %v4680
      %4729 = vst [vmem:[#allocation2 + $0x78] sm:$0xff] %v4681
      %4730 = vst [vmem:[#allocation2 + $0x80] sm:$0xff] %v4682
      %4731 = vst [vmem:[#allocation2 + $0x88] sm:$0xff] %v4683
      %4732 = vst [vmem:[#allocation2 + $0x90] sm:$0xff] %v4684
      %4733 = vst [vmem:[#allocation2 + $0x98] sm:$0xff] %v4685
      %4734 = vst [vmem:[#allocation2 + $0xa0] sm:$0xff] %v4686
      %4735 = vst [vmem:[#allocation2 + $0xa8] sm:$0xff] %v4687
      %4736 = vst [vmem:[#allocation2 + $0xb0] sm:$0xff] %v4688
      %4737 = vst [vmem:[#allocation2 + $0xb8] sm:$0xff] %v4689
      %4738 = vst [vmem:[#allocation2 + $0xc0] sm:$0xff] %v4690
      %4739 = vst [vmem:[#allocation2 + $0xc8] sm:$0xff] %v4691
      %4740 = vst [vmem:[#allocation2 + $0xd0] sm:$0xff] %v4692
      %4741 = vst [vmem:[#allocation2 + $0xd8] sm:$0xff] %v4693
      %4742 = vst [vmem:[#allocation2 + $0xe0] sm:$0xff] %v4694
      %4743 = vst [vmem:[#allocation2 + $0xe8] sm:$0xff] %v4695
      %4744 = vst [vmem:[#allocation2 + $0xf0] sm:$0xff] %v4696
      %4745 = vst [vmem:[#allocation2 + $0xf8] sm:$0xff] %v4697
      %4746 = vst [vmem:[#allocation2 + $0x100] sm:$0xff] %v4698
      %4747 = vst [vmem:[#allocation2 + $0x108] sm:$0xff] %v4699
      %4748 = vst [vmem:[#allocation2 + $0x110] sm:$0xff] %v4700
      %4749 = vst [vmem:[#allocation2 + $0x118] sm:$0xff] %v4701
      %4750 = vst [vmem:[#allocation2 + $0x120] sm:$0xff] %v4702
      %4751 = vst [vmem:[#allocation2 + $0x128] sm:$0xff] %v4703
      %4752 = vst [vmem:[#allocation2 + $0x130] sm:$0xff] %v4704
      %4753 = vst [vmem:[#allocation2 + $0x138] sm:$0xff] %v4705
      %4754 = vst [vmem:[#allocation2 + $0x140] sm:$0xff] %v4706
      %4755 = vst [vmem:[#allocation2 + $0x148] sm:$0xff] %v4707
      %4756 = vst [vmem:[#allocation2 + $0x150] sm:$0xff] %v4708
      %4757 = vst [vmem:[#allocation2 + $0x158] sm:$0xff] %v4709
      %4758 = vst [vmem:[#allocation2 + $0x160] sm:$0xff] %v4710
      %4759 = vst [vmem:[#allocation2 + $0x168] sm:$0xff] %v4711
      %4760 = vst [vmem:[#allocation2 + $0x170] sm:$0xff] %v4712
      %4761 = vst [vmem:[#allocation2 + $0x178] sm:$0xff] %v4713
      %s4762 = sadd.s32 %s343, 112
      %s4763 = smul.addr %s4762, 4
      %s4764 = scalar_lea.vmem %s228, %s4763
      %v4765 = vld [vmem:[%s4764] sm:$0xf]
      %v4766 = vld [vmem:[%s4764 + $0x4] sm:$0xf]
      %v4767 = vld [vmem:[%s4764 + $0x8] sm:$0xf]
      %v4768 = vld [vmem:[%s4764 + $0xc] sm:$0xf]
      %v4769 = vld [vmem:[%s4764 + $0x10] sm:$0xf]
      %v4770 = vld [vmem:[%s4764 + $0x14] sm:$0xf]
      %v4771 = vld [vmem:[%s4764 + $0x18] sm:$0xf]
      %v4772 = vld [vmem:[%s4764 + $0x1c] sm:$0xf]
      %v4773 = vld [vmem:[%s4764 + $0x20] sm:$0xf]
      %v4774 = vld [vmem:[%s4764 + $0x24] sm:$0xf]
      %v4775 = vld [vmem:[%s4764 + $0x28] sm:$0xf]
      %v4776 = vld [vmem:[%s4764 + $0x2c] sm:$0xf]
      %v4777 = vld [vmem:[%s4764 + $0x30] sm:$0xf]
      %v4778 = vld [vmem:[%s4764 + $0x34] sm:$0xf]
      %v4779 = vld [vmem:[%s4764 + $0x38] sm:$0xf]
      %v4780 = vld [vmem:[%s4764 + $0x3c] sm:$0xf]
      %v4797 = vunpack.c.l.b16 %v4765
      %v4798 = vunpack.c.l.b16 %v4766
      %v4799 = vunpack.c.l.b16 %v4767
      %v4800 = vunpack.c.l.b16 %v4768
      %v4801 = vunpack.c.l.b16 %v4769
      %v4802 = vunpack.c.l.b16 %v4770
      %v4803 = vunpack.c.l.b16 %v4771
      %v4804 = vunpack.c.l.b16 %v4772
      %v4805 = vunpack.c.l.b16 %v4773
      %v4806 = vunpack.c.l.b16 %v4774
      %v4807 = vunpack.c.l.b16 %v4775
      %v4808 = vunpack.c.l.b16 %v4776
      %v4809 = vunpack.c.l.b16 %v4777
      %v4810 = vunpack.c.l.b16 %v4778
      %v4811 = vunpack.c.l.b16 %v4779
      %v4812 = vunpack.c.l.b16 %v4780
      %v4813 = vpack.c.b16 %v4798, %v4797
      %v4814 = vpack.c.b16 %v4800, %v4799
      %v4815 = vpack.c.b16 %v4802, %v4801
      %v4816 = vpack.c.b16 %v4804, %v4803
      %v4817 = vpack.c.b16 %v4806, %v4805
      %v4818 = vpack.c.b16 %v4808, %v4807
      %v4819 = vpack.c.b16 %v4810, %v4809
      %v4820 = vpack.c.b16 %v4812, %v4811
      %4829 = vmatprep.subr.bf16.mxu0 0
      %4830 = vmatpush1.bf16.msra.mxu0 %v4820
      %4831 = vmatprep.subr.bf16.mxu0 0
      %4832 = vmatpush1.bf16.msra.mxu0 %v4819
      %4833 = vmatprep.subr.bf16.mxu0 0
      %4834 = vmatpush1.bf16.msra.mxu0 %v4818
      %4835 = vmatprep.subr.bf16.mxu0 0
      %4836 = vmatpush1.bf16.msra.mxu0 %v4817
      %4837 = vmatprep.subr.bf16.mxu0 0
      %4838 = vmatpush1.bf16.msra.mxu0 %v4816
      %4839 = vmatprep.subr.bf16.mxu0 0
      %4840 = vmatpush1.bf16.msra.mxu0 %v4815
      %4841 = vmatprep.subr.bf16.mxu0 0
      %4842 = vmatpush1.bf16.msra.mxu0 %v4814
      %4843 = vmatprep.subr.bf16.mxu0 0
      %4844 = vmatpush1.bf16.msra.mxu0 %v4813
      %4845 = vmatprep.subr.bf16.mxu0 0
      %4846 = vmatpush2.bf16.msra.mxu0 0
      %4847 = vmatprep.subr.bf16.mxu0 0
      %4848 = vmatpush2.bf16.msra.mxu0 0
      %4849 = vmatprep.subr.bf16.mxu0 0
      %4850 = vmatpush2.bf16.msra.mxu0 0
      %4851 = vmatprep.subr.bf16.mxu0 0
      %4852 = vmatpush2.bf16.msra.mxu0 0
      %4853 = vmatprep.subr.bf16.mxu0 0
      %4854 = vmatpush2.bf16.msra.mxu0 0
      %4855 = vmatprep.subr.bf16.mxu0 0
      %4856 = vmatpush2.bf16.msra.mxu0 0
      %4857 = vmatprep.subr.bf16.mxu0 0
      %4858 = vmatpush2.bf16.msra.mxu0 0
      %4859 = vmatprep.subr.bf16.mxu0 0
      %4860 = vmatpush2.bf16.msra.mxu0 0
      %4861 = vmatprep.mubr.bf16.mxu0 0
      %4862 = vmatmul.mubr.bf16.gmra.mxu0 %v4289
      %v4863 = vpop.f32.mrf.mxu0
      %v4864 = vadd.f32 0.0, %v4863
      %v4865 = vpop.f32.mrf.mxu0
      %v4866 = vpop.f32.mrf.mxu0
      %v4867 = vadd.f32 0.0, %v4866
      %v4868 = vpop.f32.mrf.mxu0
      %4869 = vmatprep.mubr.bf16.mxu0 0
      %4870 = vmatmul.mubr.bf16.gmra.mxu0 %v4290
      %v4871 = vpop.f32.mrf.mxu0
      %v4872 = vadd.f32 0.0, %v4871
      %v4873 = vpop.f32.mrf.mxu0
      %v4874 = vpop.f32.mrf.mxu0
      %v4875 = vadd.f32 0.0, %v4874
      %v4876 = vpop.f32.mrf.mxu0
      %4877 = vmatprep.mubr.bf16.mxu0 0
      %4878 = vmatmul.mubr.bf16.gmra.mxu0 %v4291
      %v4879 = vpop.f32.mrf.mxu0
      %v4880 = vadd.f32 0.0, %v4879
      %v4881 = vpop.f32.mrf.mxu0
      %v4882 = vpop.f32.mrf.mxu0
      %v4883 = vadd.f32 0.0, %v4882
      %v4884 = vpop.f32.mrf.mxu0
      %4885 = vmatprep.mubr.bf16.mxu0 0
      %4886 = vmatmul.mubr.bf16.gmra.mxu0 %v4292
      %v4887 = vpop.f32.mrf.mxu0
      %v4888 = vadd.f32 0.0, %v4887
      %v4889 = vpop.f32.mrf.mxu0
      %v4890 = vpop.f32.mrf.mxu0
      %v4891 = vadd.f32 0.0, %v4890
      %v4892 = vpop.f32.mrf.mxu0
      %4893 = vmatprep.mubr.bf16.mxu0 0
      %4894 = vmatmul.mubr.bf16.gmra.mxu0 %v4293
      %v4895 = vpop.f32.mrf.mxu0
      %v4896 = vadd.f32 0.0, %v4895
      %v4897 = vpop.f32.mrf.mxu0
      %v4898 = vpop.f32.mrf.mxu0
      %v4899 = vadd.f32 0.0, %v4898
      %v4900 = vpop.f32.mrf.mxu0
      %4901 = vmatprep.mubr.bf16.mxu0 0
      %4902 = vmatmul.mubr.bf16.gmra.mxu0 %v4294
      %v4903 = vpop.f32.mrf.mxu0
      %v4904 = vadd.f32 0.0, %v4903
      %v4905 = vpop.f32.mrf.mxu0
      %v4906 = vpop.f32.mrf.mxu0
      %v4907 = vadd.f32 0.0, %v4906
      %v4908 = vpop.f32.mrf.mxu0
      %4909 = vmatprep.mubr.bf16.mxu0 0
      %4910 = vmatmul.mubr.bf16.gmra.mxu0 %v4295
      %v4911 = vpop.f32.mrf.mxu0
      %v4912 = vadd.f32 0.0, %v4911
      %v4913 = vpop.f32.mrf.mxu0
      %v4914 = vpop.f32.mrf.mxu0
      %v4915 = vadd.f32 0.0, %v4914
      %v4916 = vpop.f32.mrf.mxu0
      %4917 = vmatprep.mubr.bf16.mxu0 0
      %4918 = vmatmul.mubr.bf16.gmra.mxu0 %v4296
      %v4919 = vpop.f32.mrf.mxu0
      %v4920 = vadd.f32 0.0, %v4919
      %v4921 = vpop.f32.mrf.mxu0
      %v4922 = vpop.f32.mrf.mxu0
      %v4923 = vadd.f32 0.0, %v4922
      %v4924 = vpop.f32.mrf.mxu0
      %4925 = vmatprep.mubr.bf16.mxu0 0
      %4926 = vmatmul.mubr.bf16.gmra.mxu0 %v4297
      %v4927 = vpop.f32.mrf.mxu0
      %v4928 = vadd.f32 0.0, %v4927
      %v4929 = vpop.f32.mrf.mxu0
      %v4930 = vpop.f32.mrf.mxu0
      %v4931 = vadd.f32 0.0, %v4930
      %v4932 = vpop.f32.mrf.mxu0
      %4933 = vmatprep.mubr.bf16.mxu0 0
      %4934 = vmatmul.mubr.bf16.gmra.mxu0 %v4298
      %v4935 = vpop.f32.mrf.mxu0
      %v4936 = vadd.f32 0.0, %v4935
      %v4937 = vpop.f32.mrf.mxu0
      %v4938 = vpop.f32.mrf.mxu0
      %v4939 = vadd.f32 0.0, %v4938
      %v4940 = vpop.f32.mrf.mxu0
      %4941 = vmatprep.mubr.bf16.mxu0 0
      %4942 = vmatmul.mubr.bf16.gmra.mxu0 %v4299
      %v4943 = vpop.f32.mrf.mxu0
      %v4944 = vadd.f32 0.0, %v4943
      %v4945 = vpop.f32.mrf.mxu0
      %v4946 = vpop.f32.mrf.mxu0
      %v4947 = vadd.f32 0.0, %v4946
      %v4948 = vpop.f32.mrf.mxu0
      %4949 = vmatprep.mubr.bf16.mxu0 0
      %4950 = vmatmul.mubr.bf16.gmra.mxu0 %v4300
      %v4951 = vpop.f32.mrf.mxu0
      %v4952 = vadd.f32 0.0, %v4951
      %v4953 = vpop.f32.mrf.mxu0
      %v4954 = vpop.f32.mrf.mxu0
      %v4955 = vadd.f32 0.0, %v4954
      %v4956 = vpop.f32.mrf.mxu0
      %4957 = vmatprep.mubr.bf16.mxu0 0
      %4958 = vmatmul.mubr.bf16.gmra.mxu0 %v4301
      %v4959 = vpop.f32.mrf.mxu0
      %v4960 = vadd.f32 0.0, %v4959
      %v4961 = vpop.f32.mrf.mxu0
      %v4962 = vpop.f32.mrf.mxu0
      %v4963 = vadd.f32 0.0, %v4962
      %v4964 = vpop.f32.mrf.mxu0
      %4965 = vmatprep.mubr.bf16.mxu0 0
      %4966 = vmatmul.mubr.bf16.gmra.mxu0 %v4302
      %v4967 = vpop.f32.mrf.mxu0
      %v4968 = vadd.f32 0.0, %v4967
      %v4969 = vpop.f32.mrf.mxu0
      %v4970 = vpop.f32.mrf.mxu0
      %v4971 = vadd.f32 0.0, %v4970
      %v4972 = vpop.f32.mrf.mxu0
      %4973 = vmatprep.mubr.bf16.mxu0 0
      %4974 = vmatmul.mubr.bf16.gmra.mxu0 %v4303
      %v4975 = vpop.f32.mrf.mxu0
      %v4976 = vadd.f32 0.0, %v4975
      %v4977 = vpop.f32.mrf.mxu0
      %v4978 = vpop.f32.mrf.mxu0
      %v4979 = vadd.f32 0.0, %v4978
      %v4980 = vpop.f32.mrf.mxu0
      %4981 = vmatprep.mubr.bf16.mxu0 0
      %4982 = vmatmul.mubr.bf16.gmra.mxu0 %v4304
      %v4983 = vpop.f32.mrf.mxu0
      %v4984 = vadd.f32 0.0, %v4983
      %v4985 = vpop.f32.mrf.mxu0
      %v4986 = vpop.f32.mrf.mxu0
      %v4987 = vadd.f32 0.0, %v4986
      %v4988 = vpop.f32.mrf.mxu0
      %4989 = vmatprep.mubr.bf16.mxu0 0
      %4990 = vmatmul.mubr.bf16.gmra.mxu0 %v4305
      %v4991 = vpop.f32.mrf.mxu0
      %v4992 = vadd.f32 0.0, %v4991
      %v4993 = vpop.f32.mrf.mxu0
      %v4994 = vpop.f32.mrf.mxu0
      %v4995 = vadd.f32 0.0, %v4994
      %v4996 = vpop.f32.mrf.mxu0
      %4997 = vmatprep.mubr.bf16.mxu0 0
      %4998 = vmatmul.mubr.bf16.gmra.mxu0 %v4306
      %v4999 = vpop.f32.mrf.mxu0
      %v5000 = vadd.f32 0.0, %v4999
      %v5001 = vpop.f32.mrf.mxu0
      %v5002 = vpop.f32.mrf.mxu0
      %v5003 = vadd.f32 0.0, %v5002
      %v5004 = vpop.f32.mrf.mxu0
      %5005 = vmatprep.mubr.bf16.mxu0 0
      %5006 = vmatmul.mubr.bf16.gmra.mxu0 %v4307
      %v5007 = vpop.f32.mrf.mxu0
      %v5008 = vadd.f32 0.0, %v5007
      %v5009 = vpop.f32.mrf.mxu0
      %v5010 = vpop.f32.mrf.mxu0
      %v5011 = vadd.f32 0.0, %v5010
      %v5012 = vpop.f32.mrf.mxu0
      %5013 = vmatprep.mubr.bf16.mxu0 0
      %5014 = vmatmul.mubr.bf16.gmra.mxu0 %v4308
      %v5015 = vpop.f32.mrf.mxu0
      %v5016 = vadd.f32 0.0, %v5015
      %v5017 = vpop.f32.mrf.mxu0
      %v5018 = vpop.f32.mrf.mxu0
      %v5019 = vadd.f32 0.0, %v5018
      %v5020 = vpop.f32.mrf.mxu0
      %5021 = vmatprep.mubr.bf16.mxu0 0
      %5022 = vmatmul.mubr.bf16.gmra.mxu0 %v4309
      %v5023 = vpop.f32.mrf.mxu0
      %v5024 = vadd.f32 0.0, %v5023
      %v5025 = vpop.f32.mrf.mxu0
      %v5026 = vpop.f32.mrf.mxu0
      %v5027 = vadd.f32 0.0, %v5026
      %v5028 = vpop.f32.mrf.mxu0
      %5029 = vmatprep.mubr.bf16.mxu0 0
      %5030 = vmatmul.mubr.bf16.gmra.mxu0 %v4310
      %v5031 = vpop.f32.mrf.mxu0
      %v5032 = vadd.f32 0.0, %v5031
      %v5033 = vpop.f32.mrf.mxu0
      %v5034 = vpop.f32.mrf.mxu0
      %v5035 = vadd.f32 0.0, %v5034
      %v5036 = vpop.f32.mrf.mxu0
      %5037 = vmatprep.mubr.bf16.mxu0 0
      %5038 = vmatmul.mubr.bf16.gmra.mxu0 %v4311
      %v5039 = vpop.f32.mrf.mxu0
      %v5040 = vadd.f32 0.0, %v5039
      %v5041 = vpop.f32.mrf.mxu0
      %v5042 = vpop.f32.mrf.mxu0
      %v5043 = vadd.f32 0.0, %v5042
      %v5044 = vpop.f32.mrf.mxu0
      %5045 = vmatprep.mubr.bf16.mxu0 0
      %5046 = vmatmul.mubr.bf16.gmra.mxu0 %v4312
      %v5047 = vpop.f32.mrf.mxu0
      %v5048 = vadd.f32 0.0, %v5047
      %v5049 = vpop.f32.mrf.mxu0
      %v5050 = vpop.f32.mrf.mxu0
      %v5051 = vadd.f32 0.0, %v5050
      %v5052 = vpop.f32.mrf.mxu0
      %5053 = vmatprep.mubr.bf16.mxu0 0
      %5054 = vmatmul.mubr.bf16.gmra.mxu0 %v4313
      %v5055 = vpop.f32.mrf.mxu0
      %v5056 = vadd.f32 0.0, %v5055
      %v5057 = vpop.f32.mrf.mxu0
      %v5058 = vpop.f32.mrf.mxu0
      %v5059 = vpop.f32.mrf.mxu0
      %5060 = vdwg.mxu0
      %v5061 = vld [vmem:[#allocation2] sm:$0xff]
      %v5062 = vld [vmem:[#allocation2 + $0x8] sm:$0xff]
      %v5063 = vld [vmem:[#allocation2 + $0x10] sm:$0xff]
      %v5064 = vld [vmem:[#allocation2 + $0x18] sm:$0xff]
      %v5065 = vld [vmem:[#allocation2 + $0x20] sm:$0xff]
      %v5066 = vld [vmem:[#allocation2 + $0x28] sm:$0xff]
      %v5067 = vld [vmem:[#allocation2 + $0x30] sm:$0xff]
      %v5068 = vld [vmem:[#allocation2 + $0x38] sm:$0xff]
      %v5069 = vld [vmem:[#allocation2 + $0x40] sm:$0xff]
      %v5070 = vld [vmem:[#allocation2 + $0x48] sm:$0xff]
      %v5071 = vld [vmem:[#allocation2 + $0x50] sm:$0xff]
      %v5072 = vld [vmem:[#allocation2 + $0x58] sm:$0xff]
      %v5073 = vld [vmem:[#allocation2 + $0x60] sm:$0xff]
      %v5074 = vld [vmem:[#allocation2 + $0x68] sm:$0xff]
      %v5075 = vld [vmem:[#allocation2 + $0x70] sm:$0xff]
      %v5076 = vld [vmem:[#allocation2 + $0x78] sm:$0xff]
      %v5077 = vld [vmem:[#allocation2 + $0x80] sm:$0xff]
      %v5078 = vld [vmem:[#allocation2 + $0x88] sm:$0xff]
      %v5079 = vld [vmem:[#allocation2 + $0x90] sm:$0xff]
      %v5080 = vld [vmem:[#allocation2 + $0x98] sm:$0xff]
      %v5081 = vld [vmem:[#allocation2 + $0xa0] sm:$0xff]
      %v5082 = vld [vmem:[#allocation2 + $0xa8] sm:$0xff]
      %v5083 = vld [vmem:[#allocation2 + $0xb0] sm:$0xff]
      %v5084 = vld [vmem:[#allocation2 + $0xb8] sm:$0xff]
      %v5085 = vld [vmem:[#allocation2 + $0xc0] sm:$0xff]
      %v5086 = vld [vmem:[#allocation2 + $0xc8] sm:$0xff]
      %v5087 = vld [vmem:[#allocation2 + $0xd0] sm:$0xff]
      %v5088 = vld [vmem:[#allocation2 + $0xd8] sm:$0xff]
      %v5089 = vld [vmem:[#allocation2 + $0xe0] sm:$0xff]
      %v5090 = vld [vmem:[#allocation2 + $0xe8] sm:$0xff]
      %v5091 = vld [vmem:[#allocation2 + $0xf0] sm:$0xff]
      %v5092 = vld [vmem:[#allocation2 + $0xf8] sm:$0xff]
      %v5093 = vld [vmem:[#allocation2 + $0x100] sm:$0xff]
      %v5094 = vld [vmem:[#allocation2 + $0x108] sm:$0xff]
      %v5095 = vld [vmem:[#allocation2 + $0x110] sm:$0xff]
      %v5096 = vld [vmem:[#allocation2 + $0x118] sm:$0xff]
      %v5097 = vld [vmem:[#allocation2 + $0x120] sm:$0xff]
      %v5098 = vld [vmem:[#allocation2 + $0x128] sm:$0xff]
      %v5099 = vld [vmem:[#allocation2 + $0x130] sm:$0xff]
      %v5100 = vld [vmem:[#allocation2 + $0x138] sm:$0xff]
      %v5101 = vld [vmem:[#allocation2 + $0x140] sm:$0xff]
      %v5102 = vld [vmem:[#allocation2 + $0x148] sm:$0xff]
      %v5103 = vld [vmem:[#allocation2 + $0x150] sm:$0xff]
      %v5104 = vld [vmem:[#allocation2 + $0x158] sm:$0xff]
      %v5105 = vld [vmem:[#allocation2 + $0x160] sm:$0xff]
      %v5106 = vld [vmem:[#allocation2 + $0x168] sm:$0xff]
      %v5107 = vld [vmem:[#allocation2 + $0x170] sm:$0xff]
      %v5108 = vld [vmem:[#allocation2 + $0x178] sm:$0xff]
      %v5158 = vrot.slane %v4864, 2
      %v5159 = vrot.slane %v4867, 2
      %v5160 = vsel %vm1330, %v5158, %v5159
      %v5161 = vrot.slane %v4872, 2
      %v5162 = vsel %vm1330, %v5159, %v5161
      %v5163 = vrot.slane %v4875, 2
      %v5164 = vsel %vm1330, %v5161, %v5163
      %v5165 = vrot.slane %v4880, 2
      %v5166 = vsel %vm1330, %v5163, %v5165
      %v5167 = vrot.slane %v4883, 2
      %v5168 = vsel %vm1330, %v5165, %v5167
      %v5169 = vrot.slane %v4888, 2
      %v5170 = vsel %vm1330, %v5167, %v5169
      %v5171 = vrot.slane %v4891, 2
      %v5172 = vsel %vm1330, %v5169, %v5171
      %v5173 = vrot.slane %v4896, 2
      %v5174 = vsel %vm1330, %v5171, %v5173
      %v5175 = vrot.slane %v4899, 2
      %v5176 = vsel %vm1330, %v5173, %v5175
      %v5177 = vrot.slane %v4904, 2
      %v5178 = vsel %vm1330, %v5175, %v5177
      %v5179 = vrot.slane %v4907, 2
      %v5180 = vsel %vm1330, %v5177, %v5179
      %v5181 = vrot.slane %v4912, 2
      %v5182 = vsel %vm1330, %v5179, %v5181
      %v5183 = vrot.slane %v4915, 2
      %v5184 = vsel %vm1330, %v5181, %v5183
      %v5185 = vrot.slane %v4920, 2
      %v5186 = vsel %vm1330, %v5183, %v5185
      %v5187 = vrot.slane %v4923, 2
      %v5188 = vsel %vm1330, %v5185, %v5187
      %v5189 = vrot.slane %v4928, 2
      %v5190 = vsel %vm1330, %v5187, %v5189
      %v5191 = vrot.slane %v4931, 2
      %v5192 = vsel %vm1330, %v5189, %v5191
      %v5193 = vrot.slane %v4936, 2
      %v5194 = vsel %vm1330, %v5191, %v5193
      %v5195 = vrot.slane %v4939, 2
      %v5196 = vsel %vm1330, %v5193, %v5195
      %v5197 = vrot.slane %v4944, 2
      %v5198 = vsel %vm1330, %v5195, %v5197
      %v5199 = vrot.slane %v4947, 2
      %v5200 = vsel %vm1330, %v5197, %v5199
      %v5201 = vrot.slane %v4952, 2
      %v5202 = vsel %vm1330, %v5199, %v5201
      %v5203 = vrot.slane %v4955, 2
      %v5204 = vsel %vm1330, %v5201, %v5203
      %v5205 = vrot.slane %v4960, 2
      %v5206 = vsel %vm1330, %v5203, %v5205
      %v5207 = vrot.slane %v4963, 2
      %v5208 = vsel %vm1330, %v5205, %v5207
      %v5209 = vrot.slane %v4968, 2
      %v5210 = vsel %vm1330, %v5207, %v5209
      %v5211 = vrot.slane %v4971, 2
      %v5212 = vsel %vm1330, %v5209, %v5211
      %v5213 = vrot.slane %v4976, 2
      %v5214 = vsel %vm1330, %v5211, %v5213
      %v5215 = vrot.slane %v4979, 2
      %v5216 = vsel %vm1330, %v5213, %v5215
      %v5217 = vrot.slane %v4984, 2
      %v5218 = vsel %vm1330, %v5215, %v5217
      %v5219 = vrot.slane %v4987, 2
      %v5220 = vsel %vm1330, %v5217, %v5219
      %v5221 = vrot.slane %v4992, 2
      %v5222 = vsel %vm1330, %v5219, %v5221
      %v5223 = vrot.slane %v4995, 2
      %v5224 = vsel %vm1330, %v5221, %v5223
      %v5225 = vrot.slane %v5000, 2
      %v5226 = vsel %vm1330, %v5223, %v5225
      %v5227 = vrot.slane %v5003, 2
      %v5228 = vsel %vm1330, %v5225, %v5227
      %v5229 = vrot.slane %v5008, 2
      %v5230 = vsel %vm1330, %v5227, %v5229
      %v5231 = vrot.slane %v5011, 2
      %v5232 = vsel %vm1330, %v5229, %v5231
      %v5233 = vrot.slane %v5016, 2
      %v5234 = vsel %vm1330, %v5231, %v5233
      %v5235 = vrot.slane %v5019, 2
      %v5236 = vsel %vm1330, %v5233, %v5235
      %v5237 = vrot.slane %v5024, 2
      %v5238 = vsel %vm1330, %v5235, %v5237
      %v5239 = vrot.slane %v5027, 2
      %v5240 = vsel %vm1330, %v5237, %v5239
      %v5241 = vrot.slane %v5032, 2
      %v5242 = vsel %vm1330, %v5239, %v5241
      %v5243 = vrot.slane %v5035, 2
      %v5244 = vsel %vm1330, %v5241, %v5243
      %v5245 = vrot.slane %v5040, 2
      %v5246 = vsel %vm1330, %v5243, %v5245
      %v5247 = vrot.slane %v5043, 2
      %v5248 = vsel %vm1330, %v5245, %v5247
      %v5249 = vrot.slane %v5048, 2
      %v5250 = vsel %vm1330, %v5247, %v5249
      %v5251 = vrot.slane %v5051, 2
      %v5252 = vsel %vm1330, %v5249, %v5251
      %v5253 = vrot.slane %v5056, 2
      %v5254 = vsel %vm1330, %v5251, %v5253
      %v5303 = vadd.f32 %v5061, %v5160
      %v5304 = vadd.f32 %v5062, %v5162
      %v5305 = vadd.f32 %v5063, %v5164
      %v5306 = vadd.f32 %v5064, %v5166
      %v5307 = vadd.f32 %v5065, %v5168
      %v5308 = vadd.f32 %v5066, %v5170
      %v5309 = vadd.f32 %v5067, %v5172
      %v5310 = vadd.f32 %v5068, %v5174
      %v5311 = vadd.f32 %v5069, %v5176
      %v5312 = vadd.f32 %v5070, %v5178
      %v5313 = vadd.f32 %v5071, %v5180
      %v5314 = vadd.f32 %v5072, %v5182
      %v5315 = vadd.f32 %v5073, %v5184
      %v5316 = vadd.f32 %v5074, %v5186
      %v5317 = vadd.f32 %v5075, %v5188
      %v5318 = vadd.f32 %v5076, %v5190
      %v5319 = vadd.f32 %v5077, %v5192
      %v5320 = vadd.f32 %v5078, %v5194
      %v5321 = vadd.f32 %v5079, %v5196
      %v5322 = vadd.f32 %v5080, %v5198
      %v5323 = vadd.f32 %v5081, %v5200
      %v5324 = vadd.f32 %v5082, %v5202
      %v5325 = vadd.f32 %v5083, %v5204
      %v5326 = vadd.f32 %v5084, %v5206
      %v5327 = vadd.f32 %v5085, %v5208
      %v5328 = vadd.f32 %v5086, %v5210
      %v5329 = vadd.f32 %v5087, %v5212
      %v5330 = vadd.f32 %v5088, %v5214
      %v5331 = vadd.f32 %v5089, %v5216
      %v5332 = vadd.f32 %v5090, %v5218
      %v5333 = vadd.f32 %v5091, %v5220
      %v5334 = vadd.f32 %v5092, %v5222
      %v5335 = vadd.f32 %v5093, %v5224
      %v5336 = vadd.f32 %v5094, %v5226
      %v5337 = vadd.f32 %v5095, %v5228
      %v5338 = vadd.f32 %v5096, %v5230
      %v5339 = vadd.f32 %v5097, %v5232
      %v5340 = vadd.f32 %v5098, %v5234
      %v5341 = vadd.f32 %v5099, %v5236
      %v5342 = vadd.f32 %v5100, %v5238
      %v5343 = vadd.f32 %v5101, %v5240
      %v5344 = vadd.f32 %v5102, %v5242
      %v5345 = vadd.f32 %v5103, %v5244
      %v5346 = vadd.f32 %v5104, %v5246
      %v5347 = vadd.f32 %v5105, %v5248
      %v5348 = vadd.f32 %v5106, %v5250
      %v5349 = vadd.f32 %v5107, %v5252
      %v5350 = vadd.f32 %v5108, %v5254
      %5351 = vst [vmem:[#allocation2] sm:$0xff] %v5303
      %5352 = vst [vmem:[#allocation2 + $0x8] sm:$0xff] %v5304
      %5353 = vst [vmem:[#allocation2 + $0x10] sm:$0xff] %v5305
      %5354 = vst [vmem:[#allocation2 + $0x18] sm:$0xff] %v5306
      %5355 = vst [vmem:[#allocation2 + $0x20] sm:$0xff] %v5307
      %5356 = vst [vmem:[#allocation2 + $0x28] sm:$0xff] %v5308
      %5357 = vst [vmem:[#allocation2 + $0x30] sm:$0xff] %v5309
      %5358 = vst [vmem:[#allocation2 + $0x38] sm:$0xff] %v5310
      %5359 = vst [vmem:[#allocation2 + $0x40] sm:$0xff] %v5311
      %5360 = vst [vmem:[#allocation2 + $0x48] sm:$0xff] %v5312
      %5361 = vst [vmem:[#allocation2 + $0x50] sm:$0xff] %v5313
      %5362 = vst [vmem:[#allocation2 + $0x58] sm:$0xff] %v5314
      %5363 = vst [vmem:[#allocation2 + $0x60] sm:$0xff] %v5315
      %5364 = vst [vmem:[#allocation2 + $0x68] sm:$0xff] %v5316
      %5365 = vst [vmem:[#allocation2 + $0x70] sm:$0xff] %v5317
      %5366 = vst [vmem:[#allocation2 + $0x78] sm:$0xff] %v5318
      %5367 = vst [vmem:[#allocation2 + $0x80] sm:$0xff] %v5319
      %5368 = vst [vmem:[#allocation2 + $0x88] sm:$0xff] %v5320
      %5369 = vst [vmem:[#allocation2 + $0x90] sm:$0xff] %v5321
      %5370 = vst [vmem:[#allocation2 + $0x98] sm:$0xff] %v5322
      %5371 = vst [vmem:[#allocation2 + $0xa0] sm:$0xff] %v5323
      %5372 = vst [vmem:[#allocation2 + $0xa8] sm:$0xff] %v5324
      %5373 = vst [vmem:[#allocation2 + $0xb0] sm:$0xff] %v5325
      %5374 = vst [vmem:[#allocation2 + $0xb8] sm:$0xff] %v5326
      %5375 = vst [vmem:[#allocation2 + $0xc0] sm:$0xff] %v5327
      %5376 = vst [vmem:[#allocation2 + $0xc8] sm:$0xff] %v5328
      %5377 = vst [vmem:[#allocation2 + $0xd0] sm:$0xff] %v5329
      %5378 = vst [vmem:[#allocation2 + $0xd8] sm:$0xff] %v5330
      %5379 = vst [vmem:[#allocation2 + $0xe0] sm:$0xff] %v5331
      %5380 = vst [vmem:[#allocation2 + $0xe8] sm:$0xff] %v5332
      %5381 = vst [vmem:[#allocation2 + $0xf0] sm:$0xff] %v5333
      %5382 = vst [vmem:[#allocation2 + $0xf8] sm:$0xff] %v5334
      %5383 = vst [vmem:[#allocation2 + $0x100] sm:$0xff] %v5335
      %5384 = vst [vmem:[#allocation2 + $0x108] sm:$0xff] %v5336
      %5385 = vst [vmem:[#allocation2 + $0x110] sm:$0xff] %v5337
      %5386 = vst [vmem:[#allocation2 + $0x118] sm:$0xff] %v5338
      %5387 = vst [vmem:[#allocation2 + $0x120] sm:$0xff] %v5339
      %5388 = vst [vmem:[#allocation2 + $0x128] sm:$0xff] %v5340
      %5389 = vst [vmem:[#allocation2 + $0x130] sm:$0xff] %v5341
      %5390 = vst [vmem:[#allocation2 + $0x138] sm:$0xff] %v5342
      %5391 = vst [vmem:[#allocation2 + $0x140] sm:$0xff] %v5343
      %5392 = vst [vmem:[#allocation2 + $0x148] sm:$0xff] %v5344
      %5393 = vst [vmem:[#allocation2 + $0x150] sm:$0xff] %v5345
      %5394 = vst [vmem:[#allocation2 + $0x158] sm:$0xff] %v5346
      %5395 = vst [vmem:[#allocation2 + $0x160] sm:$0xff] %v5347
      %5396 = vst [vmem:[#allocation2 + $0x168] sm:$0xff] %v5348
      %5397 = vst [vmem:[#allocation2 + $0x170] sm:$0xff] %v5349
      %5398 = vst [vmem:[#allocation2 + $0x178] sm:$0xff] %v5350
      %s5399 = sadd.s32 %s343, 128
      %s5400 = smul.addr %s5399, 4
      %s5401 = scalar_lea.vmem %s228, %s5400
      %v5402 = vld [vmem:[%s5401] sm:$0xf]
      %v5403 = vld [vmem:[%s5401 + $0x4] sm:$0xf]
      %v5404 = vld [vmem:[%s5401 + $0x8] sm:$0xf]
      %v5405 = vld [vmem:[%s5401 + $0xc] sm:$0xf]
      %v5406 = vld [vmem:[%s5401 + $0x10] sm:$0xf]
      %v5407 = vld [vmem:[%s5401 + $0x14] sm:$0xf]
      %v5408 = vld [vmem:[%s5401 + $0x18] sm:$0xf]
      %v5409 = vld [vmem:[%s5401 + $0x1c] sm:$0xf]
      %v5410 = vld [vmem:[%s5401 + $0x20] sm:$0xf]
      %v5411 = vld [vmem:[%s5401 + $0x24] sm:$0xf]
      %v5412 = vld [vmem:[%s5401 + $0x28] sm:$0xf]
      %v5413 = vld [vmem:[%s5401 + $0x2c] sm:$0xf]
      %v5414 = vld [vmem:[%s5401 + $0x30] sm:$0xf]
      %v5415 = vld [vmem:[%s5401 + $0x34] sm:$0xf]
      %v5416 = vld [vmem:[%s5401 + $0x38] sm:$0xf]
      %v5417 = vld [vmem:[%s5401 + $0x3c] sm:$0xf]
      %v5434 = vunpack.c.l.b16 %v5402
      %v5435 = vunpack.c.l.b16 %v5403
      %v5436 = vunpack.c.l.b16 %v5404
      %v5437 = vunpack.c.l.b16 %v5405
      %v5438 = vunpack.c.l.b16 %v5406
      %v5439 = vunpack.c.l.b16 %v5407
      %v5440 = vunpack.c.l.b16 %v5408
      %v5441 = vunpack.c.l.b16 %v5409
      %v5442 = vunpack.c.l.b16 %v5410
      %v5443 = vunpack.c.l.b16 %v5411
      %v5444 = vunpack.c.l.b16 %v5412
      %v5445 = vunpack.c.l.b16 %v5413
      %v5446 = vunpack.c.l.b16 %v5414
      %v5447 = vunpack.c.l.b16 %v5415
      %v5448 = vunpack.c.l.b16 %v5416
      %v5449 = vunpack.c.l.b16 %v5417
      %v5450 = vpack.c.b16 %v5435, %v5434
      %v5451 = vpack.c.b16 %v5437, %v5436
      %v5452 = vpack.c.b16 %v5439, %v5438
      %v5453 = vpack.c.b16 %v5441, %v5440
      %v5454 = vpack.c.b16 %v5443, %v5442
      %v5455 = vpack.c.b16 %v5445, %v5444
      %v5456 = vpack.c.b16 %v5447, %v5446
      %v5457 = vpack.c.b16 %v5449, %v5448
      %5466 = vmatprep.subr.bf16.mxu0 0
      %5467 = vmatpush1.bf16.msra.mxu0 %v5457
      %5468 = vmatprep.subr.bf16.mxu0 0
      %5469 = vmatpush1.bf16.msra.mxu0 %v5456
      %5470 = vmatprep.subr.bf16.mxu0 0
      %5471 = vmatpush1.bf16.msra.mxu0 %v5455
      %5472 = vmatprep.subr.bf16.mxu0 0
      %5473 = vmatpush1.bf16.msra.mxu0 %v5454
      %5474 = vmatprep.subr.bf16.mxu0 0
      %5475 = vmatpush1.bf16.msra.mxu0 %v5453
      %5476 = vmatprep.subr.bf16.mxu0 0
      %5477 = vmatpush1.bf16.msra.mxu0 %v5452
      %5478 = vmatprep.subr.bf16.mxu0 0
      %5479 = vmatpush1.bf16.msra.mxu0 %v5451
      %5480 = vmatprep.subr.bf16.mxu0 0
      %5481 = vmatpush1.bf16.msra.mxu0 %v5450
      %5482 = vmatprep.subr.bf16.mxu0 0
      %5483 = vmatpush2.bf16.msra.mxu0 0
      %5484 = vmatprep.subr.bf16.mxu0 0
      %5485 = vmatpush2.bf16.msra.mxu0 0
      %5486 = vmatprep.subr.bf16.mxu0 0
      %5487 = vmatpush2.bf16.msra.mxu0 0
      %5488 = vmatprep.subr.bf16.mxu0 0
      %5489 = vmatpush2.bf16.msra.mxu0 0
      %5490 = vmatprep.subr.bf16.mxu0 0
      %5491 = vmatpush2.bf16.msra.mxu0 0
      %5492 = vmatprep.subr.bf16.mxu0 0
      %5493 = vmatpush2.bf16.msra.mxu0 0
      %5494 = vmatprep.subr.bf16.mxu0 0
      %5495 = vmatpush2.bf16.msra.mxu0 0
      %5496 = vmatprep.subr.bf16.mxu0 0
      %5497 = vmatpush2.bf16.msra.mxu0 0
      %5498 = vmatprep.mubr.bf16.mxu0 0
      %5499 = vmatmul.mubr.bf16.gmra.mxu0 %v4289
      %v5500 = vpop.f32.mrf.mxu0
      %v5501 = vadd.f32 0.0, %v5500
      %v5502 = vpop.f32.mrf.mxu0
      %v5503 = vpop.f32.mrf.mxu0
      %v5504 = vadd.f32 0.0, %v5503
      %v5505 = vpop.f32.mrf.mxu0
      %5506 = vmatprep.mubr.bf16.mxu0 0
      %5507 = vmatmul.mubr.bf16.gmra.mxu0 %v4290
      %v5508 = vpop.f32.mrf.mxu0
      %v5509 = vadd.f32 0.0, %v5508
      %v5510 = vpop.f32.mrf.mxu0
      %v5511 = vpop.f32.mrf.mxu0
      %v5512 = vadd.f32 0.0, %v5511
      %v5513 = vpop.f32.mrf.mxu0
      %5514 = vmatprep.mubr.bf16.mxu0 0
      %5515 = vmatmul.mubr.bf16.gmra.mxu0 %v4291
      %v5516 = vpop.f32.mrf.mxu0
      %v5517 = vadd.f32 0.0, %v5516
      %v5518 = vpop.f32.mrf.mxu0
      %v5519 = vpop.f32.mrf.mxu0
      %v5520 = vadd.f32 0.0, %v5519
      %v5521 = vpop.f32.mrf.mxu0
      %5522 = vmatprep.mubr.bf16.mxu0 0
      %5523 = vmatmul.mubr.bf16.gmra.mxu0 %v4292
      %v5524 = vpop.f32.mrf.mxu0
      %v5525 = vadd.f32 0.0, %v5524
      %v5526 = vpop.f32.mrf.mxu0
      %v5527 = vpop.f32.mrf.mxu0
      %v5528 = vadd.f32 0.0, %v5527
      %v5529 = vpop.f32.mrf.mxu0
      %5530 = vmatprep.mubr.bf16.mxu0 0
      %5531 = vmatmul.mubr.bf16.gmra.mxu0 %v4293
      %v5532 = vpop.f32.mrf.mxu0
      %v5533 = vadd.f32 0.0, %v5532
      %v5534 = vpop.f32.mrf.mxu0
      %v5535 = vpop.f32.mrf.mxu0
      %v5536 = vadd.f32 0.0, %v5535
      %v5537 = vpop.f32.mrf.mxu0
      %5538 = vmatprep.mubr.bf16.mxu0 0
      %5539 = vmatmul.mubr.bf16.gmra.mxu0 %v4294
      %v5540 = vpop.f32.mrf.mxu0
      %v5541 = vadd.f32 0.0, %v5540
      %v5542 = vpop.f32.mrf.mxu0
      %v5543 = vpop.f32.mrf.mxu0
      %v5544 = vadd.f32 0.0, %v5543
      %v5545 = vpop.f32.mrf.mxu0
      %5546 = vmatprep.mubr.bf16.mxu0 0
      %5547 = vmatmul.mubr.bf16.gmra.mxu0 %v4295
      %v5548 = vpop.f32.mrf.mxu0
      %v5549 = vadd.f32 0.0, %v5548
      %v5550 = vpop.f32.mrf.mxu0
      %v5551 = vpop.f32.mrf.mxu0
      %v5552 = vadd.f32 0.0, %v5551
      %v5553 = vpop.f32.mrf.mxu0
      %5554 = vmatprep.mubr.bf16.mxu0 0
      %5555 = vmatmul.mubr.bf16.gmra.mxu0 %v4296
      %v5556 = vpop.f32.mrf.mxu0
      %v5557 = vadd.f32 0.0, %v5556
      %v5558 = vpop.f32.mrf.mxu0
      %v5559 = vpop.f32.mrf.mxu0
      %v5560 = vadd.f32 0.0, %v5559
      %v5561 = vpop.f32.mrf.mxu0
      %5562 = vmatprep.mubr.bf16.mxu0 0
      %5563 = vmatmul.mubr.bf16.gmra.mxu0 %v4297
      %v5564 = vpop.f32.mrf.mxu0
      %v5565 = vadd.f32 0.0, %v5564
      %v5566 = vpop.f32.mrf.mxu0
      %v5567 = vpop.f32.mrf.mxu0
      %v5568 = vadd.f32 0.0, %v5567
      %v5569 = vpop.f32.mrf.mxu0
      %5570 = vmatprep.mubr.bf16.mxu0 0
      %5571 = vmatmul.mubr.bf16.gmra.mxu0 %v4298
      %v5572 = vpop.f32.mrf.mxu0
      %v5573 = vadd.f32 0.0, %v5572
      %v5574 = vpop.f32.mrf.mxu0
      %v5575 = vpop.f32.mrf.mxu0
      %v5576 = vadd.f32 0.0, %v5575
      %v5577 = vpop.f32.mrf.mxu0
      %5578 = vmatprep.mubr.bf16.mxu0 0
      %5579 = vmatmul.mubr.bf16.gmra.mxu0 %v4299
      %v5580 = vpop.f32.mrf.mxu0
      %v5581 = vadd.f32 0.0, %v5580
      %v5582 = vpop.f32.mrf.mxu0
      %v5583 = vpop.f32.mrf.mxu0
      %v5584 = vadd.f32 0.0, %v5583
      %v5585 = vpop.f32.mrf.mxu0
      %5586 = vmatprep.mubr.bf16.mxu0 0
      %5587 = vmatmul.mubr.bf16.gmra.mxu0 %v4300
      %v5588 = vpop.f32.mrf.mxu0
      %v5589 = vadd.f32 0.0, %v5588
      %v5590 = vpop.f32.mrf.mxu0
      %v5591 = vpop.f32.mrf.mxu0
      %v5592 = vadd.f32 0.0, %v5591
      %v5593 = vpop.f32.mrf.mxu0
      %5594 = vmatprep.mubr.bf16.mxu0 0
      %5595 = vmatmul.mubr.bf16.gmra.mxu0 %v4301
      %v5596 = vpop.f32.mrf.mxu0
      %v5597 = vadd.f32 0.0, %v5596
      %v5598 = vpop.f32.mrf.mxu0
      %v5599 = vpop.f32.mrf.mxu0
      %v5600 = vadd.f32 0.0, %v5599
      %v5601 = vpop.f32.mrf.mxu0
      %5602 = vmatprep.mubr.bf16.mxu0 0
      %5603 = vmatmul.mubr.bf16.gmra.mxu0 %v4302
      %v5604 = vpop.f32.mrf.mxu0
      %v5605 = vadd.f32 0.0, %v5604
      %v5606 = vpop.f32.mrf.mxu0
      %v5607 = vpop.f32.mrf.mxu0
      %v5608 = vadd.f32 0.0, %v5607
      %v5609 = vpop.f32.mrf.mxu0
      %5610 = vmatprep.mubr.bf16.mxu0 0
      %5611 = vmatmul.mubr.bf16.gmra.mxu0 %v4303
      %v5612 = vpop.f32.mrf.mxu0
      %v5613 = vadd.f32 0.0, %v5612
      %v5614 = vpop.f32.mrf.mxu0
      %v5615 = vpop.f32.mrf.mxu0
      %v5616 = vadd.f32 0.0, %v5615
      %v5617 = vpop.f32.mrf.mxu0
      %5618 = vmatprep.mubr.bf16.mxu0 0
      %5619 = vmatmul.mubr.bf16.gmra.mxu0 %v4304
      %v5620 = vpop.f32.mrf.mxu0
      %v5621 = vadd.f32 0.0, %v5620
      %v5622 = vpop.f32.mrf.mxu0
      %v5623 = vpop.f32.mrf.mxu0
      %v5624 = vadd.f32 0.0, %v5623
      %v5625 = vpop.f32.mrf.mxu0
      %5626 = vmatprep.mubr.bf16.mxu0 0
      %5627 = vmatmul.mubr.bf16.gmra.mxu0 %v4305
      %v5628 = vpop.f32.mrf.mxu0
      %v5629 = vadd.f32 0.0, %v5628
      %v5630 = vpop.f32.mrf.mxu0
      %v5631 = vpop.f32.mrf.mxu0
      %v5632 = vadd.f32 0.0, %v5631
      %v5633 = vpop.f32.mrf.mxu0
      %5634 = vmatprep.mubr.bf16.mxu0 0
      %5635 = vmatmul.mubr.bf16.gmra.mxu0 %v4306
      %v5636 = vpop.f32.mrf.mxu0
      %v5637 = vadd.f32 0.0, %v5636
      %v5638 = vpop.f32.mrf.mxu0
      %v5639 = vpop.f32.mrf.mxu0
      %v5640 = vadd.f32 0.0, %v5639
      %v5641 = vpop.f32.mrf.mxu0
      %5642 = vmatprep.mubr.bf16.mxu0 0
      %5643 = vmatmul.mubr.bf16.gmra.mxu0 %v4307
      %v5644 = vpop.f32.mrf.mxu0
      %v5645 = vadd.f32 0.0, %v5644
      %v5646 = vpop.f32.mrf.mxu0
      %v5647 = vpop.f32.mrf.mxu0
      %v5648 = vadd.f32 0.0, %v5647
      %v5649 = vpop.f32.mrf.mxu0
      %5650 = vmatprep.mubr.bf16.mxu0 0
      %5651 = vmatmul.mubr.bf16.gmra.mxu0 %v4308
      %v5652 = vpop.f32.mrf.mxu0
      %v5653 = vadd.f32 0.0, %v5652
      %v5654 = vpop.f32.mrf.mxu0
      %v5655 = vpop.f32.mrf.mxu0
      %v5656 = vadd.f32 0.0, %v5655
      %v5657 = vpop.f32.mrf.mxu0
      %5658 = vmatprep.mubr.bf16.mxu0 0
      %5659 = vmatmul.mubr.bf16.gmra.mxu0 %v4309
      %v5660 = vpop.f32.mrf.mxu0
      %v5661 = vadd.f32 0.0, %v5660
      %v5662 = vpop.f32.mrf.mxu0
      %v5663 = vpop.f32.mrf.mxu0
      %v5664 = vadd.f32 0.0, %v5663
      %v5665 = vpop.f32.mrf.mxu0
      %5666 = vmatprep.mubr.bf16.mxu0 0
      %5667 = vmatmul.mubr.bf16.gmra.mxu0 %v4310
      %v5668 = vpop.f32.mrf.mxu0
      %v5669 = vadd.f32 0.0, %v5668
      %v5670 = vpop.f32.mrf.mxu0
      %v5671 = vpop.f32.mrf.mxu0
      %v5672 = vadd.f32 0.0, %v5671
      %v5673 = vpop.f32.mrf.mxu0
      %5674 = vmatprep.mubr.bf16.mxu0 0
      %5675 = vmatmul.mubr.bf16.gmra.mxu0 %v4311
      %v5676 = vpop.f32.mrf.mxu0
      %v5677 = vadd.f32 0.0, %v5676
      %v5678 = vpop.f32.mrf.mxu0
      %v5679 = vpop.f32.mrf.mxu0
      %v5680 = vadd.f32 0.0, %v5679
      %v5681 = vpop.f32.mrf.mxu0
      %5682 = vmatprep.mubr.bf16.mxu0 0
      %5683 = vmatmul.mubr.bf16.gmra.mxu0 %v4312
      %v5684 = vpop.f32.mrf.mxu0
      %v5685 = vadd.f32 0.0, %v5684
      %v5686 = vpop.f32.mrf.mxu0
      %v5687 = vpop.f32.mrf.mxu0
      %v5688 = vadd.f32 0.0, %v5687
      %v5689 = vpop.f32.mrf.mxu0
      %5690 = vmatprep.mubr.bf16.mxu0 0
      %5691 = vmatmul.mubr.bf16.gmra.mxu0 %v4313
      %v5692 = vpop.f32.mrf.mxu0
      %v5693 = vadd.f32 0.0, %v5692
      %v5694 = vpop.f32.mrf.mxu0
      %v5695 = vpop.f32.mrf.mxu0
      %v5696 = vpop.f32.mrf.mxu0
      %5697 = vdwg.mxu0
      %v5698 = vld [vmem:[#allocation2] sm:$0xff]
      %v5699 = vld [vmem:[#allocation2 + $0x8] sm:$0xff]
      %v5700 = vld [vmem:[#allocation2 + $0x10] sm:$0xff]
      %v5701 = vld [vmem:[#allocation2 + $0x18] sm:$0xff]
      %v5702 = vld [vmem:[#allocation2 + $0x20] sm:$0xff]
      %v5703 = vld [vmem:[#allocation2 + $0x28] sm:$0xff]
      %v5704 = vld [vmem:[#allocation2 + $0x30] sm:$0xff]
      %v5705 = vld [vmem:[#allocation2 + $0x38] sm:$0xff]
      %v5706 = vld [vmem:[#allocation2 + $0x40] sm:$0xff]
      %v5707 = vld [vmem:[#allocation2 + $0x48] sm:$0xff]
      %v5708 = vld [vmem:[#allocation2 + $0x50] sm:$0xff]
      %v5709 = vld [vmem:[#allocation2 + $0x58] sm:$0xff]
      %v5710 = vld [vmem:[#allocation2 + $0x60] sm:$0xff]
      %v5711 = vld [vmem:[#allocation2 + $0x68] sm:$0xff]
      %v5712 = vld [vmem:[#allocation2 + $0x70] sm:$0xff]
      %v5713 = vld [vmem:[#allocation2 + $0x78] sm:$0xff]
      %v5714 = vld [vmem:[#allocation2 + $0x80] sm:$0xff]
      %v5715 = vld [vmem:[#allocation2 + $0x88] sm:$0xff]
      %v5716 = vld [vmem:[#allocation2 + $0x90] sm:$0xff]
      %v5717 = vld [vmem:[#allocation2 + $0x98] sm:$0xff]
      %v5718 = vld [vmem:[#allocation2 + $0xa0] sm:$0xff]
      %v5719 = vld [vmem:[#allocation2 + $0xa8] sm:$0xff]
      %v5720 = vld [vmem:[#allocation2 + $0xb0] sm:$0xff]
      %v5721 = vld [vmem:[#allocation2 + $0xb8] sm:$0xff]
      %v5722 = vld [vmem:[#allocation2 + $0xc0] sm:$0xff]
      %v5723 = vld [vmem:[#allocation2 + $0xc8] sm:$0xff]
      %v5724 = vld [vmem:[#allocation2 + $0xd0] sm:$0xff]
      %v5725 = vld [vmem:[#allocation2 + $0xd8] sm:$0xff]
      %v5726 = vld [vmem:[#allocation2 + $0xe0] sm:$0xff]
      %v5727 = vld [vmem:[#allocation2 + $0xe8] sm:$0xff]
      %v5728 = vld [vmem:[#allocation2 + $0xf0] sm:$0xff]
      %v5729 = vld [vmem:[#allocation2 + $0xf8] sm:$0xff]
      %v5730 = vld [vmem:[#allocation2 + $0x100] sm:$0xff]
      %v5731 = vld [vmem:[#allocation2 + $0x108] sm:$0xff]
      %v5732 = vld [vmem:[#allocation2 + $0x110] sm:$0xff]
      %v5733 = vld [vmem:[#allocation2 + $0x118] sm:$0xff]
      %v5734 = vld [vmem:[#allocation2 + $0x120] sm:$0xff]
      %v5735 = vld [vmem:[#allocation2 + $0x128] sm:$0xff]
      %v5736 = vld [vmem:[#allocation2 + $0x130] sm:$0xff]
      %v5737 = vld [vmem:[#allocation2 + $0x138] sm:$0xff]
      %v5738 = vld [vmem:[#allocation2 + $0x140] sm:$0xff]
      %v5739 = vld [vmem:[#allocation2 + $0x148] sm:$0xff]
      %v5740 = vld [vmem:[#allocation2 + $0x150] sm:$0xff]
      %v5741 = vld [vmem:[#allocation2 + $0x158] sm:$0xff]
      %v5742 = vld [vmem:[#allocation2 + $0x160] sm:$0xff]
      %v5743 = vld [vmem:[#allocation2 + $0x168] sm:$0xff]
      %v5744 = vld [vmem:[#allocation2 + $0x170] sm:$0xff]
      %v5745 = vld [vmem:[#allocation2 + $0x178] sm:$0xff]
      %v5795 = vrot.slane %v5501, 4
      %v5796 = vrot.slane %v5504, 4
      %v5797 = vsel %vm1968, %v5795, %v5796
      %v5798 = vrot.slane %v5509, 4
      %v5799 = vsel %vm1968, %v5796, %v5798
      %v5800 = vrot.slane %v5512, 4
      %v5801 = vsel %vm1968, %v5798, %v5800
      %v5802 = vrot.slane %v5517, 4
      %v5803 = vsel %vm1968, %v5800, %v5802
      %v5804 = vrot.slane %v5520, 4
      %v5805 = vsel %vm1968, %v5802, %v5804
      %v5806 = vrot.slane %v5525, 4
      %v5807 = vsel %vm1968, %v5804, %v5806
      %v5808 = vrot.slane %v5528, 4
      %v5809 = vsel %vm1968, %v5806, %v5808
      %v5810 = vrot.slane %v5533, 4
      %v5811 = vsel %vm1968, %v5808, %v5810
      %v5812 = vrot.slane %v5536, 4
      %v5813 = vsel %vm1968, %v5810, %v5812
      %v5814 = vrot.slane %v5541, 4
      %v5815 = vsel %vm1968, %v5812, %v5814
      %v5816 = vrot.slane %v5544, 4
      %v5817 = vsel %vm1968, %v5814, %v5816
      %v5818 = vrot.slane %v5549, 4
      %v5819 = vsel %vm1968, %v5816, %v5818
      %v5820 = vrot.slane %v5552, 4
      %v5821 = vsel %vm1968, %v5818, %v5820
      %v5822 = vrot.slane %v5557, 4
      %v5823 = vsel %vm1968, %v5820, %v5822
      %v5824 = vrot.slane %v5560, 4
      %v5825 = vsel %vm1968, %v5822, %v5824
      %v5826 = vrot.slane %v5565, 4
      %v5827 = vsel %vm1968, %v5824, %v5826
      %v5828 = vrot.slane %v5568, 4
      %v5829 = vsel %vm1968, %v5826, %v5828
      %v5830 = vrot.slane %v5573, 4
      %v5831 = vsel %vm1968, %v5828, %v5830
      %v5832 = vrot.slane %v5576, 4
      %v5833 = vsel %vm1968, %v5830, %v5832
      %v5834 = vrot.slane %v5581, 4
      %v5835 = vsel %vm1968, %v5832, %v5834
      %v5836 = vrot.slane %v5584, 4
      %v5837 = vsel %vm1968, %v5834, %v5836
      %v5838 = vrot.slane %v5589, 4
      %v5839 = vsel %vm1968, %v5836, %v5838
      %v5840 = vrot.slane %v5592, 4
      %v5841 = vsel %vm1968, %v5838, %v5840
      %v5842 = vrot.slane %v5597, 4
      %v5843 = vsel %vm1968, %v5840, %v5842
      %v5844 = vrot.slane %v5600, 4
      %v5845 = vsel %vm1968, %v5842, %v5844
      %v5846 = vrot.slane %v5605, 4
      %v5847 = vsel %vm1968, %v5844, %v5846
      %v5848 = vrot.slane %v5608, 4
      %v5849 = vsel %vm1968, %v5846, %v5848
      %v5850 = vrot.slane %v5613, 4
      %v5851 = vsel %vm1968, %v5848, %v5850
      %v5852 = vrot.slane %v5616, 4
      %v5853 = vsel %vm1968, %v5850, %v5852
      %v5854 = vrot.slane %v5621, 4
      %v5855 = vsel %vm1968, %v5852, %v5854
      %v5856 = vrot.slane %v5624, 4
      %v5857 = vsel %vm1968, %v5854, %v5856
      %v5858 = vrot.slane %v5629, 4
      %v5859 = vsel %vm1968, %v5856, %v5858
      %v5860 = vrot.slane %v5632, 4
      %v5861 = vsel %vm1968, %v5858, %v5860
      %v5862 = vrot.slane %v5637, 4
      %v5863 = vsel %vm1968, %v5860, %v5862
      %v5864 = vrot.slane %v5640, 4
      %v5865 = vsel %vm1968, %v5862, %v5864
      %v5866 = vrot.slane %v5645, 4
      %v5867 = vsel %vm1968, %v5864, %v5866
      %v5868 = vrot.slane %v5648, 4
      %v5869 = vsel %vm1968, %v5866, %v5868
      %v5870 = vrot.slane %v5653, 4
      %v5871 = vsel %vm1968, %v5868, %v5870
      %v5872 = vrot.slane %v5656, 4
      %v5873 = vsel %vm1968, %v5870, %v5872
      %v5874 = vrot.slane %v5661, 4
      %v5875 = vsel %vm1968, %v5872, %v5874
      %v5876 = vrot.slane %v5664, 4
      %v5877 = vsel %vm1968, %v5874, %v5876
      %v5878 = vrot.slane %v5669, 4
      %v5879 = vsel %vm1968, %v5876, %v5878
      %v5880 = vrot.slane %v5672, 4
      %v5881 = vsel %vm1968, %v5878, %v5880
      %v5882 = vrot.slane %v5677, 4
      %v5883 = vsel %vm1968, %v5880, %v5882
      %v5884 = vrot.slane %v5680, 4
      %v5885 = vsel %vm1968, %v5882, %v5884
      %v5886 = vrot.slane %v5685, 4
      %v5887 = vsel %vm1968, %v5884, %v5886
      %v5888 = vrot.slane %v5688, 4
      %v5889 = vsel %vm1968, %v5886, %v5888
      %v5890 = vrot.slane %v5693, 4
      %v5891 = vsel %vm1968, %v5888, %v5890
      %v5940 = vadd.f32 %v5698, %v5797
      %v5941 = vadd.f32 %v5699, %v5799
      %v5942 = vadd.f32 %v5700, %v5801
      %v5943 = vadd.f32 %v5701, %v5803
      %v5944 = vadd.f32 %v5702, %v5805
      %v5945 = vadd.f32 %v5703, %v5807
      %v5946 = vadd.f32 %v5704, %v5809
      %v5947 = vadd.f32 %v5705, %v5811
      %v5948 = vadd.f32 %v5706, %v5813
      %v5949 = vadd.f32 %v5707, %v5815
      %v5950 = vadd.f32 %v5708, %v5817
      %v5951 = vadd.f32 %v5709, %v5819
      %v5952 = vadd.f32 %v5710, %v5821
      %v5953 = vadd.f32 %v5711, %v5823
      %v5954 = vadd.f32 %v5712, %v5825
      %v5955 = vadd.f32 %v5713, %v5827
      %v5956 = vadd.f32 %v5714, %v5829
      %v5957 = vadd.f32 %v5715, %v5831
      %v5958 = vadd.f32 %v5716, %v5833
      %v5959 = vadd.f32 %v5717, %v5835
      %v5960 = vadd.f32 %v5718, %v5837
      %v5961 = vadd.f32 %v5719, %v5839
      %v5962 = vadd.f32 %v5720, %v5841
      %v5963 = vadd.f32 %v5721, %v5843
      %v5964 = vadd.f32 %v5722, %v5845
      %v5965 = vadd.f32 %v5723, %v5847
      %v5966 = vadd.f32 %v5724, %v5849
      %v5967 = vadd.f32 %v5725, %v5851
      %v5968 = vadd.f32 %v5726, %v5853
      %v5969 = vadd.f32 %v5727, %v5855
      %v5970 = vadd.f32 %v5728, %v5857
      %v5971 = vadd.f32 %v5729, %v5859
      %v5972 = vadd.f32 %v5730, %v5861
      %v5973 = vadd.f32 %v5731, %v5863
      %v5974 = vadd.f32 %v5732, %v5865
      %v5975 = vadd.f32 %v5733, %v5867
      %v5976 = vadd.f32 %v5734, %v5869
      %v5977 = vadd.f32 %v5735, %v5871
      %v5978 = vadd.f32 %v5736, %v5873
      %v5979 = vadd.f32 %v5737, %v5875
      %v5980 = vadd.f32 %v5738, %v5877
      %v5981 = vadd.f32 %v5739, %v5879
      %v5982 = vadd.f32 %v5740, %v5881
      %v5983 = vadd.f32 %v5741, %v5883
      %v5984 = vadd.f32 %v5742, %v5885
      %v5985 = vadd.f32 %v5743, %v5887
      %v5986 = vadd.f32 %v5744, %v5889
      %v5987 = vadd.f32 %v5745, %v5891
      %5988 = vst [vmem:[#allocation2] sm:$0xff] %v5940
      %5989 = vst [vmem:[#allocation2 + $0x8] sm:$0xff] %v5941
      %5990 = vst [vmem:[#allocation2 + $0x10] sm:$0xff] %v5942
      %5991 = vst [vmem:[#allocation2 + $0x18] sm:$0xff] %v5943
      %5992 = vst [vmem:[#allocation2 + $0x20] sm:$0xff] %v5944
      %5993 = vst [vmem:[#allocation2 + $0x28] sm:$0xff] %v5945
      %5994 = vst [vmem:[#allocation2 + $0x30] sm:$0xff] %v5946
      %5995 = vst [vmem:[#allocation2 + $0x38] sm:$0xff] %v5947
      %5996 = vst [vmem:[#allocation2 + $0x40] sm:$0xff] %v5948
      %5997 = vst [vmem:[#allocation2 + $0x48] sm:$0xff] %v5949
      %5998 = vst [vmem:[#allocation2 + $0x50] sm:$0xff] %v5950
      %5999 = vst [vmem:[#allocation2 + $0x58] sm:$0xff] %v5951
      %6000 = vst [vmem:[#allocation2 + $0x60] sm:$0xff] %v5952
      %6001 = vst [vmem:[#allocation2 + $0x68] sm:$0xff] %v5953
      %6002 = vst [vmem:[#allocation2 + $0x70] sm:$0xff] %v5954
      %6003 = vst [vmem:[#allocation2 + $0x78] sm:$0xff] %v5955
      %6004 = vst [vmem:[#allocation2 + $0x80] sm:$0xff] %v5956
      %6005 = vst [vmem:[#allocation2 + $0x88] sm:$0xff] %v5957
      %6006 = vst [vmem:[#allocation2 + $0x90] sm:$0xff] %v5958
      %6007 = vst [vmem:[#allocation2 + $0x98] sm:$0xff] %v5959
      %6008 = vst [vmem:[#allocation2 + $0xa0] sm:$0xff] %v5960
      %6009 = vst [vmem:[#allocation2 + $0xa8] sm:$0xff] %v5961
      %6010 = vst [vmem:[#allocation2 + $0xb0] sm:$0xff] %v5962
      %6011 = vst [vmem:[#allocation2 + $0xb8] sm:$0xff] %v5963
      %6012 = vst [vmem:[#allocation2 + $0xc0] sm:$0xff] %v5964
      %6013 = vst [vmem:[#allocation2 + $0xc8] sm:$0xff] %v5965
      %6014 = vst [vmem:[#allocation2 + $0xd0] sm:$0xff] %v5966
      %6015 = vst [vmem:[#allocation2 + $0xd8] sm:$0xff] %v5967
      %6016 = vst [vmem:[#allocation2 + $0xe0] sm:$0xff] %v5968
      %6017 = vst [vmem:[#allocation2 + $0xe8] sm:$0xff] %v5969
      %6018 = vst [vmem:[#allocation2 + $0xf0] sm:$0xff] %v5970
      %6019 = vst [vmem:[#allocation2 + $0xf8] sm:$0xff] %v5971
      %6020 = vst [vmem:[#allocation2 + $0x100] sm:$0xff] %v5972
      %6021 = vst [vmem:[#allocation2 + $0x108] sm:$0xff] %v5973
      %6022 = vst [vmem:[#allocation2 + $0x110] sm:$0xff] %v5974
      %6023 = vst [vmem:[#allocation2 + $0x118] sm:$0xff] %v5975
      %6024 = vst [vmem:[#allocation2 + $0x120] sm:$0xff] %v5976
      %6025 = vst [vmem:[#allocation2 + $0x128] sm:$0xff] %v5977
      %6026 = vst [vmem:[#allocation2 + $0x130] sm:$0xff] %v5978
      %6027 = vst [vmem:[#allocation2 + $0x138] sm:$0xff] %v5979
      %6028 = vst [vmem:[#allocation2 + $0x140] sm:$0xff] %v5980
      %6029 = vst [vmem:[#allocation2 + $0x148] sm:$0xff] %v5981
      %6030 = vst [vmem:[#allocation2 + $0x150] sm:$0xff] %v5982
      %6031 = vst [vmem:[#allocation2 + $0x158] sm:$0xff] %v5983
      %6032 = vst [vmem:[#allocation2 + $0x160] sm:$0xff] %v5984
      %6033 = vst [vmem:[#allocation2 + $0x168] sm:$0xff] %v5985
      %6034 = vst [vmem:[#allocation2 + $0x170] sm:$0xff] %v5986
      %6035 = vst [vmem:[#allocation2 + $0x178] sm:$0xff] %v5987
      // Predicated region
      $region37: #{aspp_conv_forward.1} parent=31 // pred_check
        %p6036 = pneg %p241
      $region38: #{aspp_conv_forward.1} parent=31 // pred_check_branch
        %6038 = sbr.rel (%p6036) target = $region40
      $region39: #{aspp_conv_forward.1} parent=31 // pred_region
        %v6039 = vld [vmem:[#allocation2] sm:$0xff]
        %v6040 = vld [vmem:[#allocation2 + $0x8] sm:$0xff]
        %v6041 = vld [vmem:[#allocation2 + $0x10] sm:$0xff]
        %v6042 = vld [vmem:[#allocation2 + $0x18] sm:$0xff]
        %v6043 = vld [vmem:[#allocation2 + $0x20] sm:$0xff]
        %v6044 = vld [vmem:[#allocation2 + $0x28] sm:$0xff]
        %v6045 = vld [vmem:[#allocation2 + $0x30] sm:$0xff]
        %v6046 = vld [vmem:[#allocation2 + $0x38] sm:$0xff]
        %v6047 = vld [vmem:[#allocation2 + $0x40] sm:$0xff]
        %v6048 = vld [vmem:[#allocation2 + $0x48] sm:$0xff]
        %v6049 = vld [vmem:[#allocation2 + $0x50] sm:$0xff]
        %v6050 = vld [vmem:[#allocation2 + $0x58] sm:$0xff]
        %v6051 = vld [vmem:[#allocation2 + $0x60] sm:$0xff]
        %v6052 = vld [vmem:[#allocation2 + $0x68] sm:$0xff]
        %v6053 = vld [vmem:[#allocation2 + $0x70] sm:$0xff]
        %v6054 = vld [vmem:[#allocation2 + $0x78] sm:$0xff]
        %v6055 = vld [vmem:[#allocation2 + $0x80] sm:$0xff]
        %v6056 = vld [vmem:[#allocation2 + $0x88] sm:$0xff]
        %v6057 = vld [vmem:[#allocation2 + $0x90] sm:$0xff]
        %v6058 = vld [vmem:[#allocation2 + $0x98] sm:$0xff]
        %v6059 = vld [vmem:[#allocation2 + $0xa0] sm:$0xff]
        %v6060 = vld [vmem:[#allocation2 + $0xa8] sm:$0xff]
        %v6061 = vld [vmem:[#allocation2 + $0xb0] sm:$0xff]
        %v6062 = vld [vmem:[#allocation2 + $0xb8] sm:$0xff]
        %v6063 = vld [vmem:[#allocation2 + $0xc0] sm:$0xff]
        %v6064 = vld [vmem:[#allocation2 + $0xc8] sm:$0xff]
        %v6065 = vld [vmem:[#allocation2 + $0xd0] sm:$0xff]
        %v6066 = vld [vmem:[#allocation2 + $0xd8] sm:$0xff]
        %v6067 = vld [vmem:[#allocation2 + $0xe0] sm:$0xff]
        %v6068 = vld [vmem:[#allocation2 + $0xe8] sm:$0xff]
        %v6069 = vld [vmem:[#allocation2 + $0xf0] sm:$0xff]
        %v6070 = vld [vmem:[#allocation2 + $0xf8] sm:$0xff]
        %v6071 = vld [vmem:[#allocation2 + $0x100] sm:$0xff]
        %v6072 = vld [vmem:[#allocation2 + $0x108] sm:$0xff]
        %v6073 = vld [vmem:[#allocation2 + $0x110] sm:$0xff]
        %v6074 = vld [vmem:[#allocation2 + $0x118] sm:$0xff]
        %v6075 = vld [vmem:[#allocation2 + $0x120] sm:$0xff]
        %v6076 = vld [vmem:[#allocation2 + $0x128] sm:$0xff]
        %v6077 = vld [vmem:[#allocation2 + $0x130] sm:$0xff]
        %v6078 = vld [vmem:[#allocation2 + $0x138] sm:$0xff]
        %v6079 = vld [vmem:[#allocation2 + $0x140] sm:$0xff]
        %v6080 = vld [vmem:[#allocation2 + $0x148] sm:$0xff]
        %v6081 = vld [vmem:[#allocation2 + $0x150] sm:$0xff]
        %v6082 = vld [vmem:[#allocation2 + $0x158] sm:$0xff]
        %v6083 = vld [vmem:[#allocation2 + $0x160] sm:$0xff]
        %v6084 = vld [vmem:[#allocation2 + $0x168] sm:$0xff]
        %v6085 = vld [vmem:[#allocation2 + $0x170] sm:$0xff]
        %v6086 = vld [vmem:[#allocation2 + $0x178] sm:$0xff]
        %v6087 = vld [vmem:[%s231] sm:$0x1]
        %v6089 = vlaneseq
        %v6090 = vshrl.u32 %v6089, 7
        %v6091 = vsub.s32 0, %v6090
        %v6092 = vrot.slane %v6087, %v6091
        %v6094 = vadd.f32 %v6039, %v6092
        %v6095 = vadd.f32 %v6040, %v6092
        %v6096 = vadd.f32 %v6041, %v6092
        %v6097 = vadd.f32 %v6042, %v6092
        %v6098 = vadd.f32 %v6043, %v6092
        %v6099 = vadd.f32 %v6044, %v6092
        %v6100 = vadd.f32 %v6045, %v6092
        %v6101 = vadd.f32 %v6046, %v6092
        %v6102 = vadd.f32 %v6047, %v6092
        %v6103 = vadd.f32 %v6048, %v6092
        %v6104 = vadd.f32 %v6049, %v6092
        %v6105 = vadd.f32 %v6050, %v6092
        %v6106 = vadd.f32 %v6051, %v6092
        %v6107 = vadd.f32 %v6052, %v6092
        %v6108 = vadd.f32 %v6053, %v6092
        %v6109 = vadd.f32 %v6054, %v6092
        %v6110 = vadd.f32 %v6055, %v6092
        %v6111 = vadd.f32 %v6056, %v6092
        %v6112 = vadd.f32 %v6057, %v6092
        %v6113 = vadd.f32 %v6058, %v6092
        %v6114 = vadd.f32 %v6059, %v6092
        %v6115 = vadd.f32 %v6060, %v6092
        %v6116 = vadd.f32 %v6061, %v6092
        %v6117 = vadd.f32 %v6062, %v6092
        %v6118 = vadd.f32 %v6063, %v6092
        %v6119 = vadd.f32 %v6064, %v6092
        %v6120 = vadd.f32 %v6065, %v6092
        %v6121 = vadd.f32 %v6066, %v6092
        %v6122 = vadd.f32 %v6067, %v6092
        %v6123 = vadd.f32 %v6068, %v6092
        %v6124 = vadd.f32 %v6069, %v6092
        %v6125 = vadd.f32 %v6070, %v6092
        %v6126 = vadd.f32 %v6071, %v6092
        %v6127 = vadd.f32 %v6072, %v6092
        %v6128 = vadd.f32 %v6073, %v6092
        %v6129 = vadd.f32 %v6074, %v6092
        %v6130 = vadd.f32 %v6075, %v6092
        %v6131 = vadd.f32 %v6076, %v6092
        %v6132 = vadd.f32 %v6077, %v6092
        %v6133 = vadd.f32 %v6078, %v6092
        %v6134 = vadd.f32 %v6079, %v6092
        %v6135 = vadd.f32 %v6080, %v6092
        %v6136 = vadd.f32 %v6081, %v6092
        %v6137 = vadd.f32 %v6082, %v6092
        %v6138 = vadd.f32 %v6083, %v6092
        %v6139 = vadd.f32 %v6084, %v6092
        %v6140 = vadd.f32 %v6085, %v6092
        %v6141 = vadd.f32 %v6086, %v6092
        %v6142 = vmax.f32 %v6094, 0.0
        %v6143 = vmax.f32 %v6095, 0.0
        %v6144 = vmax.f32 %v6096, 0.0
        %v6145 = vmax.f32 %v6097, 0.0
        %v6146 = vmax.f32 %v6098, 0.0
        %v6147 = vmax.f32 %v6099, 0.0
        %v6148 = vmax.f32 %v6100, 0.0
        %v6149 = vmax.f32 %v6101, 0.0
        %v6150 = vmax.f32 %v6102, 0.0
        %v6151 = vmax.f32 %v6103, 0.0
        %v6152 = vmax.f32 %v6104, 0.0
        %v6153 = vmax.f32 %v6105, 0.0
        %v6154 = vmax.f32 %v6106, 0.0
        %v6155 = vmax.f32 %v6107, 0.0
        %v6156 = vmax.f32 %v6108, 0.0
        %v6157 = vmax.f32 %v6109, 0.0
        %v6158 = vmax.f32 %v6110, 0.0
        %v6159 = vmax.f32 %v6111, 0.0
        %v6160 = vmax.f32 %v6112, 0.0
        %v6161 = vmax.f32 %v6113, 0.0
        %v6162 = vmax.f32 %v6114, 0.0
        %v6163 = vmax.f32 %v6115, 0.0
        %v6164 = vmax.f32 %v6116, 0.0
        %v6165 = vmax.f32 %v6117, 0.0
        %v6166 = vmax.f32 %v6118, 0.0
        %v6167 = vmax.f32 %v6119, 0.0
        %v6168 = vmax.f32 %v6120, 0.0
        %v6169 = vmax.f32 %v6121, 0.0
        %v6170 = vmax.f32 %v6122, 0.0
        %v6171 = vmax.f32 %v6123, 0.0
        %v6172 = vmax.f32 %v6124, 0.0
        %v6173 = vmax.f32 %v6125, 0.0
        %v6174 = vmax.f32 %v6126, 0.0
        %v6175 = vmax.f32 %v6127, 0.0
        %v6176 = vmax.f32 %v6128, 0.0
        %v6177 = vmax.f32 %v6129, 0.0
        %v6178 = vmax.f32 %v6130, 0.0
        %v6179 = vmax.f32 %v6131, 0.0
        %v6180 = vmax.f32 %v6132, 0.0
        %v6181 = vmax.f32 %v6133, 0.0
        %v6182 = vmax.f32 %v6134, 0.0
        %v6183 = vmax.f32 %v6135, 0.0
        %v6184 = vmax.f32 %v6136, 0.0
        %v6185 = vmax.f32 %v6137, 0.0
        %v6186 = vmax.f32 %v6138, 0.0
        %v6187 = vmax.f32 %v6139, 0.0
        %v6188 = vmax.f32 %v6140, 0.0
        %v6189 = vmax.f32 %v6141, 0.0
        %v6190 = vpack.c.bf16 %v6143, %v6142
        %v6191 = vpack.c.bf16 %v6145, %v6144
        %v6192 = vpack.c.bf16 %v6147, %v6146
        %v6193 = vpack.c.bf16 %v6149, %v6148
        %v6194 = vpack.c.bf16 %v6151, %v6150
        %v6195 = vpack.c.bf16 %v6153, %v6152
        %v6196 = vpack.c.bf16 %v6155, %v6154
        %v6197 = vpack.c.bf16 %v6157, %v6156
        %v6198 = vpack.c.bf16 %v6159, %v6158
        %v6199 = vpack.c.bf16 %v6161, %v6160
        %v6200 = vpack.c.bf16 %v6163, %v6162
        %v6201 = vpack.c.bf16 %v6165, %v6164
        %v6202 = vpack.c.bf16 %v6167, %v6166
        %v6203 = vpack.c.bf16 %v6169, %v6168
        %v6204 = vpack.c.bf16 %v6171, %v6170
        %v6205 = vpack.c.bf16 %v6173, %v6172
        %v6206 = vpack.c.bf16 %v6175, %v6174
        %v6207 = vpack.c.bf16 %v6177, %v6176
        %v6208 = vpack.c.bf16 %v6179, %v6178
        %v6209 = vpack.c.bf16 %v6181, %v6180
        %v6210 = vpack.c.bf16 %v6183, %v6182
        %v6211 = vpack.c.bf16 %v6185, %v6184
        %v6212 = vpack.c.bf16 %v6187, %v6186
        %v6213 = vpack.c.bf16 %v6189, %v6188
        %v6238 = vunpack.c.l.b16 %v6190
        %v6239 = vunpack.c.h.b16 %v6190
        %v6240 = vunpack.c.l.b16 %v6191
        %v6241 = vunpack.c.h.b16 %v6191
        %v6242 = vunpack.c.l.b16 %v6192
        %v6243 = vunpack.c.h.b16 %v6192
        %v6244 = vunpack.c.l.b16 %v6193
        %v6245 = vunpack.c.h.b16 %v6193
        %v6246 = vunpack.c.l.b16 %v6194
        %v6247 = vunpack.c.h.b16 %v6194
        %v6248 = vunpack.c.l.b16 %v6195
        %v6249 = vunpack.c.h.b16 %v6195
        %v6250 = vunpack.c.l.b16 %v6196
        %v6251 = vunpack.c.h.b16 %v6196
        %v6252 = vunpack.c.l.b16 %v6197
        %v6253 = vunpack.c.h.b16 %v6197
        %v6254 = vunpack.c.l.b16 %v6198
        %v6255 = vunpack.c.h.b16 %v6198
        %v6256 = vunpack.c.l.b16 %v6199
        %v6257 = vunpack.c.h.b16 %v6199
        %v6258 = vunpack.c.l.b16 %v6200
        %v6259 = vunpack.c.h.b16 %v6200
        %v6260 = vunpack.c.l.b16 %v6201
        %v6261 = vunpack.c.h.b16 %v6201
        %v6262 = vunpack.c.l.b16 %v6202
        %v6263 = vunpack.c.h.b16 %v6202
        %v6264 = vunpack.c.l.b16 %v6203
        %v6265 = vunpack.c.h.b16 %v6203
        %v6266 = vunpack.c.l.b16 %v6204
        %v6267 = vunpack.c.h.b16 %v6204
        %v6268 = vunpack.c.l.b16 %v6205
        %v6269 = vunpack.c.h.b16 %v6205
        %v6270 = vunpack.c.l.b16 %v6206
        %v6271 = vunpack.c.h.b16 %v6206
        %v6272 = vunpack.c.l.b16 %v6207
        %v6273 = vunpack.c.h.b16 %v6207
        %v6274 = vunpack.c.l.b16 %v6208
        %v6275 = vunpack.c.h.b16 %v6208
        %v6276 = vunpack.c.l.b16 %v6209
        %v6277 = vunpack.c.h.b16 %v6209
        %v6278 = vunpack.c.l.b16 %v6210
        %v6279 = vunpack.c.h.b16 %v6210
        %v6280 = vunpack.c.l.b16 %v6211
        %v6281 = vunpack.c.h.b16 %v6211
        %v6282 = vunpack.c.l.b16 %v6212
        %v6283 = vunpack.c.h.b16 %v6212
        %v6284 = vunpack.c.l.b16 %v6213
        %v6285 = vunpack.c.h.b16 %v6213
        %v6286 = vpack.c.b16 %v6238, %v6238
        %v6287 = vpack.c.b16 %v6239, %v6239
        %v6288 = vpack.c.b16 %v6240, %v6240
        %v6289 = vpack.c.b16 %v6241, %v6241
        %v6290 = vpack.c.b16 %v6242, %v6242
        %v6291 = vpack.c.b16 %v6243, %v6243
        %v6292 = vpack.c.b16 %v6244, %v6244
        %v6293 = vpack.c.b16 %v6245, %v6245
        %v6294 = vpack.c.b16 %v6246, %v6246
        %v6295 = vpack.c.b16 %v6247, %v6247
        %v6296 = vpack.c.b16 %v6248, %v6248
        %v6297 = vpack.c.b16 %v6249, %v6249
        %v6298 = vpack.c.b16 %v6250, %v6250
        %v6299 = vpack.c.b16 %v6251, %v6251
        %v6300 = vpack.c.b16 %v6252, %v6252
        %v6301 = vpack.c.b16 %v6253, %v6253
        %v6302 = vpack.c.b16 %v6254, %v6254
        %v6303 = vpack.c.b16 %v6255, %v6255
        %v6304 = vpack.c.b16 %v6256, %v6256
        %v6305 = vpack.c.b16 %v6257, %v6257
        %v6306 = vpack.c.b16 %v6258, %v6258
        %v6307 = vpack.c.b16 %v6259, %v6259
        %v6308 = vpack.c.b16 %v6260, %v6260
        %v6309 = vpack.c.b16 %v6261, %v6261
        %v6310 = vpack.c.b16 %v6262, %v6262
        %v6311 = vpack.c.b16 %v6263, %v6263
        %v6312 = vpack.c.b16 %v6264, %v6264
        %v6313 = vpack.c.b16 %v6265, %v6265
        %v6314 = vpack.c.b16 %v6266, %v6266
        %v6315 = vpack.c.b16 %v6267, %v6267
        %v6316 = vpack.c.b16 %v6268, %v6268
        %v6317 = vpack.c.b16 %v6269, %v6269
        %v6318 = vpack.c.b16 %v6270, %v6270
        %v6319 = vpack.c.b16 %v6271, %v6271
        %v6320 = vpack.c.b16 %v6272, %v6272
        %v6321 = vpack.c.b16 %v6273, %v6273
        %v6322 = vpack.c.b16 %v6274, %v6274
        %v6323 = vpack.c.b16 %v6275, %v6275
        %v6324 = vpack.c.b16 %v6276, %v6276
        %v6325 = vpack.c.b16 %v6277, %v6277
        %v6326 = vpack.c.b16 %v6278, %v6278
        %v6327 = vpack.c.b16 %v6279, %v6279
        %v6328 = vpack.c.b16 %v6280, %v6280
        %v6329 = vpack.c.b16 %v6281, %v6281
        %v6330 = vpack.c.b16 %v6282, %v6282
        %v6331 = vpack.c.b16 %v6283, %v6283
        %v6332 = vpack.c.b16 %v6284, %v6284
        %v6333 = vpack.c.b16 %v6285, %v6285
        %6382 = vst [vmem:[%s239] sm:$0xf] %v6286
        %6383 = vst [vmem:[%s239 + $0x4] sm:$0xf] %v6287
        %6384 = vst [vmem:[%s239 + $0x8] sm:$0xf] %v6288
        %6385 = vst [vmem:[%s239 + $0xc] sm:$0xf] %v6289
        %6386 = vst [vmem:[%s239 + $0x10] sm:$0xf] %v6290
        %6387 = vst [vmem:[%s239 + $0x14] sm:$0xf] %v6291
        %6388 = vst [vmem:[%s239 + $0x18] sm:$0xf] %v6292
        %6389 = vst [vmem:[%s239 + $0x1c] sm:$0xf] %v6293
        %6390 = vst [vmem:[%s239 + $0x20] sm:$0xf] %v6294
        %6391 = vst [vmem:[%s239 + $0x24] sm:$0xf] %v6295
        %6392 = vst [vmem:[%s239 + $0x28] sm:$0xf] %v6296
        %6393 = vst [vmem:[%s239 + $0x2c] sm:$0xf] %v6297
        %6394 = vst [vmem:[%s239 + $0x30] sm:$0xf] %v6298
        %6395 = vst [vmem:[%s239 + $0x34] sm:$0xf] %v6299
        %6396 = vst [vmem:[%s239 + $0x38] sm:$0xf] %v6300
        %6397 = vst [vmem:[%s239 + $0x3c] sm:$0xf] %v6301
        %6398 = vst [vmem:[%s239 + $0x40] sm:$0xf] %v6302
        %6399 = vst [vmem:[%s239 + $0x44] sm:$0xf] %v6303
        %6400 = vst [vmem:[%s239 + $0x48] sm:$0xf] %v6304
        %6401 = vst [vmem:[%s239 + $0x4c] sm:$0xf] %v6305
        %6402 = vst [vmem:[%s239 + $0x50] sm:$0xf] %v6306
        %6403 = vst [vmem:[%s239 + $0x54] sm:$0xf] %v6307
        %6404 = vst [vmem:[%s239 + $0x58] sm:$0xf] %v6308
        %6405 = vst [vmem:[%s239 + $0x5c] sm:$0xf] %v6309
        %6406 = vst [vmem:[%s239 + $0x60] sm:$0xf] %v6310
        %6407 = vst [vmem:[%s239 + $0x64] sm:$0xf] %v6311
        %6408 = vst [vmem:[%s239 + $0x68] sm:$0xf] %v6312
        %6409 = vst [vmem:[%s239 + $0x6c] sm:$0xf] %v6313
        %6410 = vst [vmem:[%s239 + $0x70] sm:$0xf] %v6314
        %6411 = vst [vmem:[%s239 + $0x74] sm:$0xf] %v6315
        %6412 = vst [vmem:[%s239 + $0x78] sm:$0xf] %v6316
        %6413 = vst [vmem:[%s239 + $0x7c] sm:$0xf] %v6317
        %6414 = vst [vmem:[%s239 + $0x80] sm:$0xf] %v6318
        %6415 = vst [vmem:[%s239 + $0x84] sm:$0xf] %v6319
        %6416 = vst [vmem:[%s239 + $0x88] sm:$0xf] %v6320
        %6417 = vst [vmem:[%s239 + $0x8c] sm:$0xf] %v6321
        %6418 = vst [vmem:[%s239 + $0x90] sm:$0xf] %v6322
        %6419 = vst [vmem:[%s239 + $0x94] sm:$0xf] %v6323
        %6420 = vst [vmem:[%s239 + $0x98] sm:$0xf] %v6324
        %6421 = vst [vmem:[%s239 + $0x9c] sm:$0xf] %v6325
        %6422 = vst [vmem:[%s239 + $0xa0] sm:$0xf] %v6326
        %6423 = vst [vmem:[%s239 + $0xa4] sm:$0xf] %v6327
        %6424 = vst [vmem:[%s239 + $0xa8] sm:$0xf] %v6328
        %6425 = vst [vmem:[%s239 + $0xac] sm:$0xf] %v6329
        %6426 = vst [vmem:[%s239 + $0xb0] sm:$0xf] %v6330
        %6427 = vst [vmem:[%s239 + $0xb4] sm:$0xf] %v6331
        %6428 = vst [vmem:[%s239 + $0xb8] sm:$0xf] %v6332
        %6429 = vst [vmem:[%s239 + $0xbc] sm:$0xf] %v6333
      $region40: #{aspp_conv_forward.1} parent=31 // pred_fallthru
        _
      %p6430 = scmp.lt.s32.totalorder %s19, 1
      %s6431 = scalar_select %p6430, %s19, 1
      %p6432 = scmp.lt.s32.totalorder %s20, 0
      %s6433 = scalar_select %p6432, %s20, 0
      %s6434 = smul.addr %s6431, 48
      %s6435 = sadd.s32 %s6433, %s6434
      %s6436 = smul.addr %s6435, 4
      %s6437 = scalar_lea.vmem %s3, %s6436
      // Predicated region
      $region41: #{aspp_conv_forward.1} parent=31 // pred_check
        %p6438 = pneg %p133
      $region42: #{aspp_conv_forward.1} parent=31 // pred_check_branch
        %6440 = sbr.rel (%p6438) target = $region44
      $region43: #{aspp_conv_forward.1} parent=31 // pred_region
        _
      $region44: #{aspp_conv_forward.1} parent=31 // pred_fallthru
        _
    $region32: #{aspp_conv_forward.1} parent=5 // pred_fallthru
      _
    %p6441 = scmp.le.s32.totalorder 2, %s9
    // Predicated region
    $region45: #{aspp_conv_forward.1} parent=5 // pred_check
      %p6442 = pneg %p6441
    $region46: #{aspp_conv_forward.1} parent=5 // pred_check_branch
      %6444 = sbr.rel (%p6442) target = $region48
    $region47: #{aspp_conv_forward.1} parent=5 // pred_region
      %s6445 = ssub.s32 %s9, 2
      // Predicated region
      $region49: #{aspp_conv_forward.1} parent=47 // pred_check
        %p6446 = pneg %p139
      $region50: #{aspp_conv_forward.1} parent=47 // pred_check_branch
        %6448 = sbr.rel (%p6446) target = $region52
      $region51: #{aspp_conv_forward.1} parent=47 // pred_region
        %p6449 = scmp.lt.s32.totalorder %s22, 1
        %s6450 = scalar_select %p6449, %s22, 1
        %p6451 = scmp.lt.s32.totalorder %s23, 0
        %s6452 = scalar_select %p6451, %s23, 0
        %s6453 = smul.addr %s6450, 48
        %s6454 = sadd.s32 %s6452, %s6453
        %s6455 = smul.addr %s6454, 4
        %s6456 = scalar_lea.vmem %s3, %s6455
      $region52: #{aspp_conv_forward.1} parent=47 // pred_fallthru
        _
    $region48: #{aspp_conv_forward.1} parent=5 // pred_fallthru
      _
  $region6: #{aspp_conv_forward.1} parent=0 // loop_footer
    %s13 = sadd.s32 1, %s9
  $region7: #{aspp_conv_forward.1} parent=0 // loop_footer_branch
    %8 = sbr.rel target = $region3
  $region8: #{aspp_conv_forward.1} parent=0 // loop_exit
    _

</llo_original>
